<compile_context>
chip_gen: v7x
topology: tpu7x:2x2x1
jax: 0.10.0
libtpu: 0.0.40
codegen_flags: <defaults>
</compile_context>

<pallas_src>
import functools

import numpy as np
import jax
import jax.numpy as jnp
from jax import lax
from jax.experimental import pallas as pl
from jax.experimental.pallas import tpu as pltpu


# ------------------------------------------------------------------------------------------
# Host-side constants (depend only on N; built at trace time with numpy)
# ------------------------------------------------------------------------------------------
def build_stencil_masks(N):
    """0/1 boundary masks per 3x3 stencil tap on the row-major flattened N x N grid.

    Tap (di, dj) of F.conv2d(..., padding=1) reads x[i+di-1, j+dj-1]; on the flattened vector
    that is roll(x, -( (di-1)*N + (dj-1) )) with out-of-grid (and roll-wrapped) positions
    zeroed -- exactly the positions these masks zero.
    """
    masks = np.ones((9, N, N), np.float32)
    for di in range(3):
        for dj in range(3):
            k = di * 3 + dj
            if di == 0:
                masks[k, 0, :] = 0.0
            if di == 2:
                masks[k, -1, :] = 0.0
            if dj == 0:
                masks[k, :, 0] = 0.0
            if dj == 2:
                masks[k, :, -1] = 0.0
    return masks.reshape(9, N * N)


def build_lfa_trig(N):
    """cos/sin grids of the LFA phases.

    The reference builds the symbol with complex exponentials exp(+-i*2*pi*P*h); complex64 is
    not a Pallas TPU dtype, so the kernel evaluates Re/Im of the symbol with these real grids.
    Meshgrid uses the default 'xy' indexing, matching the torch code.
    """
    h = 1.0 / (N + 1)
    p = np.arange(-N // 2, N // 2)
    P1, P2 = np.meshgrid(p, p)                       # 'xy' indexing, as in the reference
    ph1 = 2.0 * np.pi * P1 * h
    ph2 = 2.0 * np.pi * P2 * h
    trig = np.stack([np.cos(ph1 + ph2), np.cos(ph1 - ph2), np.cos(ph1), np.cos(ph2),
                     np.sin(ph1 + ph2), np.sin(ph1 - ph2), np.sin(ph1), np.sin(ph2)], 0)
    return trig.reshape(8, N * N).astype(np.float32)


# ------------------------------------------------------------------------------------------
# The single fused Pallas kernel: LFA symbol + trunk net + K x (smoother + DeepONet) + loss
# ------------------------------------------------------------------------------------------
def _hyperfns_fused_kernel(kw_ref, f_ref, mask_ref, trig_ref, coords_ref,
                           wt1_ref, bt1_ref, wt2_ref, bt2_ref,
                           wb1l_ref, wb1r_ref, bb1_ref, wb2_ref, bb2_ref, b0_ref,
                           loss_ref, *, n, m_sweeps, k_steps):
    nn = n * n
    f = f_ref[...]                                   # (B, N*N) lane-dense rows
    kw = kw_ref[...]                                 # (B, 9)   per-batch 3x3 stencil weights
    bsz = f.shape[0]

    # ---- damped-Jacobi constants, hoisted out of every loop -------------------------------
    tau = 0.5 / kw[:, 4:5]                           # (B, 1)  w / A_center, w = 0.5
    tau_b = jnp.broadcast_to(tau, (bsz, nn))
    # per-tap weight * boundary mask, broadcast to (B, N*N) exactly once (no per-sweep splats)
    wmask = [jnp.broadcast_to(kw[:, k:k + 1], (bsz, nn)) * mask_ref[k:k + 1, :]
             for k in range(9)]
    # flat-index shift of tap (di, dj): result[idx] = x[idx + (di-1)*n + (dj-1)]
    shifts = [(-((di - 1) * n + (dj - 1))) % nn
              for di in range(3) for dj in range(3)]

    def apply_A(x):
        # A(x) == F.conv2d(x, kernelA[b, 0], padding=1) on the row-major flattened grid.
        acc = wmask[4] * x                           # center tap, no shift
        for k in range(9):
            if k == 4:
                continue
            acc = acc + wmask[k] * pltpu.roll(x, shifts[k], 1)   # XLU lane rotation + mask
        return acc

    # ---- LFA smoothing factor |1 - tau*sym(theta)|^5, real arithmetic ---------------------
    c12, c1m2, c1, c2 = (trig_ref[i:i + 1, :] for i in range(4))
    s12, s1m2, s1, s2 = (trig_ref[i:i + 1, :] for i in range(4, 8))
    re = ((kw[:, 0:1] + kw[:, 8:9]) * c12 + (kw[:, 2:3] + kw[:, 6:7]) * c1m2
          + (kw[:, 1:2] + kw[:, 7:8]) * c2 + (kw[:, 3:4] + kw[:, 5:6]) * c1
          + kw[:, 4:5])                                            # Re(sym)  (B, N*N)
    im = ((kw[:, 8:9] - kw[:, 0:1]) * s12 + (kw[:, 2:3] - kw[:, 6:7]) * s1m2
          + (kw[:, 7:8] - kw[:, 1:2]) * s2 + (kw[:, 5:6] - kw[:, 3:4]) * s1)  # Im(sym)
    t = (1.0 - tau * re) ** 2 + (tau * im) ** 2      # |1 - tau*sym|^2
    lfa = t * t * jnp.sqrt(t)                        # ^5: five Jacobi factors, as in reference

    # ---- DeepONet constants: trunk net (built transposed) + LFA branch half ---------------
    # depth-2 contraction coords@Wt1 done as two broadcast-FMAs (no wasted MXU pass)
    t1 = jnp.tanh(wt1_ref[:, 0:1] * coords_ref[0:1, :]
                  + wt1_ref[:, 1:2] * coords_ref[1:2, :] + bt1_ref[...])       # (H, N*N)
    trunk_t = jnp.tanh(jnp.dot(wt2_ref[...], t1,
                               preferred_element_type=jnp.float32)
                       + bt2_ref[...])                                         # (P, N*N)
    lfa_proj = jnp.dot(lfa, wb1l_ref[...],
                       preferred_element_type=jnp.float32)                     # (B, H)

    # ---- K FNS iterations: M Jacobi sweeps + residual + DeepONet correction ---------------
    def fns_step(_, x):
        for _ in range(m_sweeps):                    # static unroll; x stays in vregs
            x = x + tau_b * (f - apply_A(x))
        r = f - apply_A(x)                           # pre-correction residual
        h1 = jnp.tanh(lfa_proj
                      + jnp.dot(r, wb1r_ref[...], preferred_element_type=jnp.float32)
                      + bb1_ref[...])                                          # (B, H)
        branch = (jnp.dot(h1, wb2_ref[...], preferred_element_type=jnp.float32)
                  + bb2_ref[...])                                              # (B, P)
        e = (jnp.dot(branch, trunk_t, preferred_element_type=jnp.float32)
             + b0_ref[...])                          # (B,P)@(P,N*N): lane-dense, no transpose
        return x + e

    x = lax.fori_loop(0, k_steps, fns_step, jnp.zeros_like(f))

    # ---- loss = ||f - A(x)|| / ||f||  (residual + reductions fused; single scalar out) ----
    r_fin = f - apply_A(x)
    r2 = jnp.sum(jnp.sum(r_fin * r_fin, axis=1, keepdims=True), axis=0, keepdims=True)
    f2 = jnp.sum(jnp.sum(f * f, axis=1, keepdims=True), axis=0, keepdims=True)
    loss_ref[...] = jnp.sqrt(r2 / f2)


# ------------------------------------------------------------------------------------------
# DeepONet parameters (the config'd DeepONet class is not provided; synthesized deterministically
# in the pre-transposed layouts the kernel consumes)
# ------------------------------------------------------------------------------------------
def init_deeponet_params(key, N, hidden=64, p=32, xavier_gain=0.1):
    # TODO(synk): DeepONet(config) source is not provided; a standard branch(LFA, r) x trunk(grid)
    # DeepONet with the same (LFA, r) -> e contract is synthesized here.
    def xavier(k, shape):
        limit = xavier_gain * np.sqrt(6.0 / (shape[0] + shape[1]))
        return jax.random.uniform(k, shape, jnp.float32, -limit, limit)

    ks = jax.random.split(key, 4)
    NN = N * N
    Wb1 = xavier(ks[0], (2 * NN, hidden))
    params = {
        "Wb1_lfa": Wb1[:NN],                          # (N*N, H)  branch half on the constant LFA
        "Wb1_r": Wb1[NN:],                            # (N*N, H)  branch half on the residual
        "bb1": jnp.full((1, hidden), 0.01, jnp.float32),
        "Wb2": xavier(ks[1], (hidden, p)),            # (H, P)
        "bb2": jnp.full((1, p), 0.01, jnp.float32),
        "Wt1_T": xavier(ks[2], (2, hidden)).T,        # (H, 2)   trunk layer 1, transposed
        "bt1_T": jnp.full((hidden, 1), 0.01, jnp.float32),
        "Wt2_T": xavier(ks[3], (hidden, p)).T,        # (P, H)   trunk layer 2, transposed
        "bt2_T": jnp.full((p, 1), 0.01, jnp.float32),
        "b0": jnp.full((1, 1), 0.01, jnp.float32),
    }
    # trunk input: interior grid coordinates in (0,1)^2, row-major, stored transposed (2, N*N)
    h = 1.0 / (N + 1)
    yy, xx = np.meshgrid(np.arange(1, N + 1) * h, np.arange(1, N + 1) * h, indexing="ij")
    params["coords_T"] = jnp.asarray(np.stack([yy.ravel(), xx.ravel()], 0), jnp.float32)
    return params


# ------------------------------------------------------------------------------------------
# HyperFNS forward — one pallas_call for the whole thing
# ------------------------------------------------------------------------------------------
@functools.partial(jax.jit, static_argnames=("epoch", "smoother"))
def hyperfns_forward(params, f, kernelA, u, epoch, smoother="jacobi"):
    del u                                            # unused in the reference forward as well
    B, C, N, _ = f.shape
    if C != 1:
        raise NotImplementedError("synthesized DeepONet branch assumes a single channel (C=1)")
    K = (epoch - 1) // 100 + 1
    if smoother == "jacobi":
        m_sweeps = 10
    elif smoother == "none":
        m_sweeps = 0
    else:
        # TODO(synk): 'chebyshev' smoother needs power_method (randn inside the smoother) and
        # leb_shuffle_2n, which are not part of the provided source; not implemented.
        raise ValueError(smoother)

    NN = N * N
    H = params["Wb1_r"].shape[1]
    P = params["Wb2"].shape[1]
    kw = kernelA.reshape(B, 9).astype(jnp.float32)
    f_flat = f.reshape(B, NN).astype(jnp.float32)    # lane-dense (B, N*N) layout
    masks = jnp.asarray(build_stencil_masks(N))      # (9, N*N) boundary masks (constants)
    trig = jnp.asarray(build_lfa_trig(N))            # (8, N*N) LFA cos/sin grids (constants)

    # rough advisory cost for the XLA scheduler
    n_apply = K * (m_sweeps + 1) + 1
    flops = (n_apply * B * NN * 17 + K * m_sweeps * B * NN * 3
             + 2 * (K + 1) * B * NN * H + 2 * K * B * (H * P + P * NN)
             + 2 * P * H * NN + 30 * B * NN)
    transcendentals = K * B * H + (H + P) * NN + 2 * B * NN
    bytes_accessed = 4 * (B * 9 + B * NN + 17 * NN + 2 * NN + 2 * NN * H
                          + H * 3 + 2 * H * P + 2 * P + 2)

    kern = functools.partial(_hyperfns_fused_kernel, n=N, m_sweeps=m_sweeps, k_steps=K)
    vspec = pl.BlockSpec(memory_space=pltpu.MemorySpace.VMEM)
    # Single grid-less invocation: at B=2, N=16 the forward is dispatch-bound and v5e/v6e have
    # one TensorCore (a batch grid would only add ~0.35 us/step).  For v7x at larger B/N, add a
    # leading grid=(B,) "parallel" axis with (1, 1, N*N) blocks to shard over its 2 TCs.
    loss = pl.pallas_call(
        kern,
        out_shape=jax.ShapeDtypeStruct((1, 1), jnp.float32),
        in_specs=[vspec] * 15,
        out_specs=vspec,
        cost_estimate=pl.CostEstimate(flops=int(flops),
                                      transcendentals=int(transcendentals),
                                      bytes_accessed=int(bytes_accessed)),
    )(kw, f_flat, masks, trig, params["coords_T"],
      params["Wt1_T"], params["bt1_T"], params["Wt2_T"], params["bt2_T"],
      params["Wb1_lfa"], params["Wb1_r"], params["bb1"], params["Wb2"], params["bb2"],
      params["b0"])
    return loss[0, 0]


# ------------------------------------------------------------------------------------------
if __name__ == "__main__":
    B, C, N = 2, 1, 16
    key = jax.random.PRNGKey(0)
    kf, kk, kp = jax.random.split(key, 3)

    f = jax.random.normal(kf, (B, C, N, N), jnp.float32)
    u = jnp.zeros_like(f)

    # deterministic anisotropic 9-point stencil: negative off-center entries, dominant center
    off = jax.random.uniform(kk, (B, 1, 3, 3), jnp.float32, 0.1, 0.5)
    off = off.at[:, :, 1, 1].set(0.0)
    center = jnp.sum(off, axis=(2, 3))               # (B, 1)
    kernelA = (-off).at[:, :, 1, 1].set(center)

    params = init_deeponet_params(kp, N)

    loss = hyperfns_forward(params, f, kernelA, u, epoch=101, smoother="jacobi")  # K = 2
    loss = jax.block_until_ready(loss)

    assert jnp.isfinite(loss), "loss is not finite"
    print("KERNEL_OK")
</pallas_src>

<mosaic_0001>
module attributes {stable_mosaic.version = 11 : i64} {
  func.func @_hyperfns_fused_kernel(%arg0: memref<2x9xf32, #tpu.memory_space<vmem>>, %arg1: memref<2x256xf32, #tpu.memory_space<vmem>>, %arg2: memref<9x256xf32, #tpu.memory_space<vmem>>, %arg3: memref<8x256xf32, #tpu.memory_space<vmem>>, %arg4: memref<2x256xf32, #tpu.memory_space<vmem>>, %arg5: memref<64x2xf32, #tpu.memory_space<vmem>>, %arg6: memref<64x1xf32, #tpu.memory_space<vmem>>, %arg7: memref<32x64xf32, #tpu.memory_space<vmem>>, %arg8: memref<32x1xf32, #tpu.memory_space<vmem>>, %arg9: memref<256x64xf32, #tpu.memory_space<vmem>>, %arg10: memref<256x64xf32, #tpu.memory_space<vmem>>, %arg11: memref<1x64xf32, #tpu.memory_space<vmem>>, %arg12: memref<64x32xf32, #tpu.memory_space<vmem>>, %arg13: memref<1x32xf32, #tpu.memory_space<vmem>>, %arg14: memref<1x1xf32, #tpu.memory_space<vmem>>, %arg15: memref<1x1xf32, #tpu.memory_space<vmem>>) attributes {dimension_semantics = [], scalar_prefetch = 0 : i64, scratch_operands = 0 : i64, tpu.core_type = #tpu.core_type<tc>} {
    %c0 = arith.constant 0 : index
    %c0_0 = arith.constant 0 : index
    %0 = vector.load %arg1[%c0, %c0_0] : memref<2x256xf32, #tpu.memory_space<vmem>>, vector<2x256xf32>
    %c0_1 = arith.constant 0 : index
    %c0_2 = arith.constant 0 : index
    %1 = vector.load %arg0[%c0_1, %c0_2] : memref<2x9xf32, #tpu.memory_space<vmem>>, vector<2x9xf32>
    %2 = vector.extract_strided_slice %1 {offsets = [0, 4], sizes = [2, 1], strides = [1, 1]} : vector<2x9xf32> to vector<2x1xf32>
    %cst = arith.constant 5.000000e-01 : f32
    %3 = vector.broadcast %cst : f32 to vector<2x1xf32>
    %4 = arith.divf %3, %2 : vector<2x1xf32>
    %5 = vector.shape_cast %4 : vector<2x1xf32> to vector<2x1xf32>
    %6 = vector.broadcast %5 : vector<2x1xf32> to vector<2x256xf32>
    %7 = vector.extract_strided_slice %1 {offsets = [0, 0], sizes = [2, 1], strides = [1, 1]} : vector<2x9xf32> to vector<2x1xf32>
    %8 = vector.shape_cast %7 : vector<2x1xf32> to vector<2x1xf32>
    %9 = vector.broadcast %8 : vector<2x1xf32> to vector<2x256xf32>
    %c0_3 = arith.constant 0 : index
    %c0_4 = arith.constant 0 : index
    %10 = vector.load %arg2[%c0_3, %c0_4] : memref<9x256xf32, #tpu.memory_space<vmem>>, vector<1x256xf32>
    %11 = vector.broadcast %10 : vector<1x256xf32> to vector<2x256xf32>
    %12 = arith.mulf %9, %11 : vector<2x256xf32>
    %13 = vector.extract_strided_slice %1 {offsets = [0, 1], sizes = [2, 1], strides = [1, 1]} : vector<2x9xf32> to vector<2x1xf32>
    %14 = vector.shape_cast %13 : vector<2x1xf32> to vector<2x1xf32>
    %15 = vector.broadcast %14 : vector<2x1xf32> to vector<2x256xf32>
    %c1 = arith.constant 1 : index
    %c0_5 = arith.constant 0 : index
    %16 = vector.load %arg2[%c1, %c0_5] : memref<9x256xf32, #tpu.memory_space<vmem>>, vector<1x256xf32>
    %17 = vector.broadcast %16 : vector<1x256xf32> to vector<2x256xf32>
    %18 = arith.mulf %15, %17 : vector<2x256xf32>
    %19 = vector.extract_strided_slice %1 {offsets = [0, 2], sizes = [2, 1], strides = [1, 1]} : vector<2x9xf32> to vector<2x1xf32>
    %20 = vector.shape_cast %19 : vector<2x1xf32> to vector<2x1xf32>
    %21 = vector.broadcast %20 : vector<2x1xf32> to vector<2x256xf32>
    %c2 = arith.constant 2 : index
    %c0_6 = arith.constant 0 : index
    %22 = vector.load %arg2[%c2, %c0_6] : memref<9x256xf32, #tpu.memory_space<vmem>>, vector<1x256xf32>
    %23 = vector.broadcast %22 : vector<1x256xf32> to vector<2x256xf32>
    %24 = arith.mulf %21, %23 : vector<2x256xf32>
    %25 = vector.extract_strided_slice %1 {offsets = [0, 3], sizes = [2, 1], strides = [1, 1]} : vector<2x9xf32> to vector<2x1xf32>
    %26 = vector.shape_cast %25 : vector<2x1xf32> to vector<2x1xf32>
    %27 = vector.broadcast %26 : vector<2x1xf32> to vector<2x256xf32>
    %c3 = arith.constant 3 : index
    %c0_7 = arith.constant 0 : index
    %28 = vector.load %arg2[%c3, %c0_7] : memref<9x256xf32, #tpu.memory_space<vmem>>, vector<1x256xf32>
    %29 = vector.broadcast %28 : vector<1x256xf32> to vector<2x256xf32>
    %30 = arith.mulf %27, %29 : vector<2x256xf32>
    %31 = vector.extract_strided_slice %1 {offsets = [0, 4], sizes = [2, 1], strides = [1, 1]} : vector<2x9xf32> to vector<2x1xf32>
    %32 = vector.shape_cast %31 : vector<2x1xf32> to vector<2x1xf32>
    %33 = vector.broadcast %32 : vector<2x1xf32> to vector<2x256xf32>
    %c4 = arith.constant 4 : index
    %c0_8 = arith.constant 0 : index
    %34 = vector.load %arg2[%c4, %c0_8] : memref<9x256xf32, #tpu.memory_space<vmem>>, vector<1x256xf32>
    %35 = vector.broadcast %34 : vector<1x256xf32> to vector<2x256xf32>
    %36 = arith.mulf %33, %35 : vector<2x256xf32>
    %37 = vector.extract_strided_slice %1 {offsets = [0, 5], sizes = [2, 1], strides = [1, 1]} : vector<2x9xf32> to vector<2x1xf32>
    %38 = vector.shape_cast %37 : vector<2x1xf32> to vector<2x1xf32>
    %39 = vector.broadcast %38 : vector<2x1xf32> to vector<2x256xf32>
    %c5 = arith.constant 5 : index
    %c0_9 = arith.constant 0 : index
    %40 = vector.load %arg2[%c5, %c0_9] : memref<9x256xf32, #tpu.memory_space<vmem>>, vector<1x256xf32>
    %41 = vector.broadcast %40 : vector<1x256xf32> to vector<2x256xf32>
    %42 = arith.mulf %39, %41 : vector<2x256xf32>
    %43 = vector.extract_strided_slice %1 {offsets = [0, 6], sizes = [2, 1], strides = [1, 1]} : vector<2x9xf32> to vector<2x1xf32>
    %44 = vector.shape_cast %43 : vector<2x1xf32> to vector<2x1xf32>
    %45 = vector.broadcast %44 : vector<2x1xf32> to vector<2x256xf32>
    %c6 = arith.constant 6 : index
    %c0_10 = arith.constant 0 : index
    %46 = vector.load %arg2[%c6, %c0_10] : memref<9x256xf32, #tpu.memory_space<vmem>>, vector<1x256xf32>
    %47 = vector.broadcast %46 : vector<1x256xf32> to vector<2x256xf32>
    %48 = arith.mulf %45, %47 : vector<2x256xf32>
    %49 = vector.extract_strided_slice %1 {offsets = [0, 7], sizes = [2, 1], strides = [1, 1]} : vector<2x9xf32> to vector<2x1xf32>
    %50 = vector.shape_cast %49 : vector<2x1xf32> to vector<2x1xf32>
    %51 = vector.broadcast %50 : vector<2x1xf32> to vector<2x256xf32>
    %c7 = arith.constant 7 : index
    %c0_11 = arith.constant 0 : index
    %52 = vector.load %arg2[%c7, %c0_11] : memref<9x256xf32, #tpu.memory_space<vmem>>, vector<1x256xf32>
    %53 = vector.broadcast %52 : vector<1x256xf32> to vector<2x256xf32>
    %54 = arith.mulf %51, %53 : vector<2x256xf32>
    %55 = vector.extract_strided_slice %1 {offsets = [0, 8], sizes = [2, 1], strides = [1, 1]} : vector<2x9xf32> to vector<2x1xf32>
    %56 = vector.shape_cast %55 : vector<2x1xf32> to vector<2x1xf32>
    %57 = vector.broadcast %56 : vector<2x1xf32> to vector<2x256xf32>
    %c8 = arith.constant 8 : index
    %c0_12 = arith.constant 0 : index
    %58 = vector.load %arg2[%c8, %c0_12] : memref<9x256xf32, #tpu.memory_space<vmem>>, vector<1x256xf32>
    %59 = vector.broadcast %58 : vector<1x256xf32> to vector<2x256xf32>
    %60 = arith.mulf %57, %59 : vector<2x256xf32>
    %c0_13 = arith.constant 0 : index
    %c0_14 = arith.constant 0 : index
    %61 = vector.load %arg3[%c0_13, %c0_14] : memref<8x256xf32, #tpu.memory_space<vmem>>, vector<1x256xf32>
    %c1_15 = arith.constant 1 : index
    %c0_16 = arith.constant 0 : index
    %62 = vector.load %arg3[%c1_15, %c0_16] : memref<8x256xf32, #tpu.memory_space<vmem>>, vector<1x256xf32>
    %c2_17 = arith.constant 2 : index
    %c0_18 = arith.constant 0 : index
    %63 = vector.load %arg3[%c2_17, %c0_18] : memref<8x256xf32, #tpu.memory_space<vmem>>, vector<1x256xf32>
    %c3_19 = arith.constant 3 : index
    %c0_20 = arith.constant 0 : index
    %64 = vector.load %arg3[%c3_19, %c0_20] : memref<8x256xf32, #tpu.memory_space<vmem>>, vector<1x256xf32>
    %c4_21 = arith.constant 4 : index
    %c0_22 = arith.constant 0 : index
    %65 = vector.load %arg3[%c4_21, %c0_22] : memref<8x256xf32, #tpu.memory_space<vmem>>, vector<1x256xf32>
    %c5_23 = arith.constant 5 : index
    %c0_24 = arith.constant 0 : index
    %66 = vector.load %arg3[%c5_23, %c0_24] : memref<8x256xf32, #tpu.memory_space<vmem>>, vector<1x256xf32>
    %c6_25 = arith.constant 6 : index
    %c0_26 = arith.constant 0 : index
    %67 = vector.load %arg3[%c6_25, %c0_26] : memref<8x256xf32, #tpu.memory_space<vmem>>, vector<1x256xf32>
    %c7_27 = arith.constant 7 : index
    %c0_28 = arith.constant 0 : index
    %68 = vector.load %arg3[%c7_27, %c0_28] : memref<8x256xf32, #tpu.memory_space<vmem>>, vector<1x256xf32>
    %69 = vector.extract_strided_slice %1 {offsets = [0, 0], sizes = [2, 1], strides = [1, 1]} : vector<2x9xf32> to vector<2x1xf32>
    %70 = vector.extract_strided_slice %1 {offsets = [0, 8], sizes = [2, 1], strides = [1, 1]} : vector<2x9xf32> to vector<2x1xf32>
    %71 = arith.addf %69, %70 : vector<2x1xf32>
    %72 = vector.broadcast %71 : vector<2x1xf32> to vector<2x256xf32>
    %73 = vector.broadcast %61 : vector<1x256xf32> to vector<2x256xf32>
    %74 = arith.mulf %72, %73 : vector<2x256xf32>
    %75 = vector.extract_strided_slice %1 {offsets = [0, 2], sizes = [2, 1], strides = [1, 1]} : vector<2x9xf32> to vector<2x1xf32>
    %76 = vector.extract_strided_slice %1 {offsets = [0, 6], sizes = [2, 1], strides = [1, 1]} : vector<2x9xf32> to vector<2x1xf32>
    %77 = arith.addf %75, %76 : vector<2x1xf32>
    %78 = vector.broadcast %77 : vector<2x1xf32> to vector<2x256xf32>
    %79 = vector.broadcast %62 : vector<1x256xf32> to vector<2x256xf32>
    %80 = arith.mulf %78, %79 : vector<2x256xf32>
    %81 = arith.addf %74, %80 : vector<2x256xf32>
    %82 = vector.extract_strided_slice %1 {offsets = [0, 1], sizes = [2, 1], strides = [1, 1]} : vector<2x9xf32> to vector<2x1xf32>
    %83 = vector.extract_strided_slice %1 {offsets = [0, 7], sizes = [2, 1], strides = [1, 1]} : vector<2x9xf32> to vector<2x1xf32>
    %84 = arith.addf %82, %83 : vector<2x1xf32>
    %85 = vector.broadcast %84 : vector<2x1xf32> to vector<2x256xf32>
    %86 = vector.broadcast %64 : vector<1x256xf32> to vector<2x256xf32>
    %87 = arith.mulf %85, %86 : vector<2x256xf32>
    %88 = arith.addf %81, %87 : vector<2x256xf32>
    %89 = vector.extract_strided_slice %1 {offsets = [0, 3], sizes = [2, 1], strides = [1, 1]} : vector<2x9xf32> to vector<2x1xf32>
    %90 = vector.extract_strided_slice %1 {offsets = [0, 5], sizes = [2, 1], strides = [1, 1]} : vector<2x9xf32> to vector<2x1xf32>
    %91 = arith.addf %89, %90 : vector<2x1xf32>
    %92 = vector.broadcast %91 : vector<2x1xf32> to vector<2x256xf32>
    %93 = vector.broadcast %63 : vector<1x256xf32> to vector<2x256xf32>
    %94 = arith.mulf %92, %93 : vector<2x256xf32>
    %95 = arith.addf %88, %94 : vector<2x256xf32>
    %96 = vector.extract_strided_slice %1 {offsets = [0, 4], sizes = [2, 1], strides = [1, 1]} : vector<2x9xf32> to vector<2x1xf32>
    %97 = vector.broadcast %96 : vector<2x1xf32> to vector<2x256xf32>
    %98 = arith.addf %95, %97 : vector<2x256xf32>
    %99 = vector.extract_strided_slice %1 {offsets = [0, 8], sizes = [2, 1], strides = [1, 1]} : vector<2x9xf32> to vector<2x1xf32>
    %100 = vector.extract_strided_slice %1 {offsets = [0, 0], sizes = [2, 1], strides = [1, 1]} : vector<2x9xf32> to vector<2x1xf32>
    %101 = arith.subf %99, %100 : vector<2x1xf32>
    %102 = vector.broadcast %101 : vector<2x1xf32> to vector<2x256xf32>
    %103 = vector.broadcast %65 : vector<1x256xf32> to vector<2x256xf32>
    %104 = arith.mulf %102, %103 : vector<2x256xf32>
    %105 = vector.extract_strided_slice %1 {offsets = [0, 2], sizes = [2, 1], strides = [1, 1]} : vector<2x9xf32> to vector<2x1xf32>
    %106 = vector.extract_strided_slice %1 {offsets = [0, 6], sizes = [2, 1], strides = [1, 1]} : vector<2x9xf32> to vector<2x1xf32>
    %107 = arith.subf %105, %106 : vector<2x1xf32>
    %108 = vector.broadcast %107 : vector<2x1xf32> to vector<2x256xf32>
    %109 = vector.broadcast %66 : vector<1x256xf32> to vector<2x256xf32>
    %110 = arith.mulf %108, %109 : vector<2x256xf32>
    %111 = arith.addf %104, %110 : vector<2x256xf32>
    %112 = vector.extract_strided_slice %1 {offsets = [0, 7], sizes = [2, 1], strides = [1, 1]} : vector<2x9xf32> to vector<2x1xf32>
    %113 = vector.extract_strided_slice %1 {offsets = [0, 1], sizes = [2, 1], strides = [1, 1]} : vector<2x9xf32> to vector<2x1xf32>
    %114 = arith.subf %112, %113 : vector<2x1xf32>
    %115 = vector.broadcast %114 : vector<2x1xf32> to vector<2x256xf32>
    %116 = vector.broadcast %68 : vector<1x256xf32> to vector<2x256xf32>
    %117 = arith.mulf %115, %116 : vector<2x256xf32>
    %118 = arith.addf %111, %117 : vector<2x256xf32>
    %119 = vector.extract_strided_slice %1 {offsets = [0, 5], sizes = [2, 1], strides = [1, 1]} : vector<2x9xf32> to vector<2x1xf32>
    %120 = vector.extract_strided_slice %1 {offsets = [0, 3], sizes = [2, 1], strides = [1, 1]} : vector<2x9xf32> to vector<2x1xf32>
    %121 = arith.subf %119, %120 : vector<2x1xf32>
    %122 = vector.broadcast %121 : vector<2x1xf32> to vector<2x256xf32>
    %123 = vector.broadcast %67 : vector<1x256xf32> to vector<2x256xf32>
    %124 = arith.mulf %122, %123 : vector<2x256xf32>
    %125 = arith.addf %118, %124 : vector<2x256xf32>
    %126 = vector.broadcast %4 : vector<2x1xf32> to vector<2x256xf32>
    %127 = arith.mulf %126, %98 : vector<2x256xf32>
    %cst_29 = arith.constant 1.000000e+00 : f32
    %128 = vector.broadcast %cst_29 : f32 to vector<2x256xf32>
    %129 = arith.subf %128, %127 : vector<2x256xf32>
    %130 = arith.mulf %129, %129 : vector<2x256xf32>
    %131 = vector.broadcast %4 : vector<2x1xf32> to vector<2x256xf32>
    %132 = arith.mulf %131, %125 : vector<2x256xf32>
    %133 = arith.mulf %132, %132 : vector<2x256xf32>
    %134 = arith.addf %130, %133 : vector<2x256xf32>
    %135 = arith.mulf %134, %134 : vector<2x256xf32>
    %136 = math.sqrt %134 : vector<2x256xf32>
    %137 = arith.mulf %135, %136 : vector<2x256xf32>
    %c0_30 = arith.constant 0 : index
    %c0_31 = arith.constant 0 : index
    %138 = vector.load %arg5[%c0_30, %c0_31] : memref<64x2xf32, #tpu.memory_space<vmem>>, vector<64x1xf32>
    %c0_32 = arith.constant 0 : index
    %c0_33 = arith.constant 0 : index
    %139 = vector.load %arg4[%c0_32, %c0_33] : memref<2x256xf32, #tpu.memory_space<vmem>>, vector<1x256xf32>
    %140 = vector.broadcast %138 : vector<64x1xf32> to vector<64x256xf32>
    %141 = vector.broadcast %139 : vector<1x256xf32> to vector<64x256xf32>
    %142 = arith.mulf %140, %141 : vector<64x256xf32>
    %c0_34 = arith.constant 0 : index
    %c1_35 = arith.constant 1 : index
    %143 = vector.load %arg5[%c0_34, %c1_35] : memref<64x2xf32, #tpu.memory_space<vmem>>, vector<64x1xf32>
    %c1_36 = arith.constant 1 : index
    %c0_37 = arith.constant 0 : index
    %144 = vector.load %arg4[%c1_36, %c0_37] : memref<2x256xf32, #tpu.memory_space<vmem>>, vector<1x256xf32>
    %145 = vector.broadcast %143 : vector<64x1xf32> to vector<64x256xf32>
    %146 = vector.broadcast %144 : vector<1x256xf32> to vector<64x256xf32>
    %147 = arith.mulf %145, %146 : vector<64x256xf32>
    %148 = arith.addf %142, %147 : vector<64x256xf32>
    %c0_38 = arith.constant 0 : index
    %c0_39 = arith.constant 0 : index
    %149 = vector.load %arg6[%c0_38, %c0_39] : memref<64x1xf32, #tpu.memory_space<vmem>>, vector<64x1xf32>
    %150 = vector.broadcast %149 : vector<64x1xf32> to vector<64x256xf32>
    %151 = arith.addf %148, %150 : vector<64x256xf32>
    %152 = math.tanh %151 : vector<64x256xf32>
    %c0_40 = arith.constant 0 : index
    %c0_41 = arith.constant 0 : index
    %153 = vector.load %arg7[%c0_40, %c0_41] : memref<32x64xf32, #tpu.memory_space<vmem>>, vector<32x64xf32>
    %cst_42 = arith.constant dense<0.000000e+00> : vector<32x256xf32>
    %154 = tpu.matmul %153, %152, %cst_42 {dimension_numbers = #tpu.dot_dimension_numbers<[1], [0], [0], [1], [0, 0, 1, 1], [], []>} : vector<32x64xf32>, vector<64x256xf32>, vector<32x256xf32> -> vector<32x256xf32>
    %c0_43 = arith.constant 0 : index
    %c0_44 = arith.constant 0 : index
    %155 = vector.load %arg8[%c0_43, %c0_44] : memref<32x1xf32, #tpu.memory_space<vmem>>, vector<32x1xf32>
    %156 = vector.broadcast %155 : vector<32x1xf32> to vector<32x256xf32>
    %157 = arith.addf %154, %156 : vector<32x256xf32>
    %158 = math.tanh %157 : vector<32x256xf32>
    %c0_45 = arith.constant 0 : index
    %c0_46 = arith.constant 0 : index
    %159 = vector.load %arg9[%c0_45, %c0_46] : memref<256x64xf32, #tpu.memory_space<vmem>>, vector<256x64xf32>
    %cst_47 = arith.constant dense<0.000000e+00> : vector<2x64xf32>
    %160 = tpu.matmul %137, %159, %cst_47 {dimension_numbers = #tpu.dot_dimension_numbers<[1], [0], [0], [1], [0, 0, 1, 1], [], []>} : vector<2x256xf32>, vector<256x64xf32>, vector<2x64xf32> -> vector<2x64xf32>
    %cst_48 = arith.constant 0.000000e+00 : f32
    %161 = vector.broadcast %cst_48 : f32 to vector<2x256xf32>
    %c0_i32 = arith.constant 0 : i32
    %c2_i32 = arith.constant 2 : i32
    %162 = arith.addi %c0_i32, %c2_i32 : i32
    %c1_i32 = arith.constant 1 : i32
    %163 = scf.for %arg16 = %c0_i32 to %162 step %c1_i32 iter_args(%arg17 = %161) -> (vector<2x256xf32>)  : i32 {
      %203 = arith.mulf %36, %arg17 : vector<2x256xf32>
      %c17_i32_56 = arith.constant 17 : i32
      %204 = tpu.dynamic_rotate %arg17 by %c17_i32_56 dim 1 : vector<2x256xf32>, i32 -> vector<2x256xf32>
      %205 = arith.mulf %12, %204 : vector<2x256xf32>
      %206 = arith.addf %203, %205 : vector<2x256xf32>
      %c16_i32_57 = arith.constant 16 : i32
      %207 = tpu.dynamic_rotate %arg17 by %c16_i32_57 dim 1 : vector<2x256xf32>, i32 -> vector<2x256xf32>
      %208 = arith.mulf %18, %207 : vector<2x256xf32>
      %209 = arith.addf %206, %208 : vector<2x256xf32>
      %c15_i32_58 = arith.constant 15 : i32
      %210 = tpu.dynamic_rotate %arg17 by %c15_i32_58 dim 1 : vector<2x256xf32>, i32 -> vector<2x256xf32>
      %211 = arith.mulf %24, %210 : vector<2x256xf32>
      %212 = arith.addf %209, %211 : vector<2x256xf32>
      %c1_i32_59 = arith.constant 1 : i32
      %213 = tpu.dynamic_rotate %arg17 by %c1_i32_59 dim 1 : vector<2x256xf32>, i32 -> vector<2x256xf32>
      %214 = arith.mulf %30, %213 : vector<2x256xf32>
      %215 = arith.addf %212, %214 : vector<2x256xf32>
      %c255_i32_60 = arith.constant 255 : i32
      %216 = tpu.dynamic_rotate %arg17 by %c255_i32_60 dim 1 : vector<2x256xf32>, i32 -> vector<2x256xf32>
      %217 = arith.mulf %42, %216 : vector<2x256xf32>
      %218 = arith.addf %215, %217 : vector<2x256xf32>
      %c241_i32_61 = arith.constant 241 : i32
      %219 = tpu.dynamic_rotate %arg17 by %c241_i32_61 dim 1 : vector<2x256xf32>, i32 -> vector<2x256xf32>
      %220 = arith.mulf %48, %219 : vector<2x256xf32>
      %221 = arith.addf %218, %220 : vector<2x256xf32>
      %c240_i32_62 = arith.constant 240 : i32
      %222 = tpu.dynamic_rotate %arg17 by %c240_i32_62 dim 1 : vector<2x256xf32>, i32 -> vector<2x256xf32>
      %223 = arith.mulf %54, %222 : vector<2x256xf32>
      %224 = arith.addf %221, %223 : vector<2x256xf32>
      %c239_i32_63 = arith.constant 239 : i32
      %225 = tpu.dynamic_rotate %arg17 by %c239_i32_63 dim 1 : vector<2x256xf32>, i32 -> vector<2x256xf32>
      %226 = arith.mulf %60, %225 : vector<2x256xf32>
      %227 = arith.addf %224, %226 : vector<2x256xf32>
      %228 = arith.subf %0, %227 : vector<2x256xf32>
      %229 = arith.mulf %6, %228 : vector<2x256xf32>
      %230 = arith.addf %arg17, %229 : vector<2x256xf32>
      %231 = arith.mulf %36, %230 : vector<2x256xf32>
      %c17_i32_64 = arith.constant 17 : i32
      %232 = tpu.dynamic_rotate %230 by %c17_i32_64 dim 1 : vector<2x256xf32>, i32 -> vector<2x256xf32>
      %233 = arith.mulf %12, %232 : vector<2x256xf32>
      %234 = arith.addf %231, %233 : vector<2x256xf32>
      %c16_i32_65 = arith.constant 16 : i32
      %235 = tpu.dynamic_rotate %230 by %c16_i32_65 dim 1 : vector<2x256xf32>, i32 -> vector<2x256xf32>
      %236 = arith.mulf %18, %235 : vector<2x256xf32>
      %237 = arith.addf %234, %236 : vector<2x256xf32>
      %c15_i32_66 = arith.constant 15 : i32
      %238 = tpu.dynamic_rotate %230 by %c15_i32_66 dim 1 : vector<2x256xf32>, i32 -> vector<2x256xf32>
      %239 = arith.mulf %24, %238 : vector<2x256xf32>
      %240 = arith.addf %237, %239 : vector<2x256xf32>
      %c1_i32_67 = arith.constant 1 : i32
      %241 = tpu.dynamic_rotate %230 by %c1_i32_67 dim 1 : vector<2x256xf32>, i32 -> vector<2x256xf32>
      %242 = arith.mulf %30, %241 : vector<2x256xf32>
      %243 = arith.addf %240, %242 : vector<2x256xf32>
      %c255_i32_68 = arith.constant 255 : i32
      %244 = tpu.dynamic_rotate %230 by %c255_i32_68 dim 1 : vector<2x256xf32>, i32 -> vector<2x256xf32>
      %245 = arith.mulf %42, %244 : vector<2x256xf32>
      %246 = arith.addf %243, %245 : vector<2x256xf32>
      %c241_i32_69 = arith.constant 241 : i32
      %247 = tpu.dynamic_rotate %230 by %c241_i32_69 dim 1 : vector<2x256xf32>, i32 -> vector<2x256xf32>
      %248 = arith.mulf %48, %247 : vector<2x256xf32>
      %249 = arith.addf %246, %248 : vector<2x256xf32>
      %c240_i32_70 = arith.constant 240 : i32
      %250 = tpu.dynamic_rotate %230 by %c240_i32_70 dim 1 : vector<2x256xf32>, i32 -> vector<2x256xf32>
      %251 = arith.mulf %54, %250 : vector<2x256xf32>
      %252 = arith.addf %249, %251 : vector<2x256xf32>
      %c239_i32_71 = arith.constant 239 : i32
      %253 = tpu.dynamic_rotate %230 by %c239_i32_71 dim 1 : vector<2x256xf32>, i32 -> vector<2x256xf32>
      %254 = arith.mulf %60, %253 : vector<2x256xf32>
      %255 = arith.addf %252, %254 : vector<2x256xf32>
      %256 = arith.subf %0, %255 : vector<2x256xf32>
      %257 = arith.mulf %6, %256 : vector<2x256xf32>
      %258 = arith.addf %230, %257 : vector<2x256xf32>
      %259 = arith.mulf %36, %258 : vector<2x256xf32>
      %c17_i32_72 = arith.constant 17 : i32
      %260 = tpu.dynamic_rotate %258 by %c17_i32_72 dim 1 : vector<2x256xf32>, i32 -> vector<2x256xf32>
      %261 = arith.mulf %12, %260 : vector<2x256xf32>
      %262 = arith.addf %259, %261 : vector<2x256xf32>
      %c16_i32_73 = arith.constant 16 : i32
      %263 = tpu.dynamic_rotate %258 by %c16_i32_73 dim 1 : vector<2x256xf32>, i32 -> vector<2x256xf32>
      %264 = arith.mulf %18, %263 : vector<2x256xf32>
      %265 = arith.addf %262, %264 : vector<2x256xf32>
      %c15_i32_74 = arith.constant 15 : i32
      %266 = tpu.dynamic_rotate %258 by %c15_i32_74 dim 1 : vector<2x256xf32>, i32 -> vector<2x256xf32>
      %267 = arith.mulf %24, %266 : vector<2x256xf32>
      %268 = arith.addf %265, %267 : vector<2x256xf32>
      %c1_i32_75 = arith.constant 1 : i32
      %269 = tpu.dynamic_rotate %258 by %c1_i32_75 dim 1 : vector<2x256xf32>, i32 -> vector<2x256xf32>
      %270 = arith.mulf %30, %269 : vector<2x256xf32>
      %271 = arith.addf %268, %270 : vector<2x256xf32>
      %c255_i32_76 = arith.constant 255 : i32
      %272 = tpu.dynamic_rotate %258 by %c255_i32_76 dim 1 : vector<2x256xf32>, i32 -> vector<2x256xf32>
      %273 = arith.mulf %42, %272 : vector<2x256xf32>
      %274 = arith.addf %271, %273 : vector<2x256xf32>
      %c241_i32_77 = arith.constant 241 : i32
      %275 = tpu.dynamic_rotate %258 by %c241_i32_77 dim 1 : vector<2x256xf32>, i32 -> vector<2x256xf32>
      %276 = arith.mulf %48, %275 : vector<2x256xf32>
      %277 = arith.addf %274, %276 : vector<2x256xf32>
      %c240_i32_78 = arith.constant 240 : i32
      %278 = tpu.dynamic_rotate %258 by %c240_i32_78 dim 1 : vector<2x256xf32>, i32 -> vector<2x256xf32>
      %279 = arith.mulf %54, %278 : vector<2x256xf32>
      %280 = arith.addf %277, %279 : vector<2x256xf32>
      %c239_i32_79 = arith.constant 239 : i32
      %281 = tpu.dynamic_rotate %258 by %c239_i32_79 dim 1 : vector<2x256xf32>, i32 -> vector<2x256xf32>
      %282 = arith.mulf %60, %281 : vector<2x256xf32>
      %283 = arith.addf %280, %282 : vector<2x256xf32>
      %284 = arith.subf %0, %283 : vector<2x256xf32>
      %285 = arith.mulf %6, %284 : vector<2x256xf32>
      %286 = arith.addf %258, %285 : vector<2x256xf32>
      %287 = arith.mulf %36, %286 : vector<2x256xf32>
      %c17_i32_80 = arith.constant 17 : i32
      %288 = tpu.dynamic_rotate %286 by %c17_i32_80 dim 1 : vector<2x256xf32>, i32 -> vector<2x256xf32>
      %289 = arith.mulf %12, %288 : vector<2x256xf32>
      %290 = arith.addf %287, %289 : vector<2x256xf32>
      %c16_i32_81 = arith.constant 16 : i32
      %291 = tpu.dynamic_rotate %286 by %c16_i32_81 dim 1 : vector<2x256xf32>, i32 -> vector<2x256xf32>
      %292 = arith.mulf %18, %291 : vector<2x256xf32>
      %293 = arith.addf %290, %292 : vector<2x256xf32>
      %c15_i32_82 = arith.constant 15 : i32
      %294 = tpu.dynamic_rotate %286 by %c15_i32_82 dim 1 : vector<2x256xf32>, i32 -> vector<2x256xf32>
      %295 = arith.mulf %24, %294 : vector<2x256xf32>
      %296 = arith.addf %293, %295 : vector<2x256xf32>
      %c1_i32_83 = arith.constant 1 : i32
      %297 = tpu.dynamic_rotate %286 by %c1_i32_83 dim 1 : vector<2x256xf32>, i32 -> vector<2x256xf32>
      %298 = arith.mulf %30, %297 : vector<2x256xf32>
      %299 = arith.addf %296, %298 : vector<2x256xf32>
      %c255_i32_84 = arith.constant 255 : i32
      %300 = tpu.dynamic_rotate %286 by %c255_i32_84 dim 1 : vector<2x256xf32>, i32 -> vector<2x256xf32>
      %301 = arith.mulf %42, %300 : vector<2x256xf32>
      %302 = arith.addf %299, %301 : vector<2x256xf32>
      %c241_i32_85 = arith.constant 241 : i32
      %303 = tpu.dynamic_rotate %286 by %c241_i32_85 dim 1 : vector<2x256xf32>, i32 -> vector<2x256xf32>
      %304 = arith.mulf %48, %303 : vector<2x256xf32>
      %305 = arith.addf %302, %304 : vector<2x256xf32>
      %c240_i32_86 = arith.constant 240 : i32
      %306 = tpu.dynamic_rotate %286 by %c240_i32_86 dim 1 : vector<2x256xf32>, i32 -> vector<2x256xf32>
      %307 = arith.mulf %54, %306 : vector<2x256xf32>
      %308 = arith.addf %305, %307 : vector<2x256xf32>
      %c239_i32_87 = arith.constant 239 : i32
      %309 = tpu.dynamic_rotate %286 by %c239_i32_87 dim 1 : vector<2x256xf32>, i32 -> vector<2x256xf32>
      %310 = arith.mulf %60, %309 : vector<2x256xf32>
      %311 = arith.addf %308, %310 : vector<2x256xf32>
      %312 = arith.subf %0, %311 : vector<2x256xf32>
      %313 = arith.mulf %6, %312 : vector<2x256xf32>
      %314 = arith.addf %286, %313 : vector<2x256xf32>
      %315 = arith.mulf %36, %314 : vector<2x256xf32>
      %c17_i32_88 = arith.constant 17 : i32
      %316 = tpu.dynamic_rotate %314 by %c17_i32_88 dim 1 : vector<2x256xf32>, i32 -> vector<2x256xf32>
      %317 = arith.mulf %12, %316 : vector<2x256xf32>
      %318 = arith.addf %315, %317 : vector<2x256xf32>
      %c16_i32_89 = arith.constant 16 : i32
      %319 = tpu.dynamic_rotate %314 by %c16_i32_89 dim 1 : vector<2x256xf32>, i32 -> vector<2x256xf32>
      %320 = arith.mulf %18, %319 : vector<2x256xf32>
      %321 = arith.addf %318, %320 : vector<2x256xf32>
      %c15_i32_90 = arith.constant 15 : i32
      %322 = tpu.dynamic_rotate %314 by %c15_i32_90 dim 1 : vector<2x256xf32>, i32 -> vector<2x256xf32>
      %323 = arith.mulf %24, %322 : vector<2x256xf32>
      %324 = arith.addf %321, %323 : vector<2x256xf32>
      %c1_i32_91 = arith.constant 1 : i32
      %325 = tpu.dynamic_rotate %314 by %c1_i32_91 dim 1 : vector<2x256xf32>, i32 -> vector<2x256xf32>
      %326 = arith.mulf %30, %325 : vector<2x256xf32>
      %327 = arith.addf %324, %326 : vector<2x256xf32>
      %c255_i32_92 = arith.constant 255 : i32
      %328 = tpu.dynamic_rotate %314 by %c255_i32_92 dim 1 : vector<2x256xf32>, i32 -> vector<2x256xf32>
      %329 = arith.mulf %42, %328 : vector<2x256xf32>
      %330 = arith.addf %327, %329 : vector<2x256xf32>
      %c241_i32_93 = arith.constant 241 : i32
      %331 = tpu.dynamic_rotate %314 by %c241_i32_93 dim 1 : vector<2x256xf32>, i32 -> vector<2x256xf32>
      %332 = arith.mulf %48, %331 : vector<2x256xf32>
      %333 = arith.addf %330, %332 : vector<2x256xf32>
      %c240_i32_94 = arith.constant 240 : i32
      %334 = tpu.dynamic_rotate %314 by %c240_i32_94 dim 1 : vector<2x256xf32>, i32 -> vector<2x256xf32>
      %335 = arith.mulf %54, %334 : vector<2x256xf32>
      %336 = arith.addf %333, %335 : vector<2x256xf32>
      %c239_i32_95 = arith.constant 239 : i32
      %337 = tpu.dynamic_rotate %314 by %c239_i32_95 dim 1 : vector<2x256xf32>, i32 -> vector<2x256xf32>
      %338 = arith.mulf %60, %337 : vector<2x256xf32>
      %339 = arith.addf %336, %338 : vector<2x256xf32>
      %340 = arith.subf %0, %339 : vector<2x256xf32>
      %341 = arith.mulf %6, %340 : vector<2x256xf32>
      %342 = arith.addf %314, %341 : vector<2x256xf32>
      %343 = arith.mulf %36, %342 : vector<2x256xf32>
      %c17_i32_96 = arith.constant 17 : i32
      %344 = tpu.dynamic_rotate %342 by %c17_i32_96 dim 1 : vector<2x256xf32>, i32 -> vector<2x256xf32>
      %345 = arith.mulf %12, %344 : vector<2x256xf32>
      %346 = arith.addf %343, %345 : vector<2x256xf32>
      %c16_i32_97 = arith.constant 16 : i32
      %347 = tpu.dynamic_rotate %342 by %c16_i32_97 dim 1 : vector<2x256xf32>, i32 -> vector<2x256xf32>
      %348 = arith.mulf %18, %347 : vector<2x256xf32>
      %349 = arith.addf %346, %348 : vector<2x256xf32>
      %c15_i32_98 = arith.constant 15 : i32
      %350 = tpu.dynamic_rotate %342 by %c15_i32_98 dim 1 : vector<2x256xf32>, i32 -> vector<2x256xf32>
      %351 = arith.mulf %24, %350 : vector<2x256xf32>
      %352 = arith.addf %349, %351 : vector<2x256xf32>
      %c1_i32_99 = arith.constant 1 : i32
      %353 = tpu.dynamic_rotate %342 by %c1_i32_99 dim 1 : vector<2x256xf32>, i32 -> vector<2x256xf32>
      %354 = arith.mulf %30, %353 : vector<2x256xf32>
      %355 = arith.addf %352, %354 : vector<2x256xf32>
      %c255_i32_100 = arith.constant 255 : i32
      %356 = tpu.dynamic_rotate %342 by %c255_i32_100 dim 1 : vector<2x256xf32>, i32 -> vector<2x256xf32>
      %357 = arith.mulf %42, %356 : vector<2x256xf32>
      %358 = arith.addf %355, %357 : vector<2x256xf32>
      %c241_i32_101 = arith.constant 241 : i32
      %359 = tpu.dynamic_rotate %342 by %c241_i32_101 dim 1 : vector<2x256xf32>, i32 -> vector<2x256xf32>
      %360 = arith.mulf %48, %359 : vector<2x256xf32>
      %361 = arith.addf %358, %360 : vector<2x256xf32>
      %c240_i32_102 = arith.constant 240 : i32
      %362 = tpu.dynamic_rotate %342 by %c240_i32_102 dim 1 : vector<2x256xf32>, i32 -> vector<2x256xf32>
      %363 = arith.mulf %54, %362 : vector<2x256xf32>
      %364 = arith.addf %361, %363 : vector<2x256xf32>
      %c239_i32_103 = arith.constant 239 : i32
      %365 = tpu.dynamic_rotate %342 by %c239_i32_103 dim 1 : vector<2x256xf32>, i32 -> vector<2x256xf32>
      %366 = arith.mulf %60, %365 : vector<2x256xf32>
      %367 = arith.addf %364, %366 : vector<2x256xf32>
      %368 = arith.subf %0, %367 : vector<2x256xf32>
      %369 = arith.mulf %6, %368 : vector<2x256xf32>
      %370 = arith.addf %342, %369 : vector<2x256xf32>
      %371 = arith.mulf %36, %370 : vector<2x256xf32>
      %c17_i32_104 = arith.constant 17 : i32
      %372 = tpu.dynamic_rotate %370 by %c17_i32_104 dim 1 : vector<2x256xf32>, i32 -> vector<2x256xf32>
      %373 = arith.mulf %12, %372 : vector<2x256xf32>
      %374 = arith.addf %371, %373 : vector<2x256xf32>
      %c16_i32_105 = arith.constant 16 : i32
      %375 = tpu.dynamic_rotate %370 by %c16_i32_105 dim 1 : vector<2x256xf32>, i32 -> vector<2x256xf32>
      %376 = arith.mulf %18, %375 : vector<2x256xf32>
      %377 = arith.addf %374, %376 : vector<2x256xf32>
      %c15_i32_106 = arith.constant 15 : i32
      %378 = tpu.dynamic_rotate %370 by %c15_i32_106 dim 1 : vector<2x256xf32>, i32 -> vector<2x256xf32>
      %379 = arith.mulf %24, %378 : vector<2x256xf32>
      %380 = arith.addf %377, %379 : vector<2x256xf32>
      %c1_i32_107 = arith.constant 1 : i32
      %381 = tpu.dynamic_rotate %370 by %c1_i32_107 dim 1 : vector<2x256xf32>, i32 -> vector<2x256xf32>
      %382 = arith.mulf %30, %381 : vector<2x256xf32>
      %383 = arith.addf %380, %382 : vector<2x256xf32>
      %c255_i32_108 = arith.constant 255 : i32
      %384 = tpu.dynamic_rotate %370 by %c255_i32_108 dim 1 : vector<2x256xf32>, i32 -> vector<2x256xf32>
      %385 = arith.mulf %42, %384 : vector<2x256xf32>
      %386 = arith.addf %383, %385 : vector<2x256xf32>
      %c241_i32_109 = arith.constant 241 : i32
      %387 = tpu.dynamic_rotate %370 by %c241_i32_109 dim 1 : vector<2x256xf32>, i32 -> vector<2x256xf32>
      %388 = arith.mulf %48, %387 : vector<2x256xf32>
      %389 = arith.addf %386, %388 : vector<2x256xf32>
      %c240_i32_110 = arith.constant 240 : i32
      %390 = tpu.dynamic_rotate %370 by %c240_i32_110 dim 1 : vector<2x256xf32>, i32 -> vector<2x256xf32>
      %391 = arith.mulf %54, %390 : vector<2x256xf32>
      %392 = arith.addf %389, %391 : vector<2x256xf32>
      %c239_i32_111 = arith.constant 239 : i32
      %393 = tpu.dynamic_rotate %370 by %c239_i32_111 dim 1 : vector<2x256xf32>, i32 -> vector<2x256xf32>
      %394 = arith.mulf %60, %393 : vector<2x256xf32>
      %395 = arith.addf %392, %394 : vector<2x256xf32>
      %396 = arith.subf %0, %395 : vector<2x256xf32>
      %397 = arith.mulf %6, %396 : vector<2x256xf32>
      %398 = arith.addf %370, %397 : vector<2x256xf32>
      %399 = arith.mulf %36, %398 : vector<2x256xf32>
      %c17_i32_112 = arith.constant 17 : i32
      %400 = tpu.dynamic_rotate %398 by %c17_i32_112 dim 1 : vector<2x256xf32>, i32 -> vector<2x256xf32>
      %401 = arith.mulf %12, %400 : vector<2x256xf32>
      %402 = arith.addf %399, %401 : vector<2x256xf32>
      %c16_i32_113 = arith.constant 16 : i32
      %403 = tpu.dynamic_rotate %398 by %c16_i32_113 dim 1 : vector<2x256xf32>, i32 -> vector<2x256xf32>
      %404 = arith.mulf %18, %403 : vector<2x256xf32>
      %405 = arith.addf %402, %404 : vector<2x256xf32>
      %c15_i32_114 = arith.constant 15 : i32
      %406 = tpu.dynamic_rotate %398 by %c15_i32_114 dim 1 : vector<2x256xf32>, i32 -> vector<2x256xf32>
      %407 = arith.mulf %24, %406 : vector<2x256xf32>
      %408 = arith.addf %405, %407 : vector<2x256xf32>
      %c1_i32_115 = arith.constant 1 : i32
      %409 = tpu.dynamic_rotate %398 by %c1_i32_115 dim 1 : vector<2x256xf32>, i32 -> vector<2x256xf32>
      %410 = arith.mulf %30, %409 : vector<2x256xf32>
      %411 = arith.addf %408, %410 : vector<2x256xf32>
      %c255_i32_116 = arith.constant 255 : i32
      %412 = tpu.dynamic_rotate %398 by %c255_i32_116 dim 1 : vector<2x256xf32>, i32 -> vector<2x256xf32>
      %413 = arith.mulf %42, %412 : vector<2x256xf32>
      %414 = arith.addf %411, %413 : vector<2x256xf32>
      %c241_i32_117 = arith.constant 241 : i32
      %415 = tpu.dynamic_rotate %398 by %c241_i32_117 dim 1 : vector<2x256xf32>, i32 -> vector<2x256xf32>
      %416 = arith.mulf %48, %415 : vector<2x256xf32>
      %417 = arith.addf %414, %416 : vector<2x256xf32>
      %c240_i32_118 = arith.constant 240 : i32
      %418 = tpu.dynamic_rotate %398 by %c240_i32_118 dim 1 : vector<2x256xf32>, i32 -> vector<2x256xf32>
      %419 = arith.mulf %54, %418 : vector<2x256xf32>
      %420 = arith.addf %417, %419 : vector<2x256xf32>
      %c239_i32_119 = arith.constant 239 : i32
      %421 = tpu.dynamic_rotate %398 by %c239_i32_119 dim 1 : vector<2x256xf32>, i32 -> vector<2x256xf32>
      %422 = arith.mulf %60, %421 : vector<2x256xf32>
      %423 = arith.addf %420, %422 : vector<2x256xf32>
      %424 = arith.subf %0, %423 : vector<2x256xf32>
      %425 = arith.mulf %6, %424 : vector<2x256xf32>
      %426 = arith.addf %398, %425 : vector<2x256xf32>
      %427 = arith.mulf %36, %426 : vector<2x256xf32>
      %c17_i32_120 = arith.constant 17 : i32
      %428 = tpu.dynamic_rotate %426 by %c17_i32_120 dim 1 : vector<2x256xf32>, i32 -> vector<2x256xf32>
      %429 = arith.mulf %12, %428 : vector<2x256xf32>
      %430 = arith.addf %427, %429 : vector<2x256xf32>
      %c16_i32_121 = arith.constant 16 : i32
      %431 = tpu.dynamic_rotate %426 by %c16_i32_121 dim 1 : vector<2x256xf32>, i32 -> vector<2x256xf32>
      %432 = arith.mulf %18, %431 : vector<2x256xf32>
      %433 = arith.addf %430, %432 : vector<2x256xf32>
      %c15_i32_122 = arith.constant 15 : i32
      %434 = tpu.dynamic_rotate %426 by %c15_i32_122 dim 1 : vector<2x256xf32>, i32 -> vector<2x256xf32>
      %435 = arith.mulf %24, %434 : vector<2x256xf32>
      %436 = arith.addf %433, %435 : vector<2x256xf32>
      %c1_i32_123 = arith.constant 1 : i32
      %437 = tpu.dynamic_rotate %426 by %c1_i32_123 dim 1 : vector<2x256xf32>, i32 -> vector<2x256xf32>
      %438 = arith.mulf %30, %437 : vector<2x256xf32>
      %439 = arith.addf %436, %438 : vector<2x256xf32>
      %c255_i32_124 = arith.constant 255 : i32
      %440 = tpu.dynamic_rotate %426 by %c255_i32_124 dim 1 : vector<2x256xf32>, i32 -> vector<2x256xf32>
      %441 = arith.mulf %42, %440 : vector<2x256xf32>
      %442 = arith.addf %439, %441 : vector<2x256xf32>
      %c241_i32_125 = arith.constant 241 : i32
      %443 = tpu.dynamic_rotate %426 by %c241_i32_125 dim 1 : vector<2x256xf32>, i32 -> vector<2x256xf32>
      %444 = arith.mulf %48, %443 : vector<2x256xf32>
      %445 = arith.addf %442, %444 : vector<2x256xf32>
      %c240_i32_126 = arith.constant 240 : i32
      %446 = tpu.dynamic_rotate %426 by %c240_i32_126 dim 1 : vector<2x256xf32>, i32 -> vector<2x256xf32>
      %447 = arith.mulf %54, %446 : vector<2x256xf32>
      %448 = arith.addf %445, %447 : vector<2x256xf32>
      %c239_i32_127 = arith.constant 239 : i32
      %449 = tpu.dynamic_rotate %426 by %c239_i32_127 dim 1 : vector<2x256xf32>, i32 -> vector<2x256xf32>
      %450 = arith.mulf %60, %449 : vector<2x256xf32>
      %451 = arith.addf %448, %450 : vector<2x256xf32>
      %452 = arith.subf %0, %451 : vector<2x256xf32>
      %453 = arith.mulf %6, %452 : vector<2x256xf32>
      %454 = arith.addf %426, %453 : vector<2x256xf32>
      %455 = arith.mulf %36, %454 : vector<2x256xf32>
      %c17_i32_128 = arith.constant 17 : i32
      %456 = tpu.dynamic_rotate %454 by %c17_i32_128 dim 1 : vector<2x256xf32>, i32 -> vector<2x256xf32>
      %457 = arith.mulf %12, %456 : vector<2x256xf32>
      %458 = arith.addf %455, %457 : vector<2x256xf32>
      %c16_i32_129 = arith.constant 16 : i32
      %459 = tpu.dynamic_rotate %454 by %c16_i32_129 dim 1 : vector<2x256xf32>, i32 -> vector<2x256xf32>
      %460 = arith.mulf %18, %459 : vector<2x256xf32>
      %461 = arith.addf %458, %460 : vector<2x256xf32>
      %c15_i32_130 = arith.constant 15 : i32
      %462 = tpu.dynamic_rotate %454 by %c15_i32_130 dim 1 : vector<2x256xf32>, i32 -> vector<2x256xf32>
      %463 = arith.mulf %24, %462 : vector<2x256xf32>
      %464 = arith.addf %461, %463 : vector<2x256xf32>
      %c1_i32_131 = arith.constant 1 : i32
      %465 = tpu.dynamic_rotate %454 by %c1_i32_131 dim 1 : vector<2x256xf32>, i32 -> vector<2x256xf32>
      %466 = arith.mulf %30, %465 : vector<2x256xf32>
      %467 = arith.addf %464, %466 : vector<2x256xf32>
      %c255_i32_132 = arith.constant 255 : i32
      %468 = tpu.dynamic_rotate %454 by %c255_i32_132 dim 1 : vector<2x256xf32>, i32 -> vector<2x256xf32>
      %469 = arith.mulf %42, %468 : vector<2x256xf32>
      %470 = arith.addf %467, %469 : vector<2x256xf32>
      %c241_i32_133 = arith.constant 241 : i32
      %471 = tpu.dynamic_rotate %454 by %c241_i32_133 dim 1 : vector<2x256xf32>, i32 -> vector<2x256xf32>
      %472 = arith.mulf %48, %471 : vector<2x256xf32>
      %473 = arith.addf %470, %472 : vector<2x256xf32>
      %c240_i32_134 = arith.constant 240 : i32
      %474 = tpu.dynamic_rotate %454 by %c240_i32_134 dim 1 : vector<2x256xf32>, i32 -> vector<2x256xf32>
      %475 = arith.mulf %54, %474 : vector<2x256xf32>
      %476 = arith.addf %473, %475 : vector<2x256xf32>
      %c239_i32_135 = arith.constant 239 : i32
      %477 = tpu.dynamic_rotate %454 by %c239_i32_135 dim 1 : vector<2x256xf32>, i32 -> vector<2x256xf32>
      %478 = arith.mulf %60, %477 : vector<2x256xf32>
      %479 = arith.addf %476, %478 : vector<2x256xf32>
      %480 = arith.subf %0, %479 : vector<2x256xf32>
      %481 = arith.mulf %6, %480 : vector<2x256xf32>
      %482 = arith.addf %454, %481 : vector<2x256xf32>
      %483 = arith.mulf %36, %482 : vector<2x256xf32>
      %c17_i32_136 = arith.constant 17 : i32
      %484 = tpu.dynamic_rotate %482 by %c17_i32_136 dim 1 : vector<2x256xf32>, i32 -> vector<2x256xf32>
      %485 = arith.mulf %12, %484 : vector<2x256xf32>
      %486 = arith.addf %483, %485 : vector<2x256xf32>
      %c16_i32_137 = arith.constant 16 : i32
      %487 = tpu.dynamic_rotate %482 by %c16_i32_137 dim 1 : vector<2x256xf32>, i32 -> vector<2x256xf32>
      %488 = arith.mulf %18, %487 : vector<2x256xf32>
      %489 = arith.addf %486, %488 : vector<2x256xf32>
      %c15_i32_138 = arith.constant 15 : i32
      %490 = tpu.dynamic_rotate %482 by %c15_i32_138 dim 1 : vector<2x256xf32>, i32 -> vector<2x256xf32>
      %491 = arith.mulf %24, %490 : vector<2x256xf32>
      %492 = arith.addf %489, %491 : vector<2x256xf32>
      %c1_i32_139 = arith.constant 1 : i32
      %493 = tpu.dynamic_rotate %482 by %c1_i32_139 dim 1 : vector<2x256xf32>, i32 -> vector<2x256xf32>
      %494 = arith.mulf %30, %493 : vector<2x256xf32>
      %495 = arith.addf %492, %494 : vector<2x256xf32>
      %c255_i32_140 = arith.constant 255 : i32
      %496 = tpu.dynamic_rotate %482 by %c255_i32_140 dim 1 : vector<2x256xf32>, i32 -> vector<2x256xf32>
      %497 = arith.mulf %42, %496 : vector<2x256xf32>
      %498 = arith.addf %495, %497 : vector<2x256xf32>
      %c241_i32_141 = arith.constant 241 : i32
      %499 = tpu.dynamic_rotate %482 by %c241_i32_141 dim 1 : vector<2x256xf32>, i32 -> vector<2x256xf32>
      %500 = arith.mulf %48, %499 : vector<2x256xf32>
      %501 = arith.addf %498, %500 : vector<2x256xf32>
      %c240_i32_142 = arith.constant 240 : i32
      %502 = tpu.dynamic_rotate %482 by %c240_i32_142 dim 1 : vector<2x256xf32>, i32 -> vector<2x256xf32>
      %503 = arith.mulf %54, %502 : vector<2x256xf32>
      %504 = arith.addf %501, %503 : vector<2x256xf32>
      %c239_i32_143 = arith.constant 239 : i32
      %505 = tpu.dynamic_rotate %482 by %c239_i32_143 dim 1 : vector<2x256xf32>, i32 -> vector<2x256xf32>
      %506 = arith.mulf %60, %505 : vector<2x256xf32>
      %507 = arith.addf %504, %506 : vector<2x256xf32>
      %508 = arith.subf %0, %507 : vector<2x256xf32>
      %c0_144 = arith.constant 0 : index
      %c0_145 = arith.constant 0 : index
      %509 = vector.load %arg10[%c0_144, %c0_145] : memref<256x64xf32, #tpu.memory_space<vmem>>, vector<256x64xf32>
      %cst_146 = arith.constant dense<0.000000e+00> : vector<2x64xf32>
      %510 = tpu.matmul %508, %509, %cst_146 {dimension_numbers = #tpu.dot_dimension_numbers<[1], [0], [0], [1], [0, 0, 1, 1], [], []>} : vector<2x256xf32>, vector<256x64xf32>, vector<2x64xf32> -> vector<2x64xf32>
      %511 = arith.addf %160, %510 : vector<2x64xf32>
      %c0_147 = arith.constant 0 : index
      %c0_148 = arith.constant 0 : index
      %512 = vector.load %arg11[%c0_147, %c0_148] : memref<1x64xf32, #tpu.memory_space<vmem>>, vector<1x64xf32>
      %513 = vector.broadcast %512 : vector<1x64xf32> to vector<2x64xf32>
      %514 = arith.addf %511, %513 : vector<2x64xf32>
      %515 = math.tanh %514 : vector<2x64xf32>
      %c0_149 = arith.constant 0 : index
      %c0_150 = arith.constant 0 : index
      %516 = vector.load %arg12[%c0_149, %c0_150] : memref<64x32xf32, #tpu.memory_space<vmem>>, vector<64x32xf32>
      %cst_151 = arith.constant dense<0.000000e+00> : vector<2x32xf32>
      %517 = tpu.matmul %515, %516, %cst_151 {dimension_numbers = #tpu.dot_dimension_numbers<[1], [0], [0], [1], [0, 0, 1, 1], [], []>} : vector<2x64xf32>, vector<64x32xf32>, vector<2x32xf32> -> vector<2x32xf32>
      %c0_152 = arith.constant 0 : index
      %c0_153 = arith.constant 0 : index
      %518 = vector.load %arg13[%c0_152, %c0_153] : memref<1x32xf32, #tpu.memory_space<vmem>>, vector<1x32xf32>
      %519 = vector.broadcast %518 : vector<1x32xf32> to vector<2x32xf32>
      %520 = arith.addf %517, %519 : vector<2x32xf32>
      %cst_154 = arith.constant dense<0.000000e+00> : vector<2x256xf32>
      %521 = tpu.matmul %520, %158, %cst_154 {dimension_numbers = #tpu.dot_dimension_numbers<[1], [0], [0], [1], [0, 0, 1, 1], [], []>} : vector<2x32xf32>, vector<32x256xf32>, vector<2x256xf32> -> vector<2x256xf32>
      %c0_155 = arith.constant 0 : index
      %c0_156 = arith.constant 0 : index
      %522 = vector.load %arg14[%c0_155, %c0_156] : memref<1x1xf32, #tpu.memory_space<vmem>>, vector<1x1xf32>
      %523 = vector.broadcast %522 : vector<1x1xf32> to vector<2x256xf32>
      %524 = arith.addf %521, %523 : vector<2x256xf32>
      %525 = arith.addf %482, %524 : vector<2x256xf32>
      scf.yield %525 : vector<2x256xf32>
    }
    %164 = arith.mulf %36, %163 : vector<2x256xf32>
    %c17_i32 = arith.constant 17 : i32
    %165 = tpu.dynamic_rotate %163 by %c17_i32 dim 1 : vector<2x256xf32>, i32 -> vector<2x256xf32>
    %166 = arith.mulf %12, %165 : vector<2x256xf32>
    %167 = arith.addf %164, %166 : vector<2x256xf32>
    %c16_i32 = arith.constant 16 : i32
    %168 = tpu.dynamic_rotate %163 by %c16_i32 dim 1 : vector<2x256xf32>, i32 -> vector<2x256xf32>
    %169 = arith.mulf %18, %168 : vector<2x256xf32>
    %170 = arith.addf %167, %169 : vector<2x256xf32>
    %c15_i32 = arith.constant 15 : i32
    %171 = tpu.dynamic_rotate %163 by %c15_i32 dim 1 : vector<2x256xf32>, i32 -> vector<2x256xf32>
    %172 = arith.mulf %24, %171 : vector<2x256xf32>
    %173 = arith.addf %170, %172 : vector<2x256xf32>
    %c1_i32_49 = arith.constant 1 : i32
    %174 = tpu.dynamic_rotate %163 by %c1_i32_49 dim 1 : vector<2x256xf32>, i32 -> vector<2x256xf32>
    %175 = arith.mulf %30, %174 : vector<2x256xf32>
    %176 = arith.addf %173, %175 : vector<2x256xf32>
    %c255_i32 = arith.constant 255 : i32
    %177 = tpu.dynamic_rotate %163 by %c255_i32 dim 1 : vector<2x256xf32>, i32 -> vector<2x256xf32>
    %178 = arith.mulf %42, %177 : vector<2x256xf32>
    %179 = arith.addf %176, %178 : vector<2x256xf32>
    %c241_i32 = arith.constant 241 : i32
    %180 = tpu.dynamic_rotate %163 by %c241_i32 dim 1 : vector<2x256xf32>, i32 -> vector<2x256xf32>
    %181 = arith.mulf %48, %180 : vector<2x256xf32>
    %182 = arith.addf %179, %181 : vector<2x256xf32>
    %c240_i32 = arith.constant 240 : i32
    %183 = tpu.dynamic_rotate %163 by %c240_i32 dim 1 : vector<2x256xf32>, i32 -> vector<2x256xf32>
    %184 = arith.mulf %54, %183 : vector<2x256xf32>
    %185 = arith.addf %182, %184 : vector<2x256xf32>
    %c239_i32 = arith.constant 239 : i32
    %186 = tpu.dynamic_rotate %163 by %c239_i32 dim 1 : vector<2x256xf32>, i32 -> vector<2x256xf32>
    %187 = arith.mulf %60, %186 : vector<2x256xf32>
    %188 = arith.addf %185, %187 : vector<2x256xf32>
    %189 = arith.subf %0, %188 : vector<2x256xf32>
    %190 = arith.mulf %189, %189 : vector<2x256xf32>
    %cst_50 = arith.constant dense<0.000000e+00> : vector<2xf32>
    %191 = vector.multi_reduction <add>, %190, %cst_50 [1] : vector<2x256xf32> to vector<2xf32>
    %192 = vector.shape_cast %191 : vector<2xf32> to vector<2x1xf32>
    %cst_51 = arith.constant dense<0.000000e+00> : vector<1xf32>
    %193 = vector.multi_reduction <add>, %192, %cst_51 [0] : vector<2x1xf32> to vector<1xf32>
    %194 = vector.shape_cast %193 : vector<1xf32> to vector<1x1xf32>
    %195 = arith.mulf %0, %0 : vector<2x256xf32>
    %cst_52 = arith.constant dense<0.000000e+00> : vector<2xf32>
    %196 = vector.multi_reduction <add>, %195, %cst_52 [1] : vector<2x256xf32> to vector<2xf32>
    %197 = vector.shape_cast %196 : vector<2xf32> to vector<2x1xf32>
    %cst_53 = arith.constant dense<0.000000e+00> : vector<1xf32>
    %198 = vector.multi_reduction <add>, %197, %cst_53 [0] : vector<2x1xf32> to vector<1xf32>
    %199 = vector.shape_cast %198 : vector<1xf32> to vector<1x1xf32>
    %200 = arith.divf %194, %199 : vector<1x1xf32>
    %201 = math.sqrt %200 : vector<1x1xf32>
    %c0_54 = arith.constant 0 : index
    %c0_55 = arith.constant 0 : index
    %202 = vector.load %arg15[%c0_54, %c0_55] : memref<1x1xf32, #tpu.memory_space<vmem>>, vector<1x1xf32>
    tpu.vector_store %arg15[%c0_54, %c0_55], %201 {strides = array<i32>} : memref<1x1xf32, #tpu.memory_space<vmem>>, vector<1x1xf32>,
    return
  }
}

</mosaic_0001>

<llo_original>
// kernel: hyperfns_forward.1
$region0: #{hyperfns_forward.1}
  #allocation0 [shape = 'u32[]', space=smem, size = 0x4, offset = 0x4, fixed_abs, tag = 'smem constant byte address 0x4 - core index']
  #allocation1 [shape = 'u32[144,128]{1,0:T(1,128)}', space=vmem, size = 0x12000, scoped, tag = 'internal scratch']
  #allocation2 [shape = 'f32[1,1]{1,0:T(1,128)S(1)}', space=vmem, size = 0x200, scoped, tag = 'scoped memory for hyperfns_forward.1']
  %s0 = inlined_call_operand.vmem [shape: f32[2,9], index: 0, kind: input, shape index: {}]
  %s1 = inlined_call_operand.vmem [shape: f32[2,256], index: 1, kind: input, shape index: {}]
  %s2 = inlined_call_operand.vmem [shape: f32[9,256], index: 2, kind: input, shape index: {}]
  %s3 = inlined_call_operand.vmem [shape: f32[8,256], index: 3, kind: input, shape index: {}]
  %s4 = inlined_call_operand.vmem [shape: f32[2,256], index: 4, kind: input, shape index: {}]
  %s5 = inlined_call_operand.vmem [shape: f32[64,2], index: 5, kind: input, shape index: {}]
  %s6 = inlined_call_operand.vmem [shape: f32[64,1], index: 6, kind: input, shape index: {}]
  %s7 = inlined_call_operand.vmem [shape: f32[32,64], index: 7, kind: input, shape index: {}]
  %s8 = inlined_call_operand.vmem [shape: f32[32,1], index: 8, kind: input, shape index: {}]
  %s9 = inlined_call_operand.vmem [shape: f32[256,64], index: 9, kind: input, shape index: {}]
  %s10 = inlined_call_operand.vmem [shape: f32[256,64], index: 10, kind: input, shape index: {}]
  %s11 = inlined_call_operand.vmem [shape: f32[1,64], index: 11, kind: input, shape index: {}]
  %s12 = inlined_call_operand.vmem [shape: f32[64,32], index: 12, kind: input, shape index: {}]
  %s13 = inlined_call_operand.vmem [shape: f32[1,32], index: 13, kind: input, shape index: {}]
  %s14 = inlined_call_operand.<no memory space> [shape: f32[1,1], index: 14, kind: input, shape index: {}]
  %s15 = inlined_call_operand.hbm [shape: f32[1,1], index: 15, kind: output, shape index: {}]
  %s16 = sld [smem:[#allocation0]]
  $region77: #{hyperfns_forward.1} parent=0
    _
  %s18 = ssub.s32 1, %s16
  %s19 = scalar_select 0, %s18, %s16
  %v20 = vstv %s14
  %21 = vst [vmem:[#allocation2] sm:$0x1] %v20
  $region1: #{hyperfns_forward.1} parent=0
    #allocation3 [shape = 'u8[512]{0}', space=vmem, size = 0x400, scoped, tag = 'output window, operand 0, single buffered']
    #allocation4 [shape = 's32[1]{0}', space=sflag, size = 0x4, scoped, tag = 'scoped memory for hyperfns_forward.1']
    %22 = vsyncpa [#allocation4], 0
    // Predicated region
    $region2: #{hyperfns_forward.1} parent=1 // pred_check
      _
    $region3: #{hyperfns_forward.1} parent=1 // pred_check_branch
      %24 = sbr.rel (0) target = $region5
    $region4: #{hyperfns_forward.1} parent=1 // pred_region
      _
    $region5: #{hyperfns_forward.1} parent=1 // pred_fallthru
      _
    // Predicated region
    $region6: #{hyperfns_forward.1} parent=1 // pred_check
      _
    $region7: #{hyperfns_forward.1} parent=1 // pred_check_branch
      %26 = sbr.rel (0) target = $region9
    $region8: #{hyperfns_forward.1} parent=1 // pred_region
      _
    $region9: #{hyperfns_forward.1} parent=1 // pred_fallthru
      _
    // Predicated region
    $region10: #{hyperfns_forward.1} parent=1 // pred_check
      _
    $region11: #{hyperfns_forward.1} parent=1 // pred_check_branch
      %28 = sbr.rel (0) target = $region13
    $region12: #{hyperfns_forward.1} parent=1 // pred_region
      _
    $region13: #{hyperfns_forward.1} parent=1 // pred_fallthru
      _
    // Predicated region
    $region14: #{hyperfns_forward.1} parent=1 // pred_check
      _
    $region15: #{hyperfns_forward.1} parent=1 // pred_check_branch
      %30 = sbr.rel (0) target = $region17
    $region16: #{hyperfns_forward.1} parent=1 // pred_region
      _
    $region17: #{hyperfns_forward.1} parent=1 // pred_fallthru
      _
    // Predicated region
    $region18: #{hyperfns_forward.1} parent=1 // pred_check
      _
    $region19: #{hyperfns_forward.1} parent=1 // pred_check_branch
      %32 = sbr.rel (0) target = $region21
    $region20: #{hyperfns_forward.1} parent=1 // pred_region
      _
    $region21: #{hyperfns_forward.1} parent=1 // pred_fallthru
      _
    // Predicated region
    $region22: #{hyperfns_forward.1} parent=1 // pred_check
      _
    $region23: #{hyperfns_forward.1} parent=1 // pred_check_branch
      %34 = sbr.rel (0) target = $region25
    $region24: #{hyperfns_forward.1} parent=1 // pred_region
      _
    $region25: #{hyperfns_forward.1} parent=1 // pred_fallthru
      _
    // Predicated region
    $region26: #{hyperfns_forward.1} parent=1 // pred_check
      _
    $region27: #{hyperfns_forward.1} parent=1 // pred_check_branch
      %36 = sbr.rel (0) target = $region29
    $region28: #{hyperfns_forward.1} parent=1 // pred_region
      _
    $region29: #{hyperfns_forward.1} parent=1 // pred_fallthru
      _
    // Predicated region
    $region30: #{hyperfns_forward.1} parent=1 // pred_check
      _
    $region31: #{hyperfns_forward.1} parent=1 // pred_check_branch
      %38 = sbr.rel (0) target = $region33
    $region32: #{hyperfns_forward.1} parent=1 // pred_region
      _
    $region33: #{hyperfns_forward.1} parent=1 // pred_fallthru
      _
    // Predicated region
    $region34: #{hyperfns_forward.1} parent=1 // pred_check
      _
    $region35: #{hyperfns_forward.1} parent=1 // pred_check_branch
      %40 = sbr.rel (0) target = $region37
    $region36: #{hyperfns_forward.1} parent=1 // pred_region
      _
    $region37: #{hyperfns_forward.1} parent=1 // pred_fallthru
      _
    // Predicated region
    $region38: #{hyperfns_forward.1} parent=1 // pred_check
      _
    $region39: #{hyperfns_forward.1} parent=1 // pred_check_branch
      %42 = sbr.rel (0) target = $region41
    $region40: #{hyperfns_forward.1} parent=1 // pred_region
      _
    $region41: #{hyperfns_forward.1} parent=1 // pred_fallthru
      _
    // Predicated region
    $region42: #{hyperfns_forward.1} parent=1 // pred_check
      _
    $region43: #{hyperfns_forward.1} parent=1 // pred_check_branch
      %44 = sbr.rel (0) target = $region45
    $region44: #{hyperfns_forward.1} parent=1 // pred_region
      _
    $region45: #{hyperfns_forward.1} parent=1 // pred_fallthru
      _
    // Predicated region
    $region46: #{hyperfns_forward.1} parent=1 // pred_check
      _
    $region47: #{hyperfns_forward.1} parent=1 // pred_check_branch
      %46 = sbr.rel (0) target = $region49
    $region48: #{hyperfns_forward.1} parent=1 // pred_region
      _
    $region49: #{hyperfns_forward.1} parent=1 // pred_fallthru
      _
    // Predicated region
    $region50: #{hyperfns_forward.1} parent=1 // pred_check
      _
    $region51: #{hyperfns_forward.1} parent=1 // pred_check_branch
      %48 = sbr.rel (0) target = $region53
    $region52: #{hyperfns_forward.1} parent=1 // pred_region
      _
    $region53: #{hyperfns_forward.1} parent=1 // pred_fallthru
      _
    // Predicated region
    $region54: #{hyperfns_forward.1} parent=1 // pred_check
      _
    $region55: #{hyperfns_forward.1} parent=1 // pred_check_branch
      %50 = sbr.rel (0) target = $region57
    $region56: #{hyperfns_forward.1} parent=1 // pred_region
      _
    $region57: #{hyperfns_forward.1} parent=1 // pred_fallthru
      _
    // Predicated region
    $region58: #{hyperfns_forward.1} parent=1 // pred_check
      _
    $region59: #{hyperfns_forward.1} parent=1 // pred_check_branch
      %52 = sbr.rel (0) target = $region61
    $region60: #{hyperfns_forward.1} parent=1 // pred_region
      _
    $region61: #{hyperfns_forward.1} parent=1 // pred_fallthru
      _
    %v53 = vld [vmem:[%s1] sm:$0xf]
    %v54 = vld [vmem:[%s0] sm:$0x3]
    %v55 = vrcp.pop %v54
    %v56 = vmul.f32 0.5, %v55
    %58 = vset.pattern.permute.xlu0 4
    %59 = vperm.xlu0 %58, %v56
    %v60 = vpop.permute.xlu0 %59
    %63 = vset.pattern.permute.xlu0 0
    %64 = vperm.xlu0 %63, %v54
    %v65 = vpop.permute.xlu0 %64
    %v67 = vld [vmem:[%s2] ss:$8 sm:$0x3]
    %v69 = vlaneseq
    %v70 = vshrl.u32 %v69, 7
    %v71 = vsub.s32 0, %v70
    %v72 = vrot.slane %v67, %v71
    %v73 = vlaneseq
    %v74 = vshrl.u32 %v73, 7
    %v75 = vsub.s32 1, %v74
    %v76 = vrot.slane %v67, %v75
    %v79 = vmul.f32 %v65, %v72
    %v80 = vmul.f32 %v65, %v76
    %81 = vset.pattern.permute.xlu0 1
    %82 = vperm.xlu0 %81, %v54
    %v83 = vpop.permute.xlu0 %82
    %s85 = scalar_lea.vmem %s2, 1
    %v86 = vld [vmem:[%s85] ss:$8 sm:$0x3]
    %v88 = vlaneseq
    %v89 = vshrl.u32 %v88, 7
    %v90 = vsub.s32 0, %v89
    %v91 = vrot.slane %v86, %v90
    %v92 = vlaneseq
    %v93 = vshrl.u32 %v92, 7
    %v94 = vsub.s32 1, %v93
    %v95 = vrot.slane %v86, %v94
    %v98 = vmul.f32 %v83, %v91
    %v99 = vmul.f32 %v83, %v95
    %100 = vset.pattern.permute.xlu0 2
    %101 = vperm.xlu0 %100, %v54
    %v102 = vpop.permute.xlu0 %101
    %s104 = scalar_lea.vmem %s2, 2
    %v105 = vld [vmem:[%s104] ss:$8 sm:$0x3]
    %v107 = vlaneseq
    %v108 = vshrl.u32 %v107, 7
    %v109 = vsub.s32 0, %v108
    %v110 = vrot.slane %v105, %v109
    %v111 = vlaneseq
    %v112 = vshrl.u32 %v111, 7
    %v113 = vsub.s32 1, %v112
    %v114 = vrot.slane %v105, %v113
    %v117 = vmul.f32 %v102, %v110
    %v118 = vmul.f32 %v102, %v114
    %119 = vset.pattern.permute.xlu0 3
    %120 = vperm.xlu0 %119, %v54
    %v121 = vpop.permute.xlu0 %120
    %s123 = scalar_lea.vmem %s2, 3
    %v124 = vld [vmem:[%s123] ss:$8 sm:$0x3]
    %v126 = vlaneseq
    %v127 = vshrl.u32 %v126, 7
    %v128 = vsub.s32 0, %v127
    %v129 = vrot.slane %v124, %v128
    %v130 = vlaneseq
    %v131 = vshrl.u32 %v130, 7
    %v132 = vsub.s32 1, %v131
    %v133 = vrot.slane %v124, %v132
    %v136 = vmul.f32 %v121, %v129
    %v137 = vmul.f32 %v121, %v133
    %138 = vset.pattern.permute.xlu0 4
    %139 = vperm.xlu0 %138, %v54
    %v140 = vpop.permute.xlu0 %139
    %s142 = scalar_lea.vmem %s2, 4
    %v143 = vld [vmem:[%s142] ss:$8 sm:$0x3]
    %v145 = vlaneseq
    %v146 = vshrl.u32 %v145, 7
    %v147 = vsub.s32 0, %v146
    %v148 = vrot.slane %v143, %v147
    %v149 = vlaneseq
    %v150 = vshrl.u32 %v149, 7
    %v151 = vsub.s32 1, %v150
    %v152 = vrot.slane %v143, %v151
    %v155 = vmul.f32 %v140, %v148
    %v156 = vmul.f32 %v140, %v152
    %157 = vset.pattern.permute.xlu0 5
    %158 = vperm.xlu0 %157, %v54
    %v159 = vpop.permute.xlu0 %158
    %s161 = scalar_lea.vmem %s2, 5
    %v162 = vld [vmem:[%s161] ss:$8 sm:$0x3]
    %v164 = vlaneseq
    %v165 = vshrl.u32 %v164, 7
    %v166 = vsub.s32 0, %v165
    %v167 = vrot.slane %v162, %v166
    %v168 = vlaneseq
    %v169 = vshrl.u32 %v168, 7
    %v170 = vsub.s32 1, %v169
    %v171 = vrot.slane %v162, %v170
    %v174 = vmul.f32 %v159, %v167
    %v175 = vmul.f32 %v159, %v171
    %176 = vset.pattern.permute.xlu0 6
    %177 = vperm.xlu0 %176, %v54
    %v178 = vpop.permute.xlu0 %177
    %s180 = scalar_lea.vmem %s2, 6
    %v181 = vld [vmem:[%s180] ss:$8 sm:$0x3]
    %v183 = vlaneseq
    %v184 = vshrl.u32 %v183, 7
    %v185 = vsub.s32 0, %v184
    %v186 = vrot.slane %v181, %v185
    %v187 = vlaneseq
    %v188 = vshrl.u32 %v187, 7
    %v189 = vsub.s32 1, %v188
    %v190 = vrot.slane %v181, %v189
    %v193 = vmul.f32 %v178, %v186
    %v194 = vmul.f32 %v178, %v190
    %195 = vset.pattern.permute.xlu0 7
    %196 = vperm.xlu0 %195, %v54
    %v197 = vpop.permute.xlu0 %196
    %s199 = scalar_lea.vmem %s2, 7
    %v200 = vld [vmem:[%s199] ss:$8 sm:$0x3]
    %v202 = vlaneseq
    %v203 = vshrl.u32 %v202, 7
    %v204 = vsub.s32 0, %v203
    %v205 = vrot.slane %v200, %v204
    %v206 = vlaneseq
    %v207 = vshrl.u32 %v206, 7
    %v208 = vsub.s32 1, %v207
    %v209 = vrot.slane %v200, %v208
    %v212 = vmul.f32 %v197, %v205
    %v213 = vmul.f32 %v197, %v209
    %214 = vset.pattern.permute.xlu0 8
    %215 = vperm.xlu0 %214, %v54
    %v216 = vpop.permute.xlu0 %215
    %s218 = scalar_lea.vmem %s2, 16
    %v219 = vld [vmem:[%s218] ss:$8 sm:$0x3]
    %v221 = vlaneseq
    %v222 = vshrl.u32 %v221, 7
    %v223 = vsub.s32 0, %v222
    %v224 = vrot.slane %v219, %v223
    %v225 = vlaneseq
    %v226 = vshrl.u32 %v225, 7
    %v227 = vsub.s32 1, %v226
    %v228 = vrot.slane %v219, %v227
    %v231 = vmul.f32 %v216, %v224
    %v232 = vmul.f32 %v216, %v228
    %v233 = vld [vmem:[%s3] ss:$8 sm:$0x3]
    %s234 = scalar_lea.vmem %s3, 1
    %v235 = vld [vmem:[%s234] ss:$8 sm:$0x3]
    %s236 = scalar_lea.vmem %s3, 2
    %v237 = vld [vmem:[%s236] ss:$8 sm:$0x3]
    %s238 = scalar_lea.vmem %s3, 3
    %v239 = vld [vmem:[%s238] ss:$8 sm:$0x3]
    %s240 = scalar_lea.vmem %s3, 4
    %v241 = vld [vmem:[%s240] ss:$8 sm:$0x3]
    %s242 = scalar_lea.vmem %s3, 5
    %v243 = vld [vmem:[%s242] ss:$8 sm:$0x3]
    %s244 = scalar_lea.vmem %s3, 6
    %v245 = vld [vmem:[%s244] ss:$8 sm:$0x3]
    %s246 = scalar_lea.vmem %s3, 7
    %v247 = vld [vmem:[%s246] ss:$8 sm:$0x3]
    %248 = vrot.lane.b32.xlu0 %v54, 120
    %v249 = vpop.permute.xlu0 %248
    %v251 = vadd.f32 %v54, %v249
    %253 = vset.pattern.permute.xlu0 0
    %254 = vperm.xlu0 %253, %v251
    %v255 = vpop.permute.xlu0 %254
    %v258 = vlaneseq
    %v259 = vshrl.u32 %v258, 7
    %v260 = vsub.s32 0, %v259
    %v261 = vrot.slane %v233, %v260
    %v262 = vlaneseq
    %v263 = vshrl.u32 %v262, 7
    %v264 = vsub.s32 1, %v263
    %v265 = vrot.slane %v233, %v264
    %v268 = vmul.f32 %v255, %v261
    %v269 = vmul.f32 %v255, %v265
    %270 = vrot.lane.b32.xlu0 %v54, 124
    %v271 = vpop.permute.xlu0 %270
    %v273 = vadd.f32 %v54, %v271
    %275 = vset.pattern.permute.xlu0 2
    %276 = vperm.xlu0 %275, %v273
    %v277 = vpop.permute.xlu0 %276
    %v280 = vlaneseq
    %v281 = vshrl.u32 %v280, 7
    %v282 = vsub.s32 0, %v281
    %v283 = vrot.slane %v235, %v282
    %v284 = vlaneseq
    %v285 = vshrl.u32 %v284, 7
    %v286 = vsub.s32 1, %v285
    %v287 = vrot.slane %v235, %v286
    %v290 = vmul.f32 %v277, %v283
    %v291 = vmul.f32 %v277, %v287
    %v292 = vadd.f32 %v268, %v290
    %v293 = vadd.f32 %v269, %v291
    %294 = vrot.lane.b32.xlu0 %v54, 122
    %v295 = vpop.permute.xlu0 %294
    %v297 = vadd.f32 %v54, %v295
    %299 = vset.pattern.permute.xlu0 1
    %300 = vperm.xlu0 %299, %v297
    %v301 = vpop.permute.xlu0 %300
    %v304 = vlaneseq
    %v305 = vshrl.u32 %v304, 7
    %v306 = vsub.s32 0, %v305
    %v307 = vrot.slane %v239, %v306
    %v308 = vlaneseq
    %v309 = vshrl.u32 %v308, 7
    %v310 = vsub.s32 1, %v309
    %v311 = vrot.slane %v239, %v310
    %v314 = vmul.f32 %v301, %v307
    %v315 = vmul.f32 %v301, %v311
    %v316 = vadd.f32 %v292, %v314
    %v317 = vadd.f32 %v293, %v315
    %318 = vrot.lane.b32.xlu0 %v54, 126
    %v319 = vpop.permute.xlu0 %318
    %v321 = vadd.f32 %v54, %v319
    %323 = vset.pattern.permute.xlu0 3
    %324 = vperm.xlu0 %323, %v321
    %v325 = vpop.permute.xlu0 %324
    %v328 = vlaneseq
    %v329 = vshrl.u32 %v328, 7
    %v330 = vsub.s32 0, %v329
    %v331 = vrot.slane %v237, %v330
    %v332 = vlaneseq
    %v333 = vshrl.u32 %v332, 7
    %v334 = vsub.s32 1, %v333
    %v335 = vrot.slane %v237, %v334
    %v338 = vmul.f32 %v325, %v331
    %v339 = vmul.f32 %v325, %v335
    %v340 = vadd.f32 %v316, %v338
    %v341 = vadd.f32 %v317, %v339
    %v342 = vadd.f32 %v340, %v140
    %v343 = vadd.f32 %v341, %v140
    %344 = vrot.lane.b32.xlu0 %v54, 8
    %v345 = vpop.permute.xlu0 %344
    %v347 = vsub.f32 %v54, %v345
    %349 = vset.pattern.permute.xlu0 8
    %350 = vperm.xlu0 %349, %v347
    %v351 = vpop.permute.xlu0 %350
    %v354 = vlaneseq
    %v355 = vshrl.u32 %v354, 7
    %v356 = vsub.s32 0, %v355
    %v357 = vrot.slane %v241, %v356
    %v358 = vlaneseq
    %v359 = vshrl.u32 %v358, 7
    %v360 = vsub.s32 1, %v359
    %v361 = vrot.slane %v241, %v360
    %v364 = vmul.f32 %v351, %v357
    %v365 = vmul.f32 %v351, %v361
    %v366 = vsub.f32 %v54, %v271
    %368 = vset.pattern.permute.xlu0 2
    %369 = vperm.xlu0 %368, %v366
    %v370 = vpop.permute.xlu0 %369
    %v373 = vlaneseq
    %v374 = vshrl.u32 %v373, 7
    %v375 = vsub.s32 0, %v374
    %v376 = vrot.slane %v243, %v375
    %v377 = vlaneseq
    %v378 = vshrl.u32 %v377, 7
    %v379 = vsub.s32 1, %v378
    %v380 = vrot.slane %v243, %v379
    %v383 = vmul.f32 %v370, %v376
    %v384 = vmul.f32 %v370, %v380
    %v385 = vadd.f32 %v364, %v383
    %v386 = vadd.f32 %v365, %v384
    %387 = vrot.lane.b32.xlu0 %v54, 6
    %v388 = vpop.permute.xlu0 %387
    %v390 = vsub.f32 %v54, %v388
    %392 = vset.pattern.permute.xlu0 7
    %393 = vperm.xlu0 %392, %v390
    %v394 = vpop.permute.xlu0 %393
    %v397 = vlaneseq
    %v398 = vshrl.u32 %v397, 7
    %v399 = vsub.s32 0, %v398
    %v400 = vrot.slane %v247, %v399
    %v401 = vlaneseq
    %v402 = vshrl.u32 %v401, 7
    %v403 = vsub.s32 1, %v402
    %v404 = vrot.slane %v247, %v403
    %v407 = vmul.f32 %v394, %v400
    %v408 = vmul.f32 %v394, %v404
    %v409 = vadd.f32 %v385, %v407
    %v410 = vadd.f32 %v386, %v408
    %411 = vrot.lane.b32.xlu0 %v54, 2
    %v412 = vpop.permute.xlu0 %411
    %v414 = vsub.f32 %v54, %v412
    %416 = vset.pattern.permute.xlu0 5
    %417 = vperm.xlu0 %416, %v414
    %v418 = vpop.permute.xlu0 %417
    %v421 = vlaneseq
    %v422 = vshrl.u32 %v421, 7
    %v423 = vsub.s32 0, %v422
    %v424 = vrot.slane %v245, %v423
    %v425 = vlaneseq
    %v426 = vshrl.u32 %v425, 7
    %v427 = vsub.s32 1, %v426
    %v428 = vrot.slane %v245, %v427
    %v431 = vmul.f32 %v418, %v424
    %v432 = vmul.f32 %v418, %v428
    %v433 = vadd.f32 %v409, %v431
    %v434 = vadd.f32 %v410, %v432
    %v435 = vmul.f32 %v60, %v342
    %v436 = vmul.f32 %v60, %v343
    %v437 = vsub.f32 1.0, %v435
    %v438 = vsub.f32 1.0, %v436
    %v439 = vmul.f32 %v437, %v437
    %v440 = vmul.f32 %v438, %v438
    %v441 = vmul.f32 %v60, %v433
    %v442 = vmul.f32 %v60, %v434
    %v443 = vmul.f32 %v441, %v441
    %v444 = vmul.f32 %v442, %v442
    %v445 = vadd.f32 %v439, %v443
    %v446 = vadd.f32 %v440, %v444
    %v447 = vmul.f32 %v445, %v445
    %v448 = vmul.f32 %v446, %v446
    %v449 = vrsqrt.pop %v445
    %v450 = vmul.f32 %v445, %v449
    %vm451 = vcmp.eq.f32.partialorder %v445, inf
    %v452 = vsel %vm451, %v445, %v450
    %vm453 = vcmp.eq.f32.partialorder %v445, 0.0
    %v454 = vand.u32 %v445, 2147483648
    %v455 = vsel %vm453, %v454, %v452
    %v456 = vrsqrt.pop %v446
    %v457 = vmul.f32 %v446, %v456
    %vm458 = vcmp.eq.f32.partialorder %v446, inf
    %v459 = vsel %vm458, %v446, %v457
    %vm460 = vcmp.eq.f32.partialorder %v446, 0.0
    %v461 = vand.u32 %v446, 2147483648
    %v462 = vsel %vm460, %v461, %v459
    %v463 = vmul.f32 %v447, %v455
    %v464 = vmul.f32 %v448, %v462
    %v465 = vld [vmem:[%s5] sm:$0xff]
    %v466 = vld [vmem:[%s5 + $0x8] sm:$0xff]
    %v467 = vld [vmem:[%s5 + $0x10] sm:$0xff]
    %v468 = vld [vmem:[%s5 + $0x18] sm:$0xff]
    %v469 = vld [vmem:[%s5 + $0x20] sm:$0xff]
    %v470 = vld [vmem:[%s5 + $0x28] sm:$0xff]
    %v471 = vld [vmem:[%s5 + $0x30] sm:$0xff]
    %v472 = vld [vmem:[%s5 + $0x38] sm:$0xff]
    %v473 = vld [vmem:[%s4] ss:$2 sm:$0x3]
    %475 = vset.pattern.permute.xlu0 0
    %476 = vperm.xlu0 %475, %v465
    %v477 = vpop.permute.xlu0 %476
    %480 = vset.pattern.permute.xlu0 0
    %481 = vperm.xlu0 %480, %v466
    %v482 = vpop.permute.xlu0 %481
    %485 = vset.pattern.permute.xlu0 0
    %486 = vperm.xlu0 %485, %v467
    %v487 = vpop.permute.xlu0 %486
    %490 = vset.pattern.permute.xlu0 0
    %491 = vperm.xlu0 %490, %v468
    %v492 = vpop.permute.xlu0 %491
    %495 = vset.pattern.permute.xlu0 0
    %496 = vperm.xlu0 %495, %v469
    %v497 = vpop.permute.xlu0 %496
    %500 = vset.pattern.permute.xlu0 0
    %501 = vperm.xlu0 %500, %v470
    %v502 = vpop.permute.xlu0 %501
    %505 = vset.pattern.permute.xlu0 0
    %506 = vperm.xlu0 %505, %v471
    %v507 = vpop.permute.xlu0 %506
    %510 = vset.pattern.permute.xlu0 0
    %511 = vperm.xlu0 %510, %v472
    %v512 = vpop.permute.xlu0 %511
    %v515 = vlaneseq
    %v516 = vshrl.u32 %v515, 7
    %v517 = vsub.s32 0, %v516
    %v518 = vrot.slane %v473, %v517
    %v519 = vlaneseq
    %v520 = vshrl.u32 %v519, 7
    %v521 = vsub.s32 1, %v520
    %v522 = vrot.slane %v473, %v521
    %v525 = vmul.f32 %v477, %v518
    %v526 = vmul.f32 %v477, %v522
    %v527 = vmul.f32 %v482, %v518
    %v528 = vmul.f32 %v482, %v522
    %v529 = vmul.f32 %v487, %v518
    %v530 = vmul.f32 %v487, %v522
    %v531 = vmul.f32 %v492, %v518
    %v532 = vmul.f32 %v492, %v522
    %v533 = vmul.f32 %v497, %v518
    %v534 = vmul.f32 %v497, %v522
    %v535 = vmul.f32 %v502, %v518
    %v536 = vmul.f32 %v502, %v522
    %v537 = vmul.f32 %v507, %v518
    %v538 = vmul.f32 %v507, %v522
    %v539 = vmul.f32 %v512, %v518
    %v540 = vmul.f32 %v512, %v522
    %s541 = scalar_lea.vmem %s4, 1
    %v542 = vld [vmem:[%s541] ss:$2 sm:$0x3]
    %543 = vset.pattern.permute.xlu0 1
    %544 = vperm.xlu0 %543, %v465
    %v545 = vpop.permute.xlu0 %544
    %547 = vset.pattern.permute.xlu0 1
    %548 = vperm.xlu0 %547, %v466
    %v549 = vpop.permute.xlu0 %548
    %551 = vset.pattern.permute.xlu0 1
    %552 = vperm.xlu0 %551, %v467
    %v553 = vpop.permute.xlu0 %552
    %555 = vset.pattern.permute.xlu0 1
    %556 = vperm.xlu0 %555, %v468
    %v557 = vpop.permute.xlu0 %556
    %559 = vset.pattern.permute.xlu0 1
    %560 = vperm.xlu0 %559, %v469
    %v561 = vpop.permute.xlu0 %560
    %563 = vset.pattern.permute.xlu0 1
    %564 = vperm.xlu0 %563, %v470
    %v565 = vpop.permute.xlu0 %564
    %567 = vset.pattern.permute.xlu0 1
    %568 = vperm.xlu0 %567, %v471
    %v569 = vpop.permute.xlu0 %568
    %571 = vset.pattern.permute.xlu0 1
    %572 = vperm.xlu0 %571, %v472
    %v573 = vpop.permute.xlu0 %572
    %v576 = vlaneseq
    %v577 = vshrl.u32 %v576, 7
    %v578 = vsub.s32 0, %v577
    %v579 = vrot.slane %v542, %v578
    %v580 = vlaneseq
    %v581 = vshrl.u32 %v580, 7
    %v582 = vsub.s32 1, %v581
    %v583 = vrot.slane %v542, %v582
    %v586 = vmul.f32 %v545, %v579
    %v587 = vmul.f32 %v545, %v583
    %v588 = vmul.f32 %v549, %v579
    %v589 = vmul.f32 %v549, %v583
    %v590 = vmul.f32 %v553, %v579
    %v591 = vmul.f32 %v553, %v583
    %v592 = vmul.f32 %v557, %v579
    %v593 = vmul.f32 %v557, %v583
    %v594 = vmul.f32 %v561, %v579
    %v595 = vmul.f32 %v561, %v583
    %v596 = vmul.f32 %v565, %v579
    %v597 = vmul.f32 %v565, %v583
    %v598 = vmul.f32 %v569, %v579
    %v599 = vmul.f32 %v569, %v583
    %v600 = vmul.f32 %v573, %v579
    %v601 = vmul.f32 %v573, %v583
    %v602 = vadd.f32 %v525, %v586
    %v603 = vadd.f32 %v526, %v587
    %v604 = vadd.f32 %v527, %v588
    %v605 = vadd.f32 %v528, %v589
    %v606 = vadd.f32 %v529, %v590
    %v607 = vadd.f32 %v530, %v591
    %v608 = vadd.f32 %v531, %v592
    %v609 = vadd.f32 %v532, %v593
    %v610 = vadd.f32 %v533, %v594
    %v611 = vadd.f32 %v534, %v595
    %v612 = vadd.f32 %v535, %v596
    %v613 = vadd.f32 %v536, %v597
    %v614 = vadd.f32 %v537, %v598
    %v615 = vadd.f32 %v538, %v599
    %v616 = vadd.f32 %v539, %v600
    %v617 = vadd.f32 %v540, %v601
    %v618 = vld [vmem:[%s6] sm:$0xff]
    %v619 = vld [vmem:[%s6 + $0x8] sm:$0xff]
    %v620 = vld [vmem:[%s6 + $0x10] sm:$0xff]
    %v621 = vld [vmem:[%s6 + $0x18] sm:$0xff]
    %v622 = vld [vmem:[%s6 + $0x20] sm:$0xff]
    %v623 = vld [vmem:[%s6 + $0x28] sm:$0xff]
    %v624 = vld [vmem:[%s6 + $0x30] sm:$0xff]
    %v625 = vld [vmem:[%s6 + $0x38] sm:$0xff]
    %627 = vset.pattern.permute.xlu0 0
    %628 = vperm.xlu0 %627, %v618
    %v629 = vpop.permute.xlu0 %628
    %632 = vset.pattern.permute.xlu0 0
    %633 = vperm.xlu0 %632, %v619
    %v634 = vpop.permute.xlu0 %633
    %637 = vset.pattern.permute.xlu0 0
    %638 = vperm.xlu0 %637, %v620
    %v639 = vpop.permute.xlu0 %638
    %642 = vset.pattern.permute.xlu0 0
    %643 = vperm.xlu0 %642, %v621
    %v644 = vpop.permute.xlu0 %643
    %647 = vset.pattern.permute.xlu0 0
    %648 = vperm.xlu0 %647, %v622
    %v649 = vpop.permute.xlu0 %648
    %652 = vset.pattern.permute.xlu0 0
    %653 = vperm.xlu0 %652, %v623
    %v654 = vpop.permute.xlu0 %653
    %657 = vset.pattern.permute.xlu0 0
    %658 = vperm.xlu0 %657, %v624
    %v659 = vpop.permute.xlu0 %658
    %662 = vset.pattern.permute.xlu0 0
    %663 = vperm.xlu0 %662, %v625
    %v664 = vpop.permute.xlu0 %663
    %v666 = vadd.f32 %v602, %v629
    %v667 = vadd.f32 %v603, %v629
    %v668 = vadd.f32 %v604, %v634
    %v669 = vadd.f32 %v605, %v634
    %v670 = vadd.f32 %v606, %v639
    %v671 = vadd.f32 %v607, %v639
    %v672 = vadd.f32 %v608, %v644
    %v673 = vadd.f32 %v609, %v644
    %v674 = vadd.f32 %v610, %v649
    %v675 = vadd.f32 %v611, %v649
    %v676 = vadd.f32 %v612, %v654
    %v677 = vadd.f32 %v613, %v654
    %v678 = vadd.f32 %v614, %v659
    %v679 = vadd.f32 %v615, %v659
    %v680 = vadd.f32 %v616, %v664
    %v681 = vadd.f32 %v617, %v664
    %v682 = vtanh.pop %v666
    %v683 = vtanh.pop %v667
    %v684 = vtanh.pop %v668
    %v685 = vtanh.pop %v669
    %v686 = vtanh.pop %v670
    %v687 = vtanh.pop %v671
    %v688 = vtanh.pop %v672
    %v689 = vtanh.pop %v673
    %v690 = vtanh.pop %v674
    %v691 = vtanh.pop %v675
    %v692 = vtanh.pop %v676
    %v693 = vtanh.pop %v677
    %v694 = vtanh.pop %v678
    %v695 = vtanh.pop %v679
    %v696 = vtanh.pop %v680
    %v697 = vtanh.pop %v681
    %v698 = vld [vmem:[%s7] sm:$0xff]
    %v699 = vld [vmem:[%s7 + $0x8] sm:$0xff]
    %v700 = vld [vmem:[%s7 + $0x10] sm:$0xff]
    %v701 = vld [vmem:[%s7 + $0x18] sm:$0xff]
    %v702 = vld [vmem:[%s8] sm:$0xff]
    %v703 = vld [vmem:[%s8 + $0x8] sm:$0xff]
    %v704 = vld [vmem:[%s8 + $0x10] sm:$0xff]
    %v705 = vld [vmem:[%s8 + $0x18] sm:$0xff]
    %707 = vset.pattern.permute.xlu0 0
    %708 = vperm.xlu0 %707, %v702
    %v709 = vpop.permute.xlu0 %708
    %712 = vset.pattern.permute.xlu0 0
    %713 = vperm.xlu0 %712, %v703
    %v714 = vpop.permute.xlu0 %713
    %717 = vset.pattern.permute.xlu0 0
    %718 = vperm.xlu0 %717, %v704
    %v719 = vpop.permute.xlu0 %718
    %722 = vset.pattern.permute.xlu0 0
    %723 = vperm.xlu0 %722, %v705
    %v724 = vpop.permute.xlu0 %723
    %vm726 = vcmask 523264
    %v728 = vsel %vm726, %v698, 0
    %v731 = vsel %vm726, %v699, 0
    %v734 = vsel %vm726, %v700, 0
    %v737 = vsel %vm726, %v701, 0
    %739 = vmatprep.subr.mxu0 %v683
    %740 = vmatpush1.msra.mxu0 %v682
    %741 = vmatprep.subr.mxu0 %v685
    %742 = vmatpush1.msra.mxu0 %v684
    %743 = vmatprep.subr.mxu0 %v687
    %744 = vmatpush1.msra.mxu0 %v686
    %745 = vmatprep.subr.mxu0 %v689
    %746 = vmatpush1.msra.mxu0 %v688
    %747 = vmatprep.subr.mxu0 %v691
    %748 = vmatpush1.msra.mxu0 %v690
    %749 = vmatprep.subr.mxu0 %v693
    %750 = vmatpush1.msra.mxu0 %v692
    %751 = vmatprep.subr.mxu0 %v695
    %752 = vmatpush1.msra.mxu0 %v694
    %753 = vmatprep.subr.mxu0 %v697
    %754 = vmatpush1.msra.mxu0 %v696
    %755 = vmatprep.subr.mxu0 0.0
    %756 = vmatpush1.msra.mxu0 0.0
    %757 = vmatprep.subr.mxu0 0.0
    %758 = vmatpush1.msra.mxu0 0.0
    %759 = vmatprep.subr.mxu0 0.0
    %760 = vmatpush1.msra.mxu0 0.0
    %761 = vmatprep.subr.mxu0 0.0
    %762 = vmatpush1.msra.mxu0 0.0
    %763 = vmatprep.subr.mxu0 0.0
    %764 = vmatpush1.msra.mxu0 0.0
    %765 = vmatprep.subr.mxu0 0.0
    %766 = vmatpush1.msra.mxu0 0.0
    %767 = vmatprep.subr.mxu0 0.0
    %768 = vmatpush1.msra.mxu0 0.0
    %769 = vmatprep.subr.mxu0 0.0
    %770 = vmatpush1.msra.mxu0 0.0
    %771 = vmatprep.subr.mxu0 0.0
    %772 = vmatpush1.msra.mxu0 0.0
    %773 = vmatprep.subr.mxu0 0.0
    %774 = vmatpush1.msra.mxu0 0.0
    %775 = vmatprep.subr.mxu0 0.0
    %776 = vmatpush1.msra.mxu0 0.0
    %777 = vmatprep.subr.mxu0 0.0
    %778 = vmatpush1.msra.mxu0 0.0
    %779 = vmatprep.subr.mxu0 0.0
    %780 = vmatpush1.msra.mxu0 0.0
    %781 = vmatprep.subr.mxu0 0.0
    %782 = vmatpush1.msra.mxu0 0.0
    %783 = vmatprep.subr.mxu0 0.0
    %784 = vmatpush1.msra.mxu0 0.0
    %785 = vmatprep.subr.mxu0 0.0
    %786 = vmatpush1.msra.mxu0 0.0
    %787 = vmatprep.subr.mxu0 0.0
    %788 = vmatpush1.msra.mxu0 0.0
    %789 = vmatprep.subr.mxu0 0.0
    %790 = vmatpush1.msra.mxu0 0.0
    %791 = vmatprep.subr.mxu0 0.0
    %792 = vmatpush1.msra.mxu0 0.0
    %793 = vmatprep.subr.mxu0 0.0
    %794 = vmatpush1.msra.mxu0 0.0
    %795 = vmatprep.subr.mxu0 0.0
    %796 = vmatpush1.msra.mxu0 0.0
    %797 = vmatprep.subr.mxu0 0.0
    %798 = vmatpush1.msra.mxu0 0.0
    %799 = vmatprep.subr.mxu0 0.0
    %800 = vmatpush1.msra.mxu0 0.0
    %801 = vmatprep.subr.mxu0 0.0
    %802 = vmatpush1.msra.mxu0 0.0
    %803 = vmatprep.mubr.f32.mxu0 0.0
    %804 = vmatmul.mubr.f32.gmra.mrb[0].mxu0 %v728
    %v805 = vpop.f32.mrb[0].mxu0
    %v806 = vadd.f32 %v709, %v805
    %v807 = vpop.f32.mrb[0].mxu0
    %v808 = vadd.f32 %v709, %v807
    %809 = vmatprep.mubr.f32.mxu0 0.0
    %810 = vmatmul.mubr.f32.gmra.mrb[0].mxu0 %v731
    %v811 = vpop.f32.mrb[0].mxu0
    %v812 = vadd.f32 %v714, %v811
    %v813 = vpop.f32.mrb[0].mxu0
    %v814 = vadd.f32 %v714, %v813
    %815 = vmatprep.mubr.f32.mxu0 0.0
    %816 = vmatmul.mubr.f32.gmra.mrb[0].mxu0 %v734
    %v817 = vpop.f32.mrb[0].mxu0
    %v818 = vadd.f32 %v719, %v817
    %v819 = vpop.f32.mrb[0].mxu0
    %v820 = vadd.f32 %v719, %v819
    %821 = vmatprep.mubr.f32.mxu0 0.0
    %822 = vmatmul.mubr.f32.gmra.mrb[0].mxu0 %v737
    %v823 = vpop.f32.mrb[0].mxu0
    %v824 = vadd.f32 %v724, %v823
    %v825 = vpop.f32.mrb[0].mxu0
    %v826 = vadd.f32 %v724, %v825
    %827 = vdwg.mxu0
    %v828 = vtanh.pop %v806
    %v829 = vtanh.pop %v808
    %v830 = vtanh.pop %v812
    %v831 = vtanh.pop %v814
    %v832 = vtanh.pop %v818
    %v833 = vtanh.pop %v820
    %v834 = vtanh.pop %v824
    %v835 = vtanh.pop %v826
    %v836 = vld [vmem:[%s9] sm:$0xff]
    %v837 = vld [vmem:[%s9 + $0x8] sm:$0xff]
    %v838 = vld [vmem:[%s9 + $0x10] sm:$0xff]
    %v839 = vld [vmem:[%s9 + $0x18] sm:$0xff]
    %v840 = vld [vmem:[%s9 + $0x20] sm:$0xff]
    %v841 = vld [vmem:[%s9 + $0x28] sm:$0xff]
    %v842 = vld [vmem:[%s9 + $0x30] sm:$0xff]
    %v843 = vld [vmem:[%s9 + $0x38] sm:$0xff]
    %v844 = vld [vmem:[%s9 + $0x40] sm:$0xff]
    %v845 = vld [vmem:[%s9 + $0x48] sm:$0xff]
    %v846 = vld [vmem:[%s9 + $0x50] sm:$0xff]
    %v847 = vld [vmem:[%s9 + $0x58] sm:$0xff]
    %v848 = vld [vmem:[%s9 + $0x60] sm:$0xff]
    %v849 = vld [vmem:[%s9 + $0x68] sm:$0xff]
    %v850 = vld [vmem:[%s9 + $0x70] sm:$0xff]
    %v851 = vld [vmem:[%s9 + $0x78] sm:$0xff]
    %v852 = vld [vmem:[%s9 + $0x80] sm:$0xff]
    %v853 = vld [vmem:[%s9 + $0x88] sm:$0xff]
    %v854 = vld [vmem:[%s9 + $0x90] sm:$0xff]
    %v855 = vld [vmem:[%s9 + $0x98] sm:$0xff]
    %v856 = vld [vmem:[%s9 + $0xa0] sm:$0xff]
    %v857 = vld [vmem:[%s9 + $0xa8] sm:$0xff]
    %v858 = vld [vmem:[%s9 + $0xb0] sm:$0xff]
    %v859 = vld [vmem:[%s9 + $0xb8] sm:$0xff]
    %v860 = vld [vmem:[%s9 + $0xc0] sm:$0xff]
    %v861 = vld [vmem:[%s9 + $0xc8] sm:$0xff]
    %v862 = vld [vmem:[%s9 + $0xd0] sm:$0xff]
    %v863 = vld [vmem:[%s9 + $0xd8] sm:$0xff]
    %v864 = vld [vmem:[%s9 + $0xe0] sm:$0xff]
    %v865 = vld [vmem:[%s9 + $0xe8] sm:$0xff]
    %v866 = vld [vmem:[%s9 + $0xf0] sm:$0xff]
    %v867 = vld [vmem:[%s9 + $0xf8] sm:$0xff]
    loop: start=0, step=1, limit=2
    $region62: #{hyperfns_forward.1} parent=1 // loop_pre_header
      _
    $region63: #{hyperfns_forward.1} parent=1 // loop_header
      %s869 = sphi 0, %s873
      %p870 = scmp.ge.s32.totalorder %s869, 2
      %v874 = vphi 0.0, %v2435
      %v875 = vphi 0.0, %v2436
    $region64: #{hyperfns_forward.1} parent=1 // loop_header_branch
      %872 = sbr.rel (%p870) target = $region68
    $region65: #{hyperfns_forward.1} parent=1 // loop_body
      %v876 = vmul.f32 %v155, %v874
      %v877 = vmul.f32 %v156, %v875
      %878 = vrot.lane.b32.xlu0 %v874, 17
      %v879 = vpop.permute.xlu0 %878
      %880 = vrot.lane.b32.xlu0 %v875, 17
      %v881 = vpop.permute.xlu0 %880
      %v882 = vlaneseq
      %v883 = vand.u32 %v882, 127
      %vm884 = vcmp.lt.s32.totalorder %v883, 17
      %v885 = vsel %vm884, %v879, %v881
      %v886 = vsel %vm884, %v881, %v879
      %v887 = vmul.f32 %v79, %v886
      %v888 = vmul.f32 %v80, %v885
      %v889 = vadd.f32 %v876, %v887
      %v890 = vadd.f32 %v877, %v888
      %891 = vrot.lane.b32.xlu0 %v874, 16
      %v892 = vpop.permute.xlu0 %891
      %893 = vrot.lane.b32.xlu0 %v875, 16
      %v894 = vpop.permute.xlu0 %893
      %vm895 = vcmp.lt.s32.totalorder %v883, 16
      %v896 = vsel %vm895, %v892, %v894
      %v897 = vsel %vm895, %v894, %v892
      %v898 = vmul.f32 %v98, %v897
      %v899 = vmul.f32 %v99, %v896
      %v900 = vadd.f32 %v889, %v898
      %v901 = vadd.f32 %v890, %v899
      %902 = vrot.lane.b32.xlu0 %v874, 15
      %v903 = vpop.permute.xlu0 %902
      %904 = vrot.lane.b32.xlu0 %v875, 15
      %v905 = vpop.permute.xlu0 %904
      %vm906 = vcmp.lt.s32.totalorder %v883, 15
      %v907 = vsel %vm906, %v903, %v905
      %v908 = vsel %vm906, %v905, %v903
      %v909 = vmul.f32 %v117, %v908
      %v910 = vmul.f32 %v118, %v907
      %v911 = vadd.f32 %v900, %v909
      %v912 = vadd.f32 %v901, %v910
      %913 = vrot.lane.b32.xlu0 %v874, 1
      %v914 = vpop.permute.xlu0 %913
      %915 = vrot.lane.b32.xlu0 %v875, 1
      %v916 = vpop.permute.xlu0 %915
      %vm917 = vcmp.lt.s32.totalorder %v883, 1
      %v918 = vsel %vm917, %v914, %v916
      %v919 = vsel %vm917, %v916, %v914
      %v920 = vmul.f32 %v136, %v919
      %v921 = vmul.f32 %v137, %v918
      %v922 = vadd.f32 %v911, %v920
      %v923 = vadd.f32 %v912, %v921
      %924 = vrot.lane.b32.xlu0 %v874, 127
      %v925 = vpop.permute.xlu0 %924
      %926 = vrot.lane.b32.xlu0 %v875, 127
      %v927 = vpop.permute.xlu0 %926
      %vm928 = vcmp.lt.s32.totalorder %v883, 127
      %v929 = vsel %vm928, %v925, %v927
      %v930 = vsel %vm928, %v927, %v925
      %v931 = vmul.f32 %v174, %v929
      %v932 = vmul.f32 %v175, %v930
      %v933 = vadd.f32 %v922, %v931
      %v934 = vadd.f32 %v923, %v932
      %935 = vrot.lane.b32.xlu0 %v874, 113
      %v936 = vpop.permute.xlu0 %935
      %937 = vrot.lane.b32.xlu0 %v875, 113
      %v938 = vpop.permute.xlu0 %937
      %vm939 = vcmp.lt.s32.totalorder %v883, 113
      %v940 = vsel %vm939, %v936, %v938
      %v941 = vsel %vm939, %v938, %v936
      %v942 = vmul.f32 %v193, %v940
      %v943 = vmul.f32 %v194, %v941
      %v944 = vadd.f32 %v933, %v942
      %v945 = vadd.f32 %v934, %v943
      %946 = vrot.lane.b32.xlu0 %v874, 112
      %v947 = vpop.permute.xlu0 %946
      %948 = vrot.lane.b32.xlu0 %v875, 112
      %v949 = vpop.permute.xlu0 %948
      %vm950 = vcmp.lt.s32.totalorder %v883, 112
      %v951 = vsel %vm950, %v947, %v949
      %v952 = vsel %vm950, %v949, %v947
      %v953 = vmul.f32 %v212, %v951
      %v954 = vmul.f32 %v213, %v952
      %v955 = vadd.f32 %v944, %v953
      %v956 = vadd.f32 %v945, %v954
      %957 = vrot.lane.b32.xlu0 %v874, 111
      %v958 = vpop.permute.xlu0 %957
      %959 = vrot.lane.b32.xlu0 %v875, 111
      %v960 = vpop.permute.xlu0 %959
      %vm961 = vcmp.lt.s32.totalorder %v883, 111
      %v962 = vsel %vm961, %v958, %v960
      %v963 = vsel %vm961, %v960, %v958
      %v964 = vmul.f32 %v231, %v962
      %v965 = vmul.f32 %v232, %v963
      %v966 = vadd.f32 %v955, %v964
      %v967 = vadd.f32 %v956, %v965
      %v970 = vcombine.low %v966, %v967
      %v972 = vunpack.c.l.s4 1983009808
      %v973 = vunpack.c.0.s8 %v972
      %v974 = vlaneseq
      %v975 = vshrl.u32 %v974, 7
      %v976 = vsub.s32 %v973, %v975
      %v977 = vrot.slane %v970, %v976
      %v979 = vsub.f32 %v53, %v977
      %v982 = vunpack.c.l.s4 1983009808
      %v983 = vunpack.c.0.s8 %v982
      %v984 = vlaneseq
      %v985 = vshrl.u32 %v984, 7
      %v986 = vsub.s32 %v983, %v985
      %v987 = vrot.slane %v979, %v986
      %v988 = vcombine.high %v987, %v987
      %v991 = vmul.f32 %v60, %v987
      %v992 = vmul.f32 %v60, %v988
      %v993 = vadd.f32 %v874, %v991
      %v994 = vadd.f32 %v875, %v992
      %v995 = vmul.f32 %v155, %v993
      %v996 = vmul.f32 %v156, %v994
      %997 = vrot.lane.b32.xlu0 %v993, 17
      %v998 = vpop.permute.xlu0 %997
      %999 = vrot.lane.b32.xlu0 %v994, 17
      %v1000 = vpop.permute.xlu0 %999
      %v1001 = vsel %vm884, %v998, %v1000
      %v1002 = vsel %vm884, %v1000, %v998
      %v1003 = vmul.f32 %v79, %v1002
      %v1004 = vmul.f32 %v80, %v1001
      %v1005 = vadd.f32 %v995, %v1003
      %v1006 = vadd.f32 %v996, %v1004
      %1007 = vrot.lane.b32.xlu0 %v993, 16
      %v1008 = vpop.permute.xlu0 %1007
      %1009 = vrot.lane.b32.xlu0 %v994, 16
      %v1010 = vpop.permute.xlu0 %1009
      %v1011 = vsel %vm895, %v1008, %v1010
      %v1012 = vsel %vm895, %v1010, %v1008
      %v1013 = vmul.f32 %v98, %v1012
      %v1014 = vmul.f32 %v99, %v1011
      %v1015 = vadd.f32 %v1005, %v1013
      %v1016 = vadd.f32 %v1006, %v1014
      %1017 = vrot.lane.b32.xlu0 %v993, 15
      %v1018 = vpop.permute.xlu0 %1017
      %1019 = vrot.lane.b32.xlu0 %v994, 15
      %v1020 = vpop.permute.xlu0 %1019
      %v1021 = vsel %vm906, %v1018, %v1020
      %v1022 = vsel %vm906, %v1020, %v1018
      %v1023 = vmul.f32 %v117, %v1022
      %v1024 = vmul.f32 %v118, %v1021
      %v1025 = vadd.f32 %v1015, %v1023
      %v1026 = vadd.f32 %v1016, %v1024
      %1027 = vrot.lane.b32.xlu0 %v993, 1
      %v1028 = vpop.permute.xlu0 %1027
      %1029 = vrot.lane.b32.xlu0 %v994, 1
      %v1030 = vpop.permute.xlu0 %1029
      %v1031 = vsel %vm917, %v1028, %v1030
      %v1032 = vsel %vm917, %v1030, %v1028
      %v1033 = vmul.f32 %v136, %v1032
      %v1034 = vmul.f32 %v137, %v1031
      %v1035 = vadd.f32 %v1025, %v1033
      %v1036 = vadd.f32 %v1026, %v1034
      %1037 = vrot.lane.b32.xlu0 %v993, 127
      %v1038 = vpop.permute.xlu0 %1037
      %1039 = vrot.lane.b32.xlu0 %v994, 127
      %v1040 = vpop.permute.xlu0 %1039
      %v1041 = vsel %vm928, %v1038, %v1040
      %v1042 = vsel %vm928, %v1040, %v1038
      %v1043 = vmul.f32 %v174, %v1041
      %v1044 = vmul.f32 %v175, %v1042
      %v1045 = vadd.f32 %v1035, %v1043
      %v1046 = vadd.f32 %v1036, %v1044
      %1047 = vrot.lane.b32.xlu0 %v993, 113
      %v1048 = vpop.permute.xlu0 %1047
      %1049 = vrot.lane.b32.xlu0 %v994, 113
      %v1050 = vpop.permute.xlu0 %1049
      %v1051 = vsel %vm939, %v1048, %v1050
      %v1052 = vsel %vm939, %v1050, %v1048
      %v1053 = vmul.f32 %v193, %v1051
      %v1054 = vmul.f32 %v194, %v1052
      %v1055 = vadd.f32 %v1045, %v1053
      %v1056 = vadd.f32 %v1046, %v1054
      %1057 = vrot.lane.b32.xlu0 %v993, 112
      %v1058 = vpop.permute.xlu0 %1057
      %1059 = vrot.lane.b32.xlu0 %v994, 112
      %v1060 = vpop.permute.xlu0 %1059
      %v1061 = vsel %vm950, %v1058, %v1060
      %v1062 = vsel %vm950, %v1060, %v1058
      %v1063 = vmul.f32 %v212, %v1061
      %v1064 = vmul.f32 %v213, %v1062
      %v1065 = vadd.f32 %v1055, %v1063
      %v1066 = vadd.f32 %v1056, %v1064
      %1067 = vrot.lane.b32.xlu0 %v993, 111
      %v1068 = vpop.permute.xlu0 %1067
      %1069 = vrot.lane.b32.xlu0 %v994, 111
      %v1070 = vpop.permute.xlu0 %1069
      %v1071 = vsel %vm961, %v1068, %v1070
      %v1072 = vsel %vm961, %v1070, %v1068
      %v1073 = vmul.f32 %v231, %v1071
      %v1074 = vmul.f32 %v232, %v1072
      %v1075 = vadd.f32 %v1065, %v1073
      %v1076 = vadd.f32 %v1066, %v1074
      %v1079 = vcombine.low %v1075, %v1076
      %v1081 = vunpack.c.l.s4 1983009808
      %v1082 = vunpack.c.0.s8 %v1081
      %v1083 = vlaneseq
      %v1084 = vshrl.u32 %v1083, 7
      %v1085 = vsub.s32 %v1082, %v1084
      %v1086 = vrot.slane %v1079, %v1085
      %v1088 = vsub.f32 %v53, %v1086
      %v1091 = vunpack.c.l.s4 1983009808
      %v1092 = vunpack.c.0.s8 %v1091
      %v1093 = vlaneseq
      %v1094 = vshrl.u32 %v1093, 7
      %v1095 = vsub.s32 %v1092, %v1094
      %v1096 = vrot.slane %v1088, %v1095
      %v1097 = vcombine.high %v1096, %v1096
      %v1100 = vmul.f32 %v60, %v1096
      %v1101 = vmul.f32 %v60, %v1097
      %v1102 = vadd.f32 %v993, %v1100
      %v1103 = vadd.f32 %v994, %v1101
      %v1104 = vmul.f32 %v155, %v1102
      %v1105 = vmul.f32 %v156, %v1103
      %1106 = vrot.lane.b32.xlu0 %v1102, 17
      %v1107 = vpop.permute.xlu0 %1106
      %1108 = vrot.lane.b32.xlu0 %v1103, 17
      %v1109 = vpop.permute.xlu0 %1108
      %v1110 = vsel %vm884, %v1107, %v1109
      %v1111 = vsel %vm884, %v1109, %v1107
      %v1112 = vmul.f32 %v79, %v1111
      %v1113 = vmul.f32 %v80, %v1110
      %v1114 = vadd.f32 %v1104, %v1112
      %v1115 = vadd.f32 %v1105, %v1113
      %1116 = vrot.lane.b32.xlu0 %v1102, 16
      %v1117 = vpop.permute.xlu0 %1116
      %1118 = vrot.lane.b32.xlu0 %v1103, 16
      %v1119 = vpop.permute.xlu0 %1118
      %v1120 = vsel %vm895, %v1117, %v1119
      %v1121 = vsel %vm895, %v1119, %v1117
      %v1122 = vmul.f32 %v98, %v1121
      %v1123 = vmul.f32 %v99, %v1120
      %v1124 = vadd.f32 %v1114, %v1122
      %v1125 = vadd.f32 %v1115, %v1123
      %1126 = vrot.lane.b32.xlu0 %v1102, 15
      %v1127 = vpop.permute.xlu0 %1126
      %1128 = vrot.lane.b32.xlu0 %v1103, 15
      %v1129 = vpop.permute.xlu0 %1128
      %v1130 = vsel %vm906, %v1127, %v1129
      %v1131 = vsel %vm906, %v1129, %v1127
      %v1132 = vmul.f32 %v117, %v1131
      %v1133 = vmul.f32 %v118, %v1130
      %v1134 = vadd.f32 %v1124, %v1132
      %v1135 = vadd.f32 %v1125, %v1133
      %1136 = vrot.lane.b32.xlu0 %v1102, 1
      %v1137 = vpop.permute.xlu0 %1136
      %1138 = vrot.lane.b32.xlu0 %v1103, 1
      %v1139 = vpop.permute.xlu0 %1138
      %v1140 = vsel %vm917, %v1137, %v1139
      %v1141 = vsel %vm917, %v1139, %v1137
      %v1142 = vmul.f32 %v136, %v1141
      %v1143 = vmul.f32 %v137, %v1140
      %v1144 = vadd.f32 %v1134, %v1142
      %v1145 = vadd.f32 %v1135, %v1143
      %1146 = vrot.lane.b32.xlu0 %v1102, 127
      %v1147 = vpop.permute.xlu0 %1146
      %1148 = vrot.lane.b32.xlu0 %v1103, 127
      %v1149 = vpop.permute.xlu0 %1148
      %v1150 = vsel %vm928, %v1147, %v1149
      %v1151 = vsel %vm928, %v1149, %v1147
      %v1152 = vmul.f32 %v174, %v1150
      %v1153 = vmul.f32 %v175, %v1151
      %v1154 = vadd.f32 %v1144, %v1152
      %v1155 = vadd.f32 %v1145, %v1153
      %1156 = vrot.lane.b32.xlu0 %v1102, 113
      %v1157 = vpop.permute.xlu0 %1156
      %1158 = vrot.lane.b32.xlu0 %v1103, 113
      %v1159 = vpop.permute.xlu0 %1158
      %v1160 = vsel %vm939, %v1157, %v1159
      %v1161 = vsel %vm939, %v1159, %v1157
      %v1162 = vmul.f32 %v193, %v1160
      %v1163 = vmul.f32 %v194, %v1161
      %v1164 = vadd.f32 %v1154, %v1162
      %v1165 = vadd.f32 %v1155, %v1163
      %1166 = vrot.lane.b32.xlu0 %v1102, 112
      %v1167 = vpop.permute.xlu0 %1166
      %1168 = vrot.lane.b32.xlu0 %v1103, 112
      %v1169 = vpop.permute.xlu0 %1168
      %v1170 = vsel %vm950, %v1167, %v1169
      %v1171 = vsel %vm950, %v1169, %v1167
      %v1172 = vmul.f32 %v212, %v1170
      %v1173 = vmul.f32 %v213, %v1171
      %v1174 = vadd.f32 %v1164, %v1172
      %v1175 = vadd.f32 %v1165, %v1173
      %1176 = vrot.lane.b32.xlu0 %v1102, 111
      %v1177 = vpop.permute.xlu0 %1176
      %1178 = vrot.lane.b32.xlu0 %v1103, 111
      %v1179 = vpop.permute.xlu0 %1178
      %v1180 = vsel %vm961, %v1177, %v1179
      %v1181 = vsel %vm961, %v1179, %v1177
      %v1182 = vmul.f32 %v231, %v1180
      %v1183 = vmul.f32 %v232, %v1181
      %v1184 = vadd.f32 %v1174, %v1182
      %v1185 = vadd.f32 %v1175, %v1183
      %v1188 = vcombine.low %v1184, %v1185
      %v1190 = vunpack.c.l.s4 1983009808
      %v1191 = vunpack.c.0.s8 %v1190
      %v1192 = vlaneseq
      %v1193 = vshrl.u32 %v1192, 7
      %v1194 = vsub.s32 %v1191, %v1193
      %v1195 = vrot.slane %v1188, %v1194
      %v1197 = vsub.f32 %v53, %v1195
      %v1200 = vunpack.c.l.s4 1983009808
      %v1201 = vunpack.c.0.s8 %v1200
      %v1202 = vlaneseq
      %v1203 = vshrl.u32 %v1202, 7
      %v1204 = vsub.s32 %v1201, %v1203
      %v1205 = vrot.slane %v1197, %v1204
      %v1206 = vcombine.high %v1205, %v1205
      %v1209 = vmul.f32 %v60, %v1205
      %v1210 = vmul.f32 %v60, %v1206
      %v1211 = vadd.f32 %v1102, %v1209
      %v1212 = vadd.f32 %v1103, %v1210
      %v1213 = vmul.f32 %v155, %v1211
      %v1214 = vmul.f32 %v156, %v1212
      %1215 = vrot.lane.b32.xlu0 %v1211, 17
      %v1216 = vpop.permute.xlu0 %1215
      %1217 = vrot.lane.b32.xlu0 %v1212, 17
      %v1218 = vpop.permute.xlu0 %1217
      %v1219 = vsel %vm884, %v1216, %v1218
      %v1220 = vsel %vm884, %v1218, %v1216
      %v1221 = vmul.f32 %v79, %v1220
      %v1222 = vmul.f32 %v80, %v1219
      %v1223 = vadd.f32 %v1213, %v1221
      %v1224 = vadd.f32 %v1214, %v1222
      %1225 = vrot.lane.b32.xlu0 %v1211, 16
      %v1226 = vpop.permute.xlu0 %1225
      %1227 = vrot.lane.b32.xlu0 %v1212, 16
      %v1228 = vpop.permute.xlu0 %1227
      %v1229 = vsel %vm895, %v1226, %v1228
      %v1230 = vsel %vm895, %v1228, %v1226
      %v1231 = vmul.f32 %v98, %v1230
      %v1232 = vmul.f32 %v99, %v1229
      %v1233 = vadd.f32 %v1223, %v1231
      %v1234 = vadd.f32 %v1224, %v1232
      %1235 = vrot.lane.b32.xlu0 %v1211, 15
      %v1236 = vpop.permute.xlu0 %1235
      %1237 = vrot.lane.b32.xlu0 %v1212, 15
      %v1238 = vpop.permute.xlu0 %1237
      %v1239 = vsel %vm906, %v1236, %v1238
      %v1240 = vsel %vm906, %v1238, %v1236
      %v1241 = vmul.f32 %v117, %v1240
      %v1242 = vmul.f32 %v118, %v1239
      %v1243 = vadd.f32 %v1233, %v1241
      %v1244 = vadd.f32 %v1234, %v1242
      %1245 = vrot.lane.b32.xlu0 %v1211, 1
      %v1246 = vpop.permute.xlu0 %1245
      %1247 = vrot.lane.b32.xlu0 %v1212, 1
      %v1248 = vpop.permute.xlu0 %1247
      %v1249 = vsel %vm917, %v1246, %v1248
      %v1250 = vsel %vm917, %v1248, %v1246
      %v1251 = vmul.f32 %v136, %v1250
      %v1252 = vmul.f32 %v137, %v1249
      %v1253 = vadd.f32 %v1243, %v1251
      %v1254 = vadd.f32 %v1244, %v1252
      %1255 = vrot.lane.b32.xlu0 %v1211, 127
      %v1256 = vpop.permute.xlu0 %1255
      %1257 = vrot.lane.b32.xlu0 %v1212, 127
      %v1258 = vpop.permute.xlu0 %1257
      %v1259 = vsel %vm928, %v1256, %v1258
      %v1260 = vsel %vm928, %v1258, %v1256
      %v1261 = vmul.f32 %v174, %v1259
      %v1262 = vmul.f32 %v175, %v1260
      %v1263 = vadd.f32 %v1253, %v1261
      %v1264 = vadd.f32 %v1254, %v1262
      %1265 = vrot.lane.b32.xlu0 %v1211, 113
      %v1266 = vpop.permute.xlu0 %1265
      %1267 = vrot.lane.b32.xlu0 %v1212, 113
      %v1268 = vpop.permute.xlu0 %1267
      %v1269 = vsel %vm939, %v1266, %v1268
      %v1270 = vsel %vm939, %v1268, %v1266
      %v1271 = vmul.f32 %v193, %v1269
      %v1272 = vmul.f32 %v194, %v1270
      %v1273 = vadd.f32 %v1263, %v1271
      %v1274 = vadd.f32 %v1264, %v1272
      %1275 = vrot.lane.b32.xlu0 %v1211, 112
      %v1276 = vpop.permute.xlu0 %1275
      %1277 = vrot.lane.b32.xlu0 %v1212, 112
      %v1278 = vpop.permute.xlu0 %1277
      %v1279 = vsel %vm950, %v1276, %v1278
      %v1280 = vsel %vm950, %v1278, %v1276
      %v1281 = vmul.f32 %v212, %v1279
      %v1282 = vmul.f32 %v213, %v1280
      %v1283 = vadd.f32 %v1273, %v1281
      %v1284 = vadd.f32 %v1274, %v1282
      %1285 = vrot.lane.b32.xlu0 %v1211, 111
      %v1286 = vpop.permute.xlu0 %1285
      %1287 = vrot.lane.b32.xlu0 %v1212, 111
      %v1288 = vpop.permute.xlu0 %1287
      %v1289 = vsel %vm961, %v1286, %v1288
      %v1290 = vsel %vm961, %v1288, %v1286
      %v1291 = vmul.f32 %v231, %v1289
      %v1292 = vmul.f32 %v232, %v1290
      %v1293 = vadd.f32 %v1283, %v1291
      %v1294 = vadd.f32 %v1284, %v1292
      %v1297 = vcombine.low %v1293, %v1294
      %v1299 = vunpack.c.l.s4 1983009808
      %v1300 = vunpack.c.0.s8 %v1299
      %v1301 = vlaneseq
      %v1302 = vshrl.u32 %v1301, 7
      %v1303 = vsub.s32 %v1300, %v1302
      %v1304 = vrot.slane %v1297, %v1303
      %v1306 = vsub.f32 %v53, %v1304
      %v1309 = vunpack.c.l.s4 1983009808
      %v1310 = vunpack.c.0.s8 %v1309
      %v1311 = vlaneseq
      %v1312 = vshrl.u32 %v1311, 7
      %v1313 = vsub.s32 %v1310, %v1312
      %v1314 = vrot.slane %v1306, %v1313
      %v1315 = vcombine.high %v1314, %v1314
      %v1318 = vmul.f32 %v60, %v1314
      %v1319 = vmul.f32 %v60, %v1315
      %v1320 = vadd.f32 %v1211, %v1318
      %v1321 = vadd.f32 %v1212, %v1319
      %v1322 = vmul.f32 %v155, %v1320
      %v1323 = vmul.f32 %v156, %v1321
      %1324 = vrot.lane.b32.xlu0 %v1320, 17
      %v1325 = vpop.permute.xlu0 %1324
      %1326 = vrot.lane.b32.xlu0 %v1321, 17
      %v1327 = vpop.permute.xlu0 %1326
      %v1328 = vsel %vm884, %v1325, %v1327
      %v1329 = vsel %vm884, %v1327, %v1325
      %v1330 = vmul.f32 %v79, %v1329
      %v1331 = vmul.f32 %v80, %v1328
      %v1332 = vadd.f32 %v1322, %v1330
      %v1333 = vadd.f32 %v1323, %v1331
      %1334 = vrot.lane.b32.xlu0 %v1320, 16
      %v1335 = vpop.permute.xlu0 %1334
      %1336 = vrot.lane.b32.xlu0 %v1321, 16
      %v1337 = vpop.permute.xlu0 %1336
      %v1338 = vsel %vm895, %v1335, %v1337
      %v1339 = vsel %vm895, %v1337, %v1335
      %v1340 = vmul.f32 %v98, %v1339
      %v1341 = vmul.f32 %v99, %v1338
      %v1342 = vadd.f32 %v1332, %v1340
      %v1343 = vadd.f32 %v1333, %v1341
      %1344 = vrot.lane.b32.xlu0 %v1320, 15
      %v1345 = vpop.permute.xlu0 %1344
      %1346 = vrot.lane.b32.xlu0 %v1321, 15
      %v1347 = vpop.permute.xlu0 %1346
      %v1348 = vsel %vm906, %v1345, %v1347
      %v1349 = vsel %vm906, %v1347, %v1345
      %v1350 = vmul.f32 %v117, %v1349
      %v1351 = vmul.f32 %v118, %v1348
      %v1352 = vadd.f32 %v1342, %v1350
      %v1353 = vadd.f32 %v1343, %v1351
      %1354 = vrot.lane.b32.xlu0 %v1320, 1
      %v1355 = vpop.permute.xlu0 %1354
      %1356 = vrot.lane.b32.xlu0 %v1321, 1
      %v1357 = vpop.permute.xlu0 %1356
      %v1358 = vsel %vm917, %v1355, %v1357
      %v1359 = vsel %vm917, %v1357, %v1355
      %v1360 = vmul.f32 %v136, %v1359
      %v1361 = vmul.f32 %v137, %v1358
      %v1362 = vadd.f32 %v1352, %v1360
      %v1363 = vadd.f32 %v1353, %v1361
      %1364 = vrot.lane.b32.xlu0 %v1320, 127
      %v1365 = vpop.permute.xlu0 %1364
      %1366 = vrot.lane.b32.xlu0 %v1321, 127
      %v1367 = vpop.permute.xlu0 %1366
      %v1368 = vsel %vm928, %v1365, %v1367
      %v1369 = vsel %vm928, %v1367, %v1365
      %v1370 = vmul.f32 %v174, %v1368
      %v1371 = vmul.f32 %v175, %v1369
      %v1372 = vadd.f32 %v1362, %v1370
      %v1373 = vadd.f32 %v1363, %v1371
      %1374 = vrot.lane.b32.xlu0 %v1320, 113
      %v1375 = vpop.permute.xlu0 %1374
      %1376 = vrot.lane.b32.xlu0 %v1321, 113
      %v1377 = vpop.permute.xlu0 %1376
      %v1378 = vsel %vm939, %v1375, %v1377
      %v1379 = vsel %vm939, %v1377, %v1375
      %v1380 = vmul.f32 %v193, %v1378
      %v1381 = vmul.f32 %v194, %v1379
      %v1382 = vadd.f32 %v1372, %v1380
      %v1383 = vadd.f32 %v1373, %v1381
      %1384 = vrot.lane.b32.xlu0 %v1320, 112
      %v1385 = vpop.permute.xlu0 %1384
      %1386 = vrot.lane.b32.xlu0 %v1321, 112
      %v1387 = vpop.permute.xlu0 %1386
      %v1388 = vsel %vm950, %v1385, %v1387
      %v1389 = vsel %vm950, %v1387, %v1385
      %v1390 = vmul.f32 %v212, %v1388
      %v1391 = vmul.f32 %v213, %v1389
      %v1392 = vadd.f32 %v1382, %v1390
      %v1393 = vadd.f32 %v1383, %v1391
      %1394 = vrot.lane.b32.xlu0 %v1320, 111
      %v1395 = vpop.permute.xlu0 %1394
      %1396 = vrot.lane.b32.xlu0 %v1321, 111
      %v1397 = vpop.permute.xlu0 %1396
      %v1398 = vsel %vm961, %v1395, %v1397
      %v1399 = vsel %vm961, %v1397, %v1395
      %v1400 = vmul.f32 %v231, %v1398
      %v1401 = vmul.f32 %v232, %v1399
      %v1402 = vadd.f32 %v1392, %v1400
      %v1403 = vadd.f32 %v1393, %v1401
      %v1406 = vcombine.low %v1402, %v1403
      %v1408 = vunpack.c.l.s4 1983009808
      %v1409 = vunpack.c.0.s8 %v1408
      %v1410 = vlaneseq
      %v1411 = vshrl.u32 %v1410, 7
      %v1412 = vsub.s32 %v1409, %v1411
      %v1413 = vrot.slane %v1406, %v1412
      %v1415 = vsub.f32 %v53, %v1413
      %v1418 = vunpack.c.l.s4 1983009808
      %v1419 = vunpack.c.0.s8 %v1418
      %v1420 = vlaneseq
      %v1421 = vshrl.u32 %v1420, 7
      %v1422 = vsub.s32 %v1419, %v1421
      %v1423 = vrot.slane %v1415, %v1422
      %v1424 = vcombine.high %v1423, %v1423
      %v1427 = vmul.f32 %v60, %v1423
      %v1428 = vmul.f32 %v60, %v1424
      %v1429 = vadd.f32 %v1320, %v1427
      %v1430 = vadd.f32 %v1321, %v1428
      %v1431 = vmul.f32 %v155, %v1429
      %v1432 = vmul.f32 %v156, %v1430
      %1433 = vrot.lane.b32.xlu0 %v1429, 17
      %v1434 = vpop.permute.xlu0 %1433
      %1435 = vrot.lane.b32.xlu0 %v1430, 17
      %v1436 = vpop.permute.xlu0 %1435
      %v1437 = vsel %vm884, %v1434, %v1436
      %v1438 = vsel %vm884, %v1436, %v1434
      %v1439 = vmul.f32 %v79, %v1438
      %v1440 = vmul.f32 %v80, %v1437
      %v1441 = vadd.f32 %v1431, %v1439
      %v1442 = vadd.f32 %v1432, %v1440
      %1443 = vrot.lane.b32.xlu0 %v1429, 16
      %v1444 = vpop.permute.xlu0 %1443
      %1445 = vrot.lane.b32.xlu0 %v1430, 16
      %v1446 = vpop.permute.xlu0 %1445
      %v1447 = vsel %vm895, %v1444, %v1446
      %v1448 = vsel %vm895, %v1446, %v1444
      %v1449 = vmul.f32 %v98, %v1448
      %v1450 = vmul.f32 %v99, %v1447
      %v1451 = vadd.f32 %v1441, %v1449
      %v1452 = vadd.f32 %v1442, %v1450
      %1453 = vrot.lane.b32.xlu0 %v1429, 15
      %v1454 = vpop.permute.xlu0 %1453
      %1455 = vrot.lane.b32.xlu0 %v1430, 15
      %v1456 = vpop.permute.xlu0 %1455
      %v1457 = vsel %vm906, %v1454, %v1456
      %v1458 = vsel %vm906, %v1456, %v1454
      %v1459 = vmul.f32 %v117, %v1458
      %v1460 = vmul.f32 %v118, %v1457
      %v1461 = vadd.f32 %v1451, %v1459
      %v1462 = vadd.f32 %v1452, %v1460
      %1463 = vrot.lane.b32.xlu0 %v1429, 1
      %v1464 = vpop.permute.xlu0 %1463
      %1465 = vrot.lane.b32.xlu0 %v1430, 1
      %v1466 = vpop.permute.xlu0 %1465
      %v1467 = vsel %vm917, %v1464, %v1466
      %v1468 = vsel %vm917, %v1466, %v1464
      %v1469 = vmul.f32 %v136, %v1468
      %v1470 = vmul.f32 %v137, %v1467
      %v1471 = vadd.f32 %v1461, %v1469
      %v1472 = vadd.f32 %v1462, %v1470
      %1473 = vrot.lane.b32.xlu0 %v1429, 127
      %v1474 = vpop.permute.xlu0 %1473
      %1475 = vrot.lane.b32.xlu0 %v1430, 127
      %v1476 = vpop.permute.xlu0 %1475
      %v1477 = vsel %vm928, %v1474, %v1476
      %v1478 = vsel %vm928, %v1476, %v1474
      %v1479 = vmul.f32 %v174, %v1477
      %v1480 = vmul.f32 %v175, %v1478
      %v1481 = vadd.f32 %v1471, %v1479
      %v1482 = vadd.f32 %v1472, %v1480
      %1483 = vrot.lane.b32.xlu0 %v1429, 113
      %v1484 = vpop.permute.xlu0 %1483
      %1485 = vrot.lane.b32.xlu0 %v1430, 113
      %v1486 = vpop.permute.xlu0 %1485
      %v1487 = vsel %vm939, %v1484, %v1486
      %v1488 = vsel %vm939, %v1486, %v1484
      %v1489 = vmul.f32 %v193, %v1487
      %v1490 = vmul.f32 %v194, %v1488
      %v1491 = vadd.f32 %v1481, %v1489
      %v1492 = vadd.f32 %v1482, %v1490
      %1493 = vrot.lane.b32.xlu0 %v1429, 112
      %v1494 = vpop.permute.xlu0 %1493
      %1495 = vrot.lane.b32.xlu0 %v1430, 112
      %v1496 = vpop.permute.xlu0 %1495
      %v1497 = vsel %vm950, %v1494, %v1496
      %v1498 = vsel %vm950, %v1496, %v1494
      %v1499 = vmul.f32 %v212, %v1497
      %v1500 = vmul.f32 %v213, %v1498
      %v1501 = vadd.f32 %v1491, %v1499
      %v1502 = vadd.f32 %v1492, %v1500
      %1503 = vrot.lane.b32.xlu0 %v1429, 111
      %v1504 = vpop.permute.xlu0 %1503
      %1505 = vrot.lane.b32.xlu0 %v1430, 111
      %v1506 = vpop.permute.xlu0 %1505
      %v1507 = vsel %vm961, %v1504, %v1506
      %v1508 = vsel %vm961, %v1506, %v1504
      %v1509 = vmul.f32 %v231, %v1507
      %v1510 = vmul.f32 %v232, %v1508
      %v1511 = vadd.f32 %v1501, %v1509
      %v1512 = vadd.f32 %v1502, %v1510
      %v1515 = vcombine.low %v1511, %v1512
      %v1517 = vunpack.c.l.s4 1983009808
      %v1518 = vunpack.c.0.s8 %v1517
      %v1519 = vlaneseq
      %v1520 = vshrl.u32 %v1519, 7
      %v1521 = vsub.s32 %v1518, %v1520
      %v1522 = vrot.slane %v1515, %v1521
      %v1524 = vsub.f32 %v53, %v1522
      %v1527 = vunpack.c.l.s4 1983009808
      %v1528 = vunpack.c.0.s8 %v1527
      %v1529 = vlaneseq
      %v1530 = vshrl.u32 %v1529, 7
      %v1531 = vsub.s32 %v1528, %v1530
      %v1532 = vrot.slane %v1524, %v1531
      %v1533 = vcombine.high %v1532, %v1532
      %v1536 = vmul.f32 %v60, %v1532
      %v1537 = vmul.f32 %v60, %v1533
      %v1538 = vadd.f32 %v1429, %v1536
      %v1539 = vadd.f32 %v1430, %v1537
      %v1540 = vmul.f32 %v155, %v1538
      %v1541 = vmul.f32 %v156, %v1539
      %1542 = vrot.lane.b32.xlu0 %v1538, 17
      %v1543 = vpop.permute.xlu0 %1542
      %1544 = vrot.lane.b32.xlu0 %v1539, 17
      %v1545 = vpop.permute.xlu0 %1544
      %v1546 = vsel %vm884, %v1543, %v1545
      %v1547 = vsel %vm884, %v1545, %v1543
      %v1548 = vmul.f32 %v79, %v1547
      %v1549 = vmul.f32 %v80, %v1546
      %v1550 = vadd.f32 %v1540, %v1548
      %v1551 = vadd.f32 %v1541, %v1549
      %1552 = vrot.lane.b32.xlu0 %v1538, 16
      %v1553 = vpop.permute.xlu0 %1552
      %1554 = vrot.lane.b32.xlu0 %v1539, 16
      %v1555 = vpop.permute.xlu0 %1554
      %v1556 = vsel %vm895, %v1553, %v1555
      %v1557 = vsel %vm895, %v1555, %v1553
      %v1558 = vmul.f32 %v98, %v1557
      %v1559 = vmul.f32 %v99, %v1556
      %v1560 = vadd.f32 %v1550, %v1558
      %v1561 = vadd.f32 %v1551, %v1559
      %1562 = vrot.lane.b32.xlu0 %v1538, 15
      %v1563 = vpop.permute.xlu0 %1562
      %1564 = vrot.lane.b32.xlu0 %v1539, 15
      %v1565 = vpop.permute.xlu0 %1564
      %v1566 = vsel %vm906, %v1563, %v1565
      %v1567 = vsel %vm906, %v1565, %v1563
      %v1568 = vmul.f32 %v117, %v1567
      %v1569 = vmul.f32 %v118, %v1566
      %v1570 = vadd.f32 %v1560, %v1568
      %v1571 = vadd.f32 %v1561, %v1569
      %1572 = vrot.lane.b32.xlu0 %v1538, 1
      %v1573 = vpop.permute.xlu0 %1572
      %1574 = vrot.lane.b32.xlu0 %v1539, 1
      %v1575 = vpop.permute.xlu0 %1574
      %v1576 = vsel %vm917, %v1573, %v1575
      %v1577 = vsel %vm917, %v1575, %v1573
      %v1578 = vmul.f32 %v136, %v1577
      %v1579 = vmul.f32 %v137, %v1576
      %v1580 = vadd.f32 %v1570, %v1578
      %v1581 = vadd.f32 %v1571, %v1579
      %1582 = vrot.lane.b32.xlu0 %v1538, 127
      %v1583 = vpop.permute.xlu0 %1582
      %1584 = vrot.lane.b32.xlu0 %v1539, 127
      %v1585 = vpop.permute.xlu0 %1584
      %v1586 = vsel %vm928, %v1583, %v1585
      %v1587 = vsel %vm928, %v1585, %v1583
      %v1588 = vmul.f32 %v174, %v1586
      %v1589 = vmul.f32 %v175, %v1587
      %v1590 = vadd.f32 %v1580, %v1588
      %v1591 = vadd.f32 %v1581, %v1589
      %1592 = vrot.lane.b32.xlu0 %v1538, 113
      %v1593 = vpop.permute.xlu0 %1592
      %1594 = vrot.lane.b32.xlu0 %v1539, 113
      %v1595 = vpop.permute.xlu0 %1594
      %v1596 = vsel %vm939, %v1593, %v1595
      %v1597 = vsel %vm939, %v1595, %v1593
      %v1598 = vmul.f32 %v193, %v1596
      %v1599 = vmul.f32 %v194, %v1597
      %v1600 = vadd.f32 %v1590, %v1598
      %v1601 = vadd.f32 %v1591, %v1599
      %1602 = vrot.lane.b32.xlu0 %v1538, 112
      %v1603 = vpop.permute.xlu0 %1602
      %1604 = vrot.lane.b32.xlu0 %v1539, 112
      %v1605 = vpop.permute.xlu0 %1604
      %v1606 = vsel %vm950, %v1603, %v1605
      %v1607 = vsel %vm950, %v1605, %v1603
      %v1608 = vmul.f32 %v212, %v1606
      %v1609 = vmul.f32 %v213, %v1607
      %v1610 = vadd.f32 %v1600, %v1608
      %v1611 = vadd.f32 %v1601, %v1609
      %1612 = vrot.lane.b32.xlu0 %v1538, 111
      %v1613 = vpop.permute.xlu0 %1612
      %1614 = vrot.lane.b32.xlu0 %v1539, 111
      %v1615 = vpop.permute.xlu0 %1614
      %v1616 = vsel %vm961, %v1613, %v1615
      %v1617 = vsel %vm961, %v1615, %v1613
      %v1618 = vmul.f32 %v231, %v1616
      %v1619 = vmul.f32 %v232, %v1617
      %v1620 = vadd.f32 %v1610, %v1618
      %v1621 = vadd.f32 %v1611, %v1619
      %v1624 = vcombine.low %v1620, %v1621
      %v1626 = vunpack.c.l.s4 1983009808
      %v1627 = vunpack.c.0.s8 %v1626
      %v1628 = vlaneseq
      %v1629 = vshrl.u32 %v1628, 7
      %v1630 = vsub.s32 %v1627, %v1629
      %v1631 = vrot.slane %v1624, %v1630
      %v1633 = vsub.f32 %v53, %v1631
      %v1636 = vunpack.c.l.s4 1983009808
      %v1637 = vunpack.c.0.s8 %v1636
      %v1638 = vlaneseq
      %v1639 = vshrl.u32 %v1638, 7
      %v1640 = vsub.s32 %v1637, %v1639
      %v1641 = vrot.slane %v1633, %v1640
      %v1642 = vcombine.high %v1641, %v1641
      %v1645 = vmul.f32 %v60, %v1641
      %v1646 = vmul.f32 %v60, %v1642
      %v1647 = vadd.f32 %v1538, %v1645
      %v1648 = vadd.f32 %v1539, %v1646
      %v1649 = vmul.f32 %v155, %v1647
      %v1650 = vmul.f32 %v156, %v1648
      %1651 = vrot.lane.b32.xlu0 %v1647, 17
      %v1652 = vpop.permute.xlu0 %1651
      %1653 = vrot.lane.b32.xlu0 %v1648, 17
      %v1654 = vpop.permute.xlu0 %1653
      %v1655 = vsel %vm884, %v1652, %v1654
      %v1656 = vsel %vm884, %v1654, %v1652
      %v1657 = vmul.f32 %v79, %v1656
      %v1658 = vmul.f32 %v80, %v1655
      %v1659 = vadd.f32 %v1649, %v1657
      %v1660 = vadd.f32 %v1650, %v1658
      %1661 = vrot.lane.b32.xlu0 %v1647, 16
      %v1662 = vpop.permute.xlu0 %1661
      %1663 = vrot.lane.b32.xlu0 %v1648, 16
      %v1664 = vpop.permute.xlu0 %1663
      %v1665 = vsel %vm895, %v1662, %v1664
      %v1666 = vsel %vm895, %v1664, %v1662
      %v1667 = vmul.f32 %v98, %v1666
      %v1668 = vmul.f32 %v99, %v1665
      %v1669 = vadd.f32 %v1659, %v1667
      %v1670 = vadd.f32 %v1660, %v1668
      %1671 = vrot.lane.b32.xlu0 %v1647, 15
      %v1672 = vpop.permute.xlu0 %1671
      %1673 = vrot.lane.b32.xlu0 %v1648, 15
      %v1674 = vpop.permute.xlu0 %1673
      %v1675 = vsel %vm906, %v1672, %v1674
      %v1676 = vsel %vm906, %v1674, %v1672
      %v1677 = vmul.f32 %v117, %v1676
      %v1678 = vmul.f32 %v118, %v1675
      %v1679 = vadd.f32 %v1669, %v1677
      %v1680 = vadd.f32 %v1670, %v1678
      %1681 = vrot.lane.b32.xlu0 %v1647, 1
      %v1682 = vpop.permute.xlu0 %1681
      %1683 = vrot.lane.b32.xlu0 %v1648, 1
      %v1684 = vpop.permute.xlu0 %1683
      %v1685 = vsel %vm917, %v1682, %v1684
      %v1686 = vsel %vm917, %v1684, %v1682
      %v1687 = vmul.f32 %v136, %v1686
      %v1688 = vmul.f32 %v137, %v1685
      %v1689 = vadd.f32 %v1679, %v1687
      %v1690 = vadd.f32 %v1680, %v1688
      %1691 = vrot.lane.b32.xlu0 %v1647, 127
      %v1692 = vpop.permute.xlu0 %1691
      %1693 = vrot.lane.b32.xlu0 %v1648, 127
      %v1694 = vpop.permute.xlu0 %1693
      %v1695 = vsel %vm928, %v1692, %v1694
      %v1696 = vsel %vm928, %v1694, %v1692
      %v1697 = vmul.f32 %v174, %v1695
      %v1698 = vmul.f32 %v175, %v1696
      %v1699 = vadd.f32 %v1689, %v1697
      %v1700 = vadd.f32 %v1690, %v1698
      %1701 = vrot.lane.b32.xlu0 %v1647, 113
      %v1702 = vpop.permute.xlu0 %1701
      %1703 = vrot.lane.b32.xlu0 %v1648, 113
      %v1704 = vpop.permute.xlu0 %1703
      %v1705 = vsel %vm939, %v1702, %v1704
      %v1706 = vsel %vm939, %v1704, %v1702
      %v1707 = vmul.f32 %v193, %v1705
      %v1708 = vmul.f32 %v194, %v1706
      %v1709 = vadd.f32 %v1699, %v1707
      %v1710 = vadd.f32 %v1700, %v1708
      %1711 = vrot.lane.b32.xlu0 %v1647, 112
      %v1712 = vpop.permute.xlu0 %1711
      %1713 = vrot.lane.b32.xlu0 %v1648, 112
      %v1714 = vpop.permute.xlu0 %1713
      %v1715 = vsel %vm950, %v1712, %v1714
      %v1716 = vsel %vm950, %v1714, %v1712
      %v1717 = vmul.f32 %v212, %v1715
      %v1718 = vmul.f32 %v213, %v1716
      %v1719 = vadd.f32 %v1709, %v1717
      %v1720 = vadd.f32 %v1710, %v1718
      %1721 = vrot.lane.b32.xlu0 %v1647, 111
      %v1722 = vpop.permute.xlu0 %1721
      %1723 = vrot.lane.b32.xlu0 %v1648, 111
      %v1724 = vpop.permute.xlu0 %1723
      %v1725 = vsel %vm961, %v1722, %v1724
      %v1726 = vsel %vm961, %v1724, %v1722
      %v1727 = vmul.f32 %v231, %v1725
      %v1728 = vmul.f32 %v232, %v1726
      %v1729 = vadd.f32 %v1719, %v1727
      %v1730 = vadd.f32 %v1720, %v1728
      %v1733 = vcombine.low %v1729, %v1730
      %v1735 = vunpack.c.l.s4 1983009808
      %v1736 = vunpack.c.0.s8 %v1735
      %v1737 = vlaneseq
      %v1738 = vshrl.u32 %v1737, 7
      %v1739 = vsub.s32 %v1736, %v1738
      %v1740 = vrot.slane %v1733, %v1739
      %v1742 = vsub.f32 %v53, %v1740
      %v1745 = vunpack.c.l.s4 1983009808
      %v1746 = vunpack.c.0.s8 %v1745
      %v1747 = vlaneseq
      %v1748 = vshrl.u32 %v1747, 7
      %v1749 = vsub.s32 %v1746, %v1748
      %v1750 = vrot.slane %v1742, %v1749
      %v1751 = vcombine.high %v1750, %v1750
      %v1754 = vmul.f32 %v60, %v1750
      %v1755 = vmul.f32 %v60, %v1751
      %v1756 = vadd.f32 %v1647, %v1754
      %v1757 = vadd.f32 %v1648, %v1755
      %v1758 = vmul.f32 %v155, %v1756
      %v1759 = vmul.f32 %v156, %v1757
      %1760 = vrot.lane.b32.xlu0 %v1756, 17
      %v1761 = vpop.permute.xlu0 %1760
      %1762 = vrot.lane.b32.xlu0 %v1757, 17
      %v1763 = vpop.permute.xlu0 %1762
      %v1764 = vsel %vm884, %v1761, %v1763
      %v1765 = vsel %vm884, %v1763, %v1761
      %v1766 = vmul.f32 %v79, %v1765
      %v1767 = vmul.f32 %v80, %v1764
      %v1768 = vadd.f32 %v1758, %v1766
      %v1769 = vadd.f32 %v1759, %v1767
      %1770 = vrot.lane.b32.xlu0 %v1756, 16
      %v1771 = vpop.permute.xlu0 %1770
      %1772 = vrot.lane.b32.xlu0 %v1757, 16
      %v1773 = vpop.permute.xlu0 %1772
      %v1774 = vsel %vm895, %v1771, %v1773
      %v1775 = vsel %vm895, %v1773, %v1771
      %v1776 = vmul.f32 %v98, %v1775
      %v1777 = vmul.f32 %v99, %v1774
      %v1778 = vadd.f32 %v1768, %v1776
      %v1779 = vadd.f32 %v1769, %v1777
      %1780 = vrot.lane.b32.xlu0 %v1756, 15
      %v1781 = vpop.permute.xlu0 %1780
      %1782 = vrot.lane.b32.xlu0 %v1757, 15
      %v1783 = vpop.permute.xlu0 %1782
      %v1784 = vsel %vm906, %v1781, %v1783
      %v1785 = vsel %vm906, %v1783, %v1781
      %v1786 = vmul.f32 %v117, %v1785
      %v1787 = vmul.f32 %v118, %v1784
      %v1788 = vadd.f32 %v1778, %v1786
      %v1789 = vadd.f32 %v1779, %v1787
      %1790 = vrot.lane.b32.xlu0 %v1756, 1
      %v1791 = vpop.permute.xlu0 %1790
      %1792 = vrot.lane.b32.xlu0 %v1757, 1
      %v1793 = vpop.permute.xlu0 %1792
      %v1794 = vsel %vm917, %v1791, %v1793
      %v1795 = vsel %vm917, %v1793, %v1791
      %v1796 = vmul.f32 %v136, %v1795
      %v1797 = vmul.f32 %v137, %v1794
      %v1798 = vadd.f32 %v1788, %v1796
      %v1799 = vadd.f32 %v1789, %v1797
      %1800 = vrot.lane.b32.xlu0 %v1756, 127
      %v1801 = vpop.permute.xlu0 %1800
      %1802 = vrot.lane.b32.xlu0 %v1757, 127
      %v1803 = vpop.permute.xlu0 %1802
      %v1804 = vsel %vm928, %v1801, %v1803
      %v1805 = vsel %vm928, %v1803, %v1801
      %v1806 = vmul.f32 %v174, %v1804
      %v1807 = vmul.f32 %v175, %v1805
      %v1808 = vadd.f32 %v1798, %v1806
      %v1809 = vadd.f32 %v1799, %v1807
      %1810 = vrot.lane.b32.xlu0 %v1756, 113
      %v1811 = vpop.permute.xlu0 %1810
      %1812 = vrot.lane.b32.xlu0 %v1757, 113
      %v1813 = vpop.permute.xlu0 %1812
      %v1814 = vsel %vm939, %v1811, %v1813
      %v1815 = vsel %vm939, %v1813, %v1811
      %v1816 = vmul.f32 %v193, %v1814
      %v1817 = vmul.f32 %v194, %v1815
      %v1818 = vadd.f32 %v1808, %v1816
      %v1819 = vadd.f32 %v1809, %v1817
      %1820 = vrot.lane.b32.xlu0 %v1756, 112
      %v1821 = vpop.permute.xlu0 %1820
      %1822 = vrot.lane.b32.xlu0 %v1757, 112
      %v1823 = vpop.permute.xlu0 %1822
      %v1824 = vsel %vm950, %v1821, %v1823
      %v1825 = vsel %vm950, %v1823, %v1821
      %v1826 = vmul.f32 %v212, %v1824
      %v1827 = vmul.f32 %v213, %v1825
      %v1828 = vadd.f32 %v1818, %v1826
      %v1829 = vadd.f32 %v1819, %v1827
      %1830 = vrot.lane.b32.xlu0 %v1756, 111
      %v1831 = vpop.permute.xlu0 %1830
      %1832 = vrot.lane.b32.xlu0 %v1757, 111
      %v1833 = vpop.permute.xlu0 %1832
      %v1834 = vsel %vm961, %v1831, %v1833
      %v1835 = vsel %vm961, %v1833, %v1831
      %v1836 = vmul.f32 %v231, %v1834
      %v1837 = vmul.f32 %v232, %v1835
      %v1838 = vadd.f32 %v1828, %v1836
      %v1839 = vadd.f32 %v1829, %v1837
      %v1842 = vcombine.low %v1838, %v1839
      %v1844 = vunpack.c.l.s4 1983009808
      %v1845 = vunpack.c.0.s8 %v1844
      %v1846 = vlaneseq
      %v1847 = vshrl.u32 %v1846, 7
      %v1848 = vsub.s32 %v1845, %v1847
      %v1849 = vrot.slane %v1842, %v1848
      %v1851 = vsub.f32 %v53, %v1849
      %v1854 = vunpack.c.l.s4 1983009808
      %v1855 = vunpack.c.0.s8 %v1854
      %v1856 = vlaneseq
      %v1857 = vshrl.u32 %v1856, 7
      %v1858 = vsub.s32 %v1855, %v1857
      %v1859 = vrot.slane %v1851, %v1858
      %v1860 = vcombine.high %v1859, %v1859
      %v1863 = vmul.f32 %v60, %v1859
      %v1864 = vmul.f32 %v60, %v1860
      %v1865 = vadd.f32 %v1756, %v1863
      %v1866 = vadd.f32 %v1757, %v1864
      %v1867 = vmul.f32 %v155, %v1865
      %v1868 = vmul.f32 %v156, %v1866
      %1869 = vrot.lane.b32.xlu0 %v1865, 17
      %v1870 = vpop.permute.xlu0 %1869
      %1871 = vrot.lane.b32.xlu0 %v1866, 17
      %v1872 = vpop.permute.xlu0 %1871
      %v1873 = vsel %vm884, %v1870, %v1872
      %v1874 = vsel %vm884, %v1872, %v1870
      %v1875 = vmul.f32 %v79, %v1874
      %v1876 = vmul.f32 %v80, %v1873
      %v1877 = vadd.f32 %v1867, %v1875
      %v1878 = vadd.f32 %v1868, %v1876
      %1879 = vrot.lane.b32.xlu0 %v1865, 16
      %v1880 = vpop.permute.xlu0 %1879
      %1881 = vrot.lane.b32.xlu0 %v1866, 16
      %v1882 = vpop.permute.xlu0 %1881
      %v1883 = vsel %vm895, %v1880, %v1882
      %v1884 = vsel %vm895, %v1882, %v1880
      %v1885 = vmul.f32 %v98, %v1884
      %v1886 = vmul.f32 %v99, %v1883
      %v1887 = vadd.f32 %v1877, %v1885
      %v1888 = vadd.f32 %v1878, %v1886
      %1889 = vrot.lane.b32.xlu0 %v1865, 15
      %v1890 = vpop.permute.xlu0 %1889
      %1891 = vrot.lane.b32.xlu0 %v1866, 15
      %v1892 = vpop.permute.xlu0 %1891
      %v1893 = vsel %vm906, %v1890, %v1892
      %v1894 = vsel %vm906, %v1892, %v1890
      %v1895 = vmul.f32 %v117, %v1894
      %v1896 = vmul.f32 %v118, %v1893
      %v1897 = vadd.f32 %v1887, %v1895
      %v1898 = vadd.f32 %v1888, %v1896
      %1899 = vrot.lane.b32.xlu0 %v1865, 1
      %v1900 = vpop.permute.xlu0 %1899
      %1901 = vrot.lane.b32.xlu0 %v1866, 1
      %v1902 = vpop.permute.xlu0 %1901
      %v1903 = vsel %vm917, %v1900, %v1902
      %v1904 = vsel %vm917, %v1902, %v1900
      %v1905 = vmul.f32 %v136, %v1904
      %v1906 = vmul.f32 %v137, %v1903
      %v1907 = vadd.f32 %v1897, %v1905
      %v1908 = vadd.f32 %v1898, %v1906
      %1909 = vrot.lane.b32.xlu0 %v1865, 127
      %v1910 = vpop.permute.xlu0 %1909
      %1911 = vrot.lane.b32.xlu0 %v1866, 127
      %v1912 = vpop.permute.xlu0 %1911
      %v1913 = vsel %vm928, %v1910, %v1912
      %v1914 = vsel %vm928, %v1912, %v1910
      %v1915 = vmul.f32 %v174, %v1913
      %v1916 = vmul.f32 %v175, %v1914
      %v1917 = vadd.f32 %v1907, %v1915
      %v1918 = vadd.f32 %v1908, %v1916
      %1919 = vrot.lane.b32.xlu0 %v1865, 113
      %v1920 = vpop.permute.xlu0 %1919
      %1921 = vrot.lane.b32.xlu0 %v1866, 113
      %v1922 = vpop.permute.xlu0 %1921
      %v1923 = vsel %vm939, %v1920, %v1922
      %v1924 = vsel %vm939, %v1922, %v1920
      %v1925 = vmul.f32 %v193, %v1923
      %v1926 = vmul.f32 %v194, %v1924
      %v1927 = vadd.f32 %v1917, %v1925
      %v1928 = vadd.f32 %v1918, %v1926
      %1929 = vrot.lane.b32.xlu0 %v1865, 112
      %v1930 = vpop.permute.xlu0 %1929
      %1931 = vrot.lane.b32.xlu0 %v1866, 112
      %v1932 = vpop.permute.xlu0 %1931
      %v1933 = vsel %vm950, %v1930, %v1932
      %v1934 = vsel %vm950, %v1932, %v1930
      %v1935 = vmul.f32 %v212, %v1933
      %v1936 = vmul.f32 %v213, %v1934
      %v1937 = vadd.f32 %v1927, %v1935
      %v1938 = vadd.f32 %v1928, %v1936
      %1939 = vrot.lane.b32.xlu0 %v1865, 111
      %v1940 = vpop.permute.xlu0 %1939
      %1941 = vrot.lane.b32.xlu0 %v1866, 111
      %v1942 = vpop.permute.xlu0 %1941
      %v1943 = vsel %vm961, %v1940, %v1942
      %v1944 = vsel %vm961, %v1942, %v1940
      %v1945 = vmul.f32 %v231, %v1943
      %v1946 = vmul.f32 %v232, %v1944
      %v1947 = vadd.f32 %v1937, %v1945
      %v1948 = vadd.f32 %v1938, %v1946
      %v1951 = vcombine.low %v1947, %v1948
      %v1953 = vunpack.c.l.s4 1983009808
      %v1954 = vunpack.c.0.s8 %v1953
      %v1955 = vlaneseq
      %v1956 = vshrl.u32 %v1955, 7
      %v1957 = vsub.s32 %v1954, %v1956
      %v1958 = vrot.slane %v1951, %v1957
      %v1960 = vsub.f32 %v53, %v1958
      %v1963 = vunpack.c.l.s4 1983009808
      %v1964 = vunpack.c.0.s8 %v1963
      %v1965 = vlaneseq
      %v1966 = vshrl.u32 %v1965, 7
      %v1967 = vsub.s32 %v1964, %v1966
      %v1968 = vrot.slane %v1960, %v1967
      %v1969 = vcombine.high %v1968, %v1968
      %v1972 = vmul.f32 %v60, %v1968
      %v1973 = vmul.f32 %v60, %v1969
      %v1974 = vadd.f32 %v1865, %v1972
      %v1975 = vadd.f32 %v1866, %v1973
      %v1976 = vmul.f32 %v155, %v1974
      %v1977 = vmul.f32 %v156, %v1975
      %1978 = vrot.lane.b32.xlu0 %v1974, 17
      %v1979 = vpop.permute.xlu0 %1978
      %1980 = vrot.lane.b32.xlu0 %v1975, 17
      %v1981 = vpop.permute.xlu0 %1980
      %v1982 = vsel %vm884, %v1979, %v1981
      %v1983 = vsel %vm884, %v1981, %v1979
      %v1984 = vmul.f32 %v79, %v1983
      %v1985 = vmul.f32 %v80, %v1982
      %v1986 = vadd.f32 %v1976, %v1984
      %v1987 = vadd.f32 %v1977, %v1985
      %1988 = vrot.lane.b32.xlu0 %v1974, 16
      %v1989 = vpop.permute.xlu0 %1988
      %1990 = vrot.lane.b32.xlu0 %v1975, 16
      %v1991 = vpop.permute.xlu0 %1990
      %v1992 = vsel %vm895, %v1989, %v1991
      %v1993 = vsel %vm895, %v1991, %v1989
      %v1994 = vmul.f32 %v98, %v1993
      %v1995 = vmul.f32 %v99, %v1992
      %v1996 = vadd.f32 %v1986, %v1994
      %v1997 = vadd.f32 %v1987, %v1995
      %1998 = vrot.lane.b32.xlu0 %v1974, 15
      %v1999 = vpop.permute.xlu0 %1998
      %2000 = vrot.lane.b32.xlu0 %v1975, 15
      %v2001 = vpop.permute.xlu0 %2000
      %v2002 = vsel %vm906, %v1999, %v2001
      %v2003 = vsel %vm906, %v2001, %v1999
      %v2004 = vmul.f32 %v117, %v2003
      %v2005 = vmul.f32 %v118, %v2002
      %v2006 = vadd.f32 %v1996, %v2004
      %v2007 = vadd.f32 %v1997, %v2005
      %2008 = vrot.lane.b32.xlu0 %v1974, 1
      %v2009 = vpop.permute.xlu0 %2008
      %2010 = vrot.lane.b32.xlu0 %v1975, 1
      %v2011 = vpop.permute.xlu0 %2010
      %v2012 = vsel %vm917, %v2009, %v2011
      %v2013 = vsel %vm917, %v2011, %v2009
      %v2014 = vmul.f32 %v136, %v2013
      %v2015 = vmul.f32 %v137, %v2012
      %v2016 = vadd.f32 %v2006, %v2014
      %v2017 = vadd.f32 %v2007, %v2015
      %2018 = vrot.lane.b32.xlu0 %v1974, 127
      %v2019 = vpop.permute.xlu0 %2018
      %2020 = vrot.lane.b32.xlu0 %v1975, 127
      %v2021 = vpop.permute.xlu0 %2020
      %v2022 = vsel %vm928, %v2019, %v2021
      %v2023 = vsel %vm928, %v2021, %v2019
      %v2024 = vmul.f32 %v174, %v2022
      %v2025 = vmul.f32 %v175, %v2023
      %v2026 = vadd.f32 %v2016, %v2024
      %v2027 = vadd.f32 %v2017, %v2025
      %2028 = vrot.lane.b32.xlu0 %v1974, 113
      %v2029 = vpop.permute.xlu0 %2028
      %2030 = vrot.lane.b32.xlu0 %v1975, 113
      %v2031 = vpop.permute.xlu0 %2030
      %v2032 = vsel %vm939, %v2029, %v2031
      %v2033 = vsel %vm939, %v2031, %v2029
      %v2034 = vmul.f32 %v193, %v2032
      %v2035 = vmul.f32 %v194, %v2033
      %v2036 = vadd.f32 %v2026, %v2034
      %v2037 = vadd.f32 %v2027, %v2035
      %2038 = vrot.lane.b32.xlu0 %v1974, 112
      %v2039 = vpop.permute.xlu0 %2038
      %2040 = vrot.lane.b32.xlu0 %v1975, 112
      %v2041 = vpop.permute.xlu0 %2040
      %v2042 = vsel %vm950, %v2039, %v2041
      %v2043 = vsel %vm950, %v2041, %v2039
      %v2044 = vmul.f32 %v212, %v2042
      %v2045 = vmul.f32 %v213, %v2043
      %v2046 = vadd.f32 %v2036, %v2044
      %v2047 = vadd.f32 %v2037, %v2045
      %2048 = vrot.lane.b32.xlu0 %v1974, 111
      %v2049 = vpop.permute.xlu0 %2048
      %2050 = vrot.lane.b32.xlu0 %v1975, 111
      %v2051 = vpop.permute.xlu0 %2050
      %v2052 = vsel %vm961, %v2049, %v2051
      %v2053 = vsel %vm961, %v2051, %v2049
      %v2054 = vmul.f32 %v231, %v2052
      %v2055 = vmul.f32 %v232, %v2053
      %v2056 = vadd.f32 %v2046, %v2054
      %v2057 = vadd.f32 %v2047, %v2055
      %v2060 = vcombine.low %v2056, %v2057
      %v2062 = vunpack.c.l.s4 1983009808
      %v2063 = vunpack.c.0.s8 %v2062
      %v2064 = vlaneseq
      %v2065 = vshrl.u32 %v2064, 7
      %v2066 = vsub.s32 %v2063, %v2065
      %v2067 = vrot.slane %v2060, %v2066
      %v2069 = vsub.f32 %v53, %v2067
      %v2070 = vld [vmem:[%s10] sm:$0xff]
      %v2071 = vld [vmem:[%s10 + $0x8] sm:$0xff]
      %v2072 = vld [vmem:[%s10 + $0x10] sm:$0xff]
      %v2073 = vld [vmem:[%s10 + $0x18] sm:$0xff]
      %v2074 = vld [vmem:[%s10 + $0x20] sm:$0xff]
      %v2075 = vld [vmem:[%s10 + $0x28] sm:$0xff]
      %v2076 = vld [vmem:[%s10 + $0x30] sm:$0xff]
      %v2077 = vld [vmem:[%s10 + $0x38] sm:$0xff]
      %v2078 = vld [vmem:[%s10 + $0x40] sm:$0xff]
      %v2079 = vld [vmem:[%s10 + $0x48] sm:$0xff]
      %v2080 = vld [vmem:[%s10 + $0x50] sm:$0xff]
      %v2081 = vld [vmem:[%s10 + $0x58] sm:$0xff]
      %v2082 = vld [vmem:[%s10 + $0x60] sm:$0xff]
      %v2083 = vld [vmem:[%s10 + $0x68] sm:$0xff]
      %v2084 = vld [vmem:[%s10 + $0x70] sm:$0xff]
      %v2085 = vld [vmem:[%s10 + $0x78] sm:$0xff]
      %v2086 = vld [vmem:[%s10 + $0x80] sm:$0xff]
      %v2087 = vld [vmem:[%s10 + $0x88] sm:$0xff]
      %v2088 = vld [vmem:[%s10 + $0x90] sm:$0xff]
      %v2089 = vld [vmem:[%s10 + $0x98] sm:$0xff]
      %v2090 = vld [vmem:[%s10 + $0xa0] sm:$0xff]
      %v2091 = vld [vmem:[%s10 + $0xa8] sm:$0xff]
      %v2092 = vld [vmem:[%s10 + $0xb0] sm:$0xff]
      %v2093 = vld [vmem:[%s10 + $0xb8] sm:$0xff]
      %v2094 = vld [vmem:[%s10 + $0xc0] sm:$0xff]
      %v2095 = vld [vmem:[%s10 + $0xc8] sm:$0xff]
      %v2096 = vld [vmem:[%s10 + $0xd0] sm:$0xff]
      %v2097 = vld [vmem:[%s10 + $0xd8] sm:$0xff]
      %v2098 = vld [vmem:[%s10 + $0xe0] sm:$0xff]
      %v2099 = vld [vmem:[%s10 + $0xe8] sm:$0xff]
      %v2100 = vld [vmem:[%s10 + $0xf0] sm:$0xff]
      %v2101 = vld [vmem:[%s10 + $0xf8] sm:$0xff]
      %v2104 = vunpack.c.l.s4 1983009808
      %v2105 = vunpack.c.0.s8 %v2104
      %v2106 = vlaneseq
      %v2107 = vshrl.u32 %v2106, 7
      %v2108 = vsub.s32 %v2105, %v2107
      %v2109 = vrot.slane %v2069, %v2108
      %v2110 = vcombine.high %v2109, %v2109
      %2113 = vmatprep.subr.mxu0 0.0
      %2114 = vmatpush1.msra.mxu0 %v2070
      %2115 = vmatprep.subr.mxu0 0.0
      %2116 = vmatpush1.msra.mxu0 %v2071
      %2117 = vmatprep.subr.mxu0 0.0
      %2118 = vmatpush1.msra.mxu0 %v2072
      %2119 = vmatprep.subr.mxu0 0.0
      %2120 = vmatpush1.msra.mxu0 %v2073
      %2121 = vmatprep.subr.mxu0 0.0
      %2122 = vmatpush1.msra.mxu0 %v2074
      %2123 = vmatprep.subr.mxu0 0.0
      %2124 = vmatpush1.msra.mxu0 %v2075
      %2125 = vmatprep.subr.mxu0 0.0
      %2126 = vmatpush1.msra.mxu0 %v2076
      %2127 = vmatprep.subr.mxu0 0.0
      %2128 = vmatpush1.msra.mxu0 %v2077
      %2129 = vmatprep.subr.mxu0 0.0
      %2130 = vmatpush1.msra.mxu0 %v2078
      %2131 = vmatprep.subr.mxu0 0.0
      %2132 = vmatpush1.msra.mxu0 %v2079
      %2133 = vmatprep.subr.mxu0 0.0
      %2134 = vmatpush1.msra.mxu0 %v2080
      %2135 = vmatprep.subr.mxu0 0.0
      %2136 = vmatpush1.msra.mxu0 %v2081
      %2137 = vmatprep.subr.mxu0 0.0
      %2138 = vmatpush1.msra.mxu0 %v2082
      %2139 = vmatprep.subr.mxu0 0.0
      %2140 = vmatpush1.msra.mxu0 %v2083
      %2141 = vmatprep.subr.mxu0 0.0
      %2142 = vmatpush1.msra.mxu0 %v2084
      %2143 = vmatprep.subr.mxu0 0.0
      %2144 = vmatpush1.msra.mxu0 %v2085
      %2145 = vmatprep.subr.mxu0 0.0
      %2146 = vmatpush1.msra.mxu0 %v2086
      %2147 = vmatprep.subr.mxu0 0.0
      %2148 = vmatpush1.msra.mxu0 %v2087
      %2149 = vmatprep.subr.mxu0 0.0
      %2150 = vmatpush1.msra.mxu0 %v2088
      %2151 = vmatprep.subr.mxu0 0.0
      %2152 = vmatpush1.msra.mxu0 %v2089
      %2153 = vmatprep.subr.mxu0 0.0
      %2154 = vmatpush1.msra.mxu0 %v2090
      %2155 = vmatprep.subr.mxu0 0.0
      %2156 = vmatpush1.msra.mxu0 %v2091
      %2157 = vmatprep.subr.mxu0 0.0
      %2158 = vmatpush1.msra.mxu0 %v2092
      %2159 = vmatprep.subr.mxu0 0.0
      %2160 = vmatpush1.msra.mxu0 %v2093
      %2161 = vmatprep.subr.mxu0 0.0
      %2162 = vmatpush1.msra.mxu0 %v2094
      %2163 = vmatprep.subr.mxu0 0.0
      %2164 = vmatpush1.msra.mxu0 %v2095
      %2165 = vmatprep.subr.mxu0 0.0
      %2166 = vmatpush1.msra.mxu0 %v2096
      %2167 = vmatprep.subr.mxu0 0.0
      %2168 = vmatpush1.msra.mxu0 %v2097
      %2169 = vmatprep.subr.mxu0 0.0
      %2170 = vmatpush1.msra.mxu0 %v2098
      %2171 = vmatprep.subr.mxu0 0.0
      %2172 = vmatpush1.msra.mxu0 %v2099
      %2173 = vmatprep.subr.mxu0 0.0
      %2174 = vmatpush1.msra.mxu0 %v2100
      %2175 = vmatprep.subr.mxu0 0.0
      %2176 = vmatpush1.msra.mxu0 %v2101
      %2177 = vmatprep.mubr.f32.mxu0 %v2110
      %2178 = vmatmul.mubr.f32.gmra.mrb[0].mxu0 %v2109
      %v2179 = vpop.f32.mrb[0].mxu0
      %v2180 = vadd.f32 0.0, %v2179
      %v2181 = vpop.f32.mrb[0].mxu0
      %2182 = vdwg.mxu0
      %2183 = vmatprep.subr.mxu0 0.0
      %2184 = vmatpush1.msra.mxu0 %v836
      %2185 = vmatprep.subr.mxu0 0.0
      %2186 = vmatpush1.msra.mxu0 %v837
      %2187 = vmatprep.subr.mxu0 0.0
      %2188 = vmatpush1.msra.mxu0 %v838
      %2189 = vmatprep.subr.mxu0 0.0
      %2190 = vmatpush1.msra.mxu0 %v839
      %2191 = vmatprep.subr.mxu0 0.0
      %2192 = vmatpush1.msra.mxu0 %v840
      %2193 = vmatprep.subr.mxu0 0.0
      %2194 = vmatpush1.msra.mxu0 %v841
      %2195 = vmatprep.subr.mxu0 0.0
      %2196 = vmatpush1.msra.mxu0 %v842
      %2197 = vmatprep.subr.mxu0 0.0
      %2198 = vmatpush1.msra.mxu0 %v843
      %2199 = vmatprep.subr.mxu0 0.0
      %2200 = vmatpush1.msra.mxu0 %v844
      %2201 = vmatprep.subr.mxu0 0.0
      %2202 = vmatpush1.msra.mxu0 %v845
      %2203 = vmatprep.subr.mxu0 0.0
      %2204 = vmatpush1.msra.mxu0 %v846
      %2205 = vmatprep.subr.mxu0 0.0
      %2206 = vmatpush1.msra.mxu0 %v847
      %2207 = vmatprep.subr.mxu0 0.0
      %2208 = vmatpush1.msra.mxu0 %v848
      %2209 = vmatprep.subr.mxu0 0.0
      %2210 = vmatpush1.msra.mxu0 %v849
      %2211 = vmatprep.subr.mxu0 0.0
      %2212 = vmatpush1.msra.mxu0 %v850
      %2213 = vmatprep.subr.mxu0 0.0
      %2214 = vmatpush1.msra.mxu0 %v851
      %2215 = vmatprep.subr.mxu0 0.0
      %2216 = vmatpush1.msra.mxu0 %v852
      %2217 = vmatprep.subr.mxu0 0.0
      %2218 = vmatpush1.msra.mxu0 %v853
      %2219 = vmatprep.subr.mxu0 0.0
      %2220 = vmatpush1.msra.mxu0 %v854
      %2221 = vmatprep.subr.mxu0 0.0
      %2222 = vmatpush1.msra.mxu0 %v855
      %2223 = vmatprep.subr.mxu0 0.0
      %2224 = vmatpush1.msra.mxu0 %v856
      %2225 = vmatprep.subr.mxu0 0.0
      %2226 = vmatpush1.msra.mxu0 %v857
      %2227 = vmatprep.subr.mxu0 0.0
      %2228 = vmatpush1.msra.mxu0 %v858
      %2229 = vmatprep.subr.mxu0 0.0
      %2230 = vmatpush1.msra.mxu0 %v859
      %2231 = vmatprep.subr.mxu0 0.0
      %2232 = vmatpush1.msra.mxu0 %v860
      %2233 = vmatprep.subr.mxu0 0.0
      %2234 = vmatpush1.msra.mxu0 %v861
      %2235 = vmatprep.subr.mxu0 0.0
      %2236 = vmatpush1.msra.mxu0 %v862
      %2237 = vmatprep.subr.mxu0 0.0
      %2238 = vmatpush1.msra.mxu0 %v863
      %2239 = vmatprep.subr.mxu0 0.0
      %2240 = vmatpush1.msra.mxu0 %v864
      %2241 = vmatprep.subr.mxu0 0.0
      %2242 = vmatpush1.msra.mxu0 %v865
      %2243 = vmatprep.subr.mxu0 0.0
      %2244 = vmatpush1.msra.mxu0 %v866
      %2245 = vmatprep.subr.mxu0 0.0
      %2246 = vmatpush1.msra.mxu0 %v867
      %2247 = vmatprep.mubr.f32.mxu0 %v464
      %2248 = vmatmul.mubr.f32.gmra.mrb[0].mxu0 %v463
      %v2249 = vpop.f32.mrb[0].mxu0
      %v2250 = vadd.f32 %v2180, %v2249
      %v2251 = vpop.f32.mrb[0].mxu0
      %2252 = vdwg.mxu0
      %v2253 = vld [vmem:[%s11] sm:$0x1]
      %v2255 = vlaneseq
      %v2256 = vshrl.u32 %v2255, 7
      %v2257 = vsub.s32 0, %v2256
      %v2258 = vrot.slane %v2253, %v2257
      %v2260 = vadd.f32 %v2250, %v2258
      %v2261 = vtanh.pop %v2260
      %v2262 = vld [vmem:[%s12] sm:$0xff]
      %v2263 = vld [vmem:[%s12 + $0x8] sm:$0xff]
      %v2264 = vld [vmem:[%s12 + $0x10] sm:$0xff]
      %v2265 = vld [vmem:[%s12 + $0x18] sm:$0xff]
      %v2266 = vld [vmem:[%s12 + $0x20] sm:$0xff]
      %v2267 = vld [vmem:[%s12 + $0x28] sm:$0xff]
      %v2268 = vld [vmem:[%s12 + $0x30] sm:$0xff]
      %v2269 = vld [vmem:[%s12 + $0x38] sm:$0xff]
      %v2270 = vld [vmem:[%s13] sm:$0x1]
      %v2272 = vlaneseq
      %v2273 = vshrl.u32 %v2272, 7
      %v2274 = vsub.s32 0, %v2273
      %v2275 = vrot.slane %v2270, %v2274
      %v2278 = vsel %vm726, %v2261, 0
      %2280 = vmatprep.subr.mxu0 0.0
      %2281 = vmatpush1.msra.mxu0 %v2262
      %2282 = vmatprep.subr.mxu0 0.0
      %2283 = vmatpush1.msra.mxu0 %v2263
      %2284 = vmatprep.subr.mxu0 0.0
      %2285 = vmatpush1.msra.mxu0 %v2264
      %2286 = vmatprep.subr.mxu0 0.0
      %2287 = vmatpush1.msra.mxu0 %v2265
      %2288 = vmatprep.subr.mxu0 0.0
      %2289 = vmatpush1.msra.mxu0 %v2266
      %2290 = vmatprep.subr.mxu0 0.0
      %2291 = vmatpush1.msra.mxu0 %v2267
      %2292 = vmatprep.subr.mxu0 0.0
      %2293 = vmatpush1.msra.mxu0 %v2268
      %2294 = vmatprep.subr.mxu0 0.0
      %2295 = vmatpush1.msra.mxu0 %v2269
      %2296 = vmatprep.subr.mxu0 0.0
      %2297 = vmatpush1.msra.mxu0 0.0
      %2298 = vmatprep.subr.mxu0 0.0
      %2299 = vmatpush1.msra.mxu0 0.0
      %2300 = vmatprep.subr.mxu0 0.0
      %2301 = vmatpush1.msra.mxu0 0.0
      %2302 = vmatprep.subr.mxu0 0.0
      %2303 = vmatpush1.msra.mxu0 0.0
      %2304 = vmatprep.subr.mxu0 0.0
      %2305 = vmatpush1.msra.mxu0 0.0
      %2306 = vmatprep.subr.mxu0 0.0
      %2307 = vmatpush1.msra.mxu0 0.0
      %2308 = vmatprep.subr.mxu0 0.0
      %2309 = vmatpush1.msra.mxu0 0.0
      %2310 = vmatprep.subr.mxu0 0.0
      %2311 = vmatpush1.msra.mxu0 0.0
      %2312 = vmatprep.subr.mxu0 0.0
      %2313 = vmatpush1.msra.mxu0 0.0
      %2314 = vmatprep.subr.mxu0 0.0
      %2315 = vmatpush1.msra.mxu0 0.0
      %2316 = vmatprep.subr.mxu0 0.0
      %2317 = vmatpush1.msra.mxu0 0.0
      %2318 = vmatprep.subr.mxu0 0.0
      %2319 = vmatpush1.msra.mxu0 0.0
      %2320 = vmatprep.subr.mxu0 0.0
      %2321 = vmatpush1.msra.mxu0 0.0
      %2322 = vmatprep.subr.mxu0 0.0
      %2323 = vmatpush1.msra.mxu0 0.0
      %2324 = vmatprep.subr.mxu0 0.0
      %2325 = vmatpush1.msra.mxu0 0.0
      %2326 = vmatprep.subr.mxu0 0.0
      %2327 = vmatpush1.msra.mxu0 0.0
      %2328 = vmatprep.subr.mxu0 0.0
      %2329 = vmatpush1.msra.mxu0 0.0
      %2330 = vmatprep.subr.mxu0 0.0
      %2331 = vmatpush1.msra.mxu0 0.0
      %2332 = vmatprep.subr.mxu0 0.0
      %2333 = vmatpush1.msra.mxu0 0.0
      %2334 = vmatprep.subr.mxu0 0.0
      %2335 = vmatpush1.msra.mxu0 0.0
      %2336 = vmatprep.subr.mxu0 0.0
      %2337 = vmatpush1.msra.mxu0 0.0
      %2338 = vmatprep.subr.mxu0 0.0
      %2339 = vmatpush1.msra.mxu0 0.0
      %2340 = vmatprep.subr.mxu0 0.0
      %2341 = vmatpush1.msra.mxu0 0.0
      %2342 = vmatprep.subr.mxu0 0.0
      %2343 = vmatpush1.msra.mxu0 0.0
      %2344 = vmatprep.mubr.f32.mxu0 0.0
      %2345 = vmatmul.mubr.f32.gmra.mrb[0].mxu0 %v2278
      %v2346 = vpop.f32.mrb[0].mxu0
      %v2347 = vadd.f32 %v2275, %v2346
      %v2348 = vpop.f32.mrb[0].mxu0
      %2349 = vdwg.mxu0
      %v2350 = vld [vmem:[#allocation2] sm:$0x1]
      %v2352 = vlaneseq
      %v2353 = vshrl.u32 %v2352, 7
      %v2354 = vsub.s32 0, %v2353
      %v2355 = vrot.slane %v2350, %v2354
      %2356 = vset.pattern.permute.xlu0 0
      %2357 = vperm.xlu0 %2356, %v2355
      %v2358 = vpop.permute.xlu0 %2357
      %vm2360 = vcmask 261120
      %v2362 = vsel %vm2360, %v2347, 0
      %2364 = vmatprep.subr.mxu0 %v829
      %2365 = vmatpush1.msra.mxu0 %v828
      %2366 = vmatprep.subr.mxu0 %v831
      %2367 = vmatpush1.msra.mxu0 %v830
      %2368 = vmatprep.subr.mxu0 %v833
      %2369 = vmatpush1.msra.mxu0 %v832
      %2370 = vmatprep.subr.mxu0 %v835
      %2371 = vmatpush1.msra.mxu0 %v834
      %2372 = vmatprep.subr.mxu0 0.0
      %2373 = vmatpush1.msra.mxu0 0.0
      %2374 = vmatprep.subr.mxu0 0.0
      %2375 = vmatpush1.msra.mxu0 0.0
      %2376 = vmatprep.subr.mxu0 0.0
      %2377 = vmatpush1.msra.mxu0 0.0
      %2378 = vmatprep.subr.mxu0 0.0
      %2379 = vmatpush1.msra.mxu0 0.0
      %2380 = vmatprep.subr.mxu0 0.0
      %2381 = vmatpush1.msra.mxu0 0.0
      %2382 = vmatprep.subr.mxu0 0.0
      %2383 = vmatpush1.msra.mxu0 0.0
      %2384 = vmatprep.subr.mxu0 0.0
      %2385 = vmatpush1.msra.mxu0 0.0
      %2386 = vmatprep.subr.mxu0 0.0
      %2387 = vmatpush1.msra.mxu0 0.0
      %2388 = vmatprep.subr.mxu0 0.0
      %2389 = vmatpush1.msra.mxu0 0.0
      %2390 = vmatprep.subr.mxu0 0.0
      %2391 = vmatpush1.msra.mxu0 0.0
      %2392 = vmatprep.subr.mxu0 0.0
      %2393 = vmatpush1.msra.mxu0 0.0
      %2394 = vmatprep.subr.mxu0 0.0
      %2395 = vmatpush1.msra.mxu0 0.0
      %2396 = vmatprep.subr.mxu0 0.0
      %2397 = vmatpush1.msra.mxu0 0.0
      %2398 = vmatprep.subr.mxu0 0.0
      %2399 = vmatpush1.msra.mxu0 0.0
      %2400 = vmatprep.subr.mxu0 0.0
      %2401 = vmatpush1.msra.mxu0 0.0
      %2402 = vmatprep.subr.mxu0 0.0
      %2403 = vmatpush1.msra.mxu0 0.0
      %2404 = vmatprep.subr.mxu0 0.0
      %2405 = vmatpush1.msra.mxu0 0.0
      %2406 = vmatprep.subr.mxu0 0.0
      %2407 = vmatpush1.msra.mxu0 0.0
      %2408 = vmatprep.subr.mxu0 0.0
      %2409 = vmatpush1.msra.mxu0 0.0
      %2410 = vmatprep.subr.mxu0 0.0
      %2411 = vmatpush1.msra.mxu0 0.0
      %2412 = vmatprep.subr.mxu0 0.0
      %2413 = vmatpush1.msra.mxu0 0.0
      %2414 = vmatprep.subr.mxu0 0.0
      %2415 = vmatpush1.msra.mxu0 0.0
      %2416 = vmatprep.subr.mxu0 0.0
      %2417 = vmatpush1.msra.mxu0 0.0
      %2418 = vmatprep.subr.mxu0 0.0
      %2419 = vmatpush1.msra.mxu0 0.0
      %2420 = vmatprep.subr.mxu0 0.0
      %2421 = vmatpush1.msra.mxu0 0.0
      %2422 = vmatprep.subr.mxu0 0.0
      %2423 = vmatpush1.msra.mxu0 0.0
      %2424 = vmatprep.subr.mxu0 0.0
      %2425 = vmatpush1.msra.mxu0 0.0
      %2426 = vmatprep.subr.mxu0 0.0
      %2427 = vmatpush1.msra.mxu0 0.0
      %2428 = vmatprep.mubr.f32.mxu0 0.0
      %2429 = vmatmul.mubr.f32.gmra.mrb[0].mxu0 %v2362
      %v2430 = vpop.f32.mrb[0].mxu0
      %v2431 = vadd.f32 %v2358, %v2430
      %v2432 = vpop.f32.mrb[0].mxu0
      %v2433 = vadd.f32 %v2358, %v2432
      %2434 = vdwg.mxu0
      %v2435 = vadd.f32 %v1974, %v2431
      %v2436 = vadd.f32 %v1975, %v2433
    $region66: #{hyperfns_forward.1} parent=1 // loop_footer
      %s873 = sadd.s32 1, %s869
    $region67: #{hyperfns_forward.1} parent=1 // loop_footer_branch
      %868 = sbr.rel target = $region63
    $region68: #{hyperfns_forward.1} parent=1 // loop_exit
      _
    %v2437 = vmul.f32 %v155, %v874
    %v2438 = vmul.f32 %v156, %v875
    %2439 = vrot.lane.b32.xlu0 %v874, 17
    %v2440 = vpop.permute.xlu0 %2439
    %2441 = vrot.lane.b32.xlu0 %v875, 17
    %v2442 = vpop.permute.xlu0 %2441
    %v2443 = vlaneseq
    %v2444 = vand.u32 %v2443, 127
    %vm2445 = vcmp.lt.s32.totalorder %v2444, 17
    %v2446 = vsel %vm2445, %v2440, %v2442
    %v2447 = vsel %vm2445, %v2442, %v2440
    %v2448 = vmul.f32 %v79, %v2447
    %v2449 = vmul.f32 %v80, %v2446
    %v2450 = vadd.f32 %v2437, %v2448
    %v2451 = vadd.f32 %v2438, %v2449
    %2452 = vrot.lane.b32.xlu0 %v874, 16
    %v2453 = vpop.permute.xlu0 %2452
    %2454 = vrot.lane.b32.xlu0 %v875, 16
    %v2455 = vpop.permute.xlu0 %2454
    %vm2456 = vcmp.lt.s32.totalorder %v2444, 16
    %v2457 = vsel %vm2456, %v2453, %v2455
    %v2458 = vsel %vm2456, %v2455, %v2453
    %v2459 = vmul.f32 %v98, %v2458
    %v2460 = vmul.f32 %v99, %v2457
    %v2461 = vadd.f32 %v2450, %v2459
    %v2462 = vadd.f32 %v2451, %v2460
    %2463 = vrot.lane.b32.xlu0 %v874, 15
    %v2464 = vpop.permute.xlu0 %2463
    %2465 = vrot.lane.b32.xlu0 %v875, 15
    %v2466 = vpop.permute.xlu0 %2465
    %vm2467 = vcmp.lt.s32.totalorder %v2444, 15
    %v2468 = vsel %vm2467, %v2464, %v2466
    %v2469 = vsel %vm2467, %v2466, %v2464
    %v2470 = vmul.f32 %v117, %v2469
    %v2471 = vmul.f32 %v118, %v2468
    %v2472 = vadd.f32 %v2461, %v2470
    %v2473 = vadd.f32 %v2462, %v2471
    %2474 = vrot.lane.b32.xlu0 %v874, 1
    %v2475 = vpop.permute.xlu0 %2474
    %2476 = vrot.lane.b32.xlu0 %v875, 1
    %v2477 = vpop.permute.xlu0 %2476
    %vm2478 = vcmp.lt.s32.totalorder %v2444, 1
    %v2479 = vsel %vm2478, %v2475, %v2477
    %v2480 = vsel %vm2478, %v2477, %v2475
    %v2481 = vmul.f32 %v136, %v2480
    %v2482 = vmul.f32 %v137, %v2479
    %v2483 = vadd.f32 %v2472, %v2481
    %v2484 = vadd.f32 %v2473, %v2482
    %2485 = vrot.lane.b32.xlu0 %v874, 127
    %v2486 = vpop.permute.xlu0 %2485
    %2487 = vrot.lane.b32.xlu0 %v875, 127
    %v2488 = vpop.permute.xlu0 %2487
    %vm2489 = vcmp.lt.s32.totalorder %v2444, 127
    %v2490 = vsel %vm2489, %v2486, %v2488
    %v2491 = vsel %vm2489, %v2488, %v2486
    %v2492 = vmul.f32 %v174, %v2490
    %v2493 = vmul.f32 %v175, %v2491
    %v2494 = vadd.f32 %v2483, %v2492
    %v2495 = vadd.f32 %v2484, %v2493
    %2496 = vrot.lane.b32.xlu0 %v874, 113
    %v2497 = vpop.permute.xlu0 %2496
    %2498 = vrot.lane.b32.xlu0 %v875, 113
    %v2499 = vpop.permute.xlu0 %2498
    %vm2500 = vcmp.lt.s32.totalorder %v2444, 113
    %v2501 = vsel %vm2500, %v2497, %v2499
    %v2502 = vsel %vm2500, %v2499, %v2497
    %v2503 = vmul.f32 %v193, %v2501
    %v2504 = vmul.f32 %v194, %v2502
    %v2505 = vadd.f32 %v2494, %v2503
    %v2506 = vadd.f32 %v2495, %v2504
    %2507 = vrot.lane.b32.xlu0 %v874, 112
    %v2508 = vpop.permute.xlu0 %2507
    %2509 = vrot.lane.b32.xlu0 %v875, 112
    %v2510 = vpop.permute.xlu0 %2509
    %vm2511 = vcmp.lt.s32.totalorder %v2444, 112
    %v2512 = vsel %vm2511, %v2508, %v2510
    %v2513 = vsel %vm2511, %v2510, %v2508
    %v2514 = vmul.f32 %v212, %v2512
    %v2515 = vmul.f32 %v213, %v2513
    %v2516 = vadd.f32 %v2505, %v2514
    %v2517 = vadd.f32 %v2506, %v2515
    %2518 = vrot.lane.b32.xlu0 %v874, 111
    %v2519 = vpop.permute.xlu0 %2518
    %2520 = vrot.lane.b32.xlu0 %v875, 111
    %v2521 = vpop.permute.xlu0 %2520
    %vm2522 = vcmp.lt.s32.totalorder %v2444, 111
    %v2523 = vsel %vm2522, %v2519, %v2521
    %v2524 = vsel %vm2522, %v2521, %v2519
    %v2525 = vmul.f32 %v231, %v2523
    %v2526 = vmul.f32 %v232, %v2524
    %v2527 = vadd.f32 %v2516, %v2525
    %v2528 = vadd.f32 %v2517, %v2526
    %v2531 = vcombine.low %v2527, %v2528
    %v2533 = vunpack.c.l.s4 1983009808
    %v2534 = vunpack.c.0.s8 %v2533
    %v2535 = vlaneseq
    %v2536 = vshrl.u32 %v2535, 7
    %v2537 = vsub.s32 %v2534, %v2536
    %v2538 = vrot.slane %v2531, %v2537
    %v2540 = vsub.f32 %v53, %v2538
    %v2541 = vmul.f32 %v2540, %v2540
    %v2544 = vunpack.c.l.s4 1983009808
    %v2545 = vunpack.c.0.s8 %v2544
    %v2546 = vlaneseq
    %v2547 = vshrl.u32 %v2546, 7
    %v2548 = vsub.s32 %v2545, %v2547
    %v2549 = vrot.slane %v2541, %v2548
    %v2550 = vcombine.high %v2549, %v2549
    %vm2553 = vcmask 1041408
    %v2554 = vsel %vm2553, %v2549, 0.0
    %v2555 = vsel %vm2553, %v2550, 0.0
    %v2556 = vadd.f32 %v2554, %v2555
    %2557 = vadd.xlane.f32.xlu0 %v2556
    %v2558 = vpop.xlane.xlu0 %2557
    %v2559 = vsel %vm2553, %v2558, 0.0
    %v2560 = vrot.slane %v2559, 4
    %v2561 = vadd.f32 %v2559, %v2560
    %v2562 = vrot.slane %v2561, 2
    %v2563 = vadd.f32 %v2561, %v2562
    %v2564 = vrot.slane %v2563, 1
    %v2565 = vadd.f32 %v2563, %v2564
    %v2566 = vmul.f32 %v53, %v53
    %v2569 = vunpack.c.l.s4 1983009808
    %v2570 = vunpack.c.0.s8 %v2569
    %v2571 = vlaneseq
    %v2572 = vshrl.u32 %v2571, 7
    %v2573 = vsub.s32 %v2570, %v2572
    %v2574 = vrot.slane %v2566, %v2573
    %v2575 = vcombine.high %v2574, %v2574
    %v2578 = vsel %vm2553, %v2574, 0.0
    %v2579 = vsel %vm2553, %v2575, 0.0
    %v2580 = vadd.f32 %v2578, %v2579
    %2581 = vadd.xlane.f32.xlu0 %v2580
    %v2582 = vpop.xlane.xlu0 %2581
    %v2583 = vsel %vm2553, %v2582, 0.0
    %v2584 = vrot.slane %v2583, 4
    %v2585 = vadd.f32 %v2583, %v2584
    %v2586 = vrot.slane %v2585, 2
    %v2587 = vadd.f32 %v2585, %v2586
    %v2588 = vrot.slane %v2587, 1
    %v2589 = vadd.f32 %v2587, %v2588
    %v2590 = vrcp.pop %v2589
    %v2591 = vmul.f32 %v2565, %v2590
    %v2592 = vrsqrt.pop %v2591
    %v2593 = vmul.f32 %v2591, %v2592
    %vm2594 = vcmp.eq.f32.partialorder %v2591, inf
    %v2595 = vsel %vm2594, %v2591, %v2593
    %vm2596 = vcmp.eq.f32.partialorder %v2591, 0.0
    %v2597 = vand.u32 %v2591, 2147483648
    %v2598 = vsel %vm2596, %v2597, %v2595
    %vm2599 = vcmask 0
    %2600 = vst.msk [vmem:[#allocation3] sm:$0x1] %vm2599, %v2598
    // Predicated region
    $region69: #{hyperfns_forward.1} parent=1 // pred_check
      _
    $region70: #{hyperfns_forward.1} parent=1 // pred_check_branch
      %2602 = sbr.rel (0) target = $region72
    $region71: #{hyperfns_forward.1} parent=1 // pred_region
      %s2604 = ssub.s32 16, 16
      %2605 = vsyncadd [#allocation4], %s2604
      %s2607 = sshll.u32 [#allocation3], 4
      %s2608 = int_to_ptr.vmem [resolvable:$true] %s2607
      %2610 = dma.vmem_to_hbm [thread:$0]  %s2608, 16, %s15, [#allocation4]
    $region72: #{hyperfns_forward.1} parent=1 // pred_fallthru
      _
    // Predicated region
    $region73: #{hyperfns_forward.1} parent=1 // pred_check
      _
    $region74: #{hyperfns_forward.1} parent=1 // pred_check_branch
      %2612 = sbr.rel (0) target = $region76
    $region75: #{hyperfns_forward.1} parent=1 // pred_region
      %2613 = dma.done [#allocation4], 16
    $region76: #{hyperfns_forward.1} parent=1 // pred_fallthru
      _
    %2614 = vsyncpa [#allocation4], 1

</llo_original>
